<compile_context>
chip_gen: v7x
topology: tpu7x:2x2x1
jax: 0.10.0
libtpu: 0.0.40
codegen_flags: <defaults>
</compile_context>

<pallas_src>
import functools

import jax
import jax.numpy as jnp
from jax import lax
from jax.experimental import pallas as pl
from jax.experimental.pallas import tpu as pltpu


# -----------------------------------------------------------------------------
# Kernel helpers (pure value functions — everything stays in registers)
# -----------------------------------------------------------------------------
def _lstm_cell(gates, c_prev, H):
    """LSTM cell with gate order [i, f, o, g] (permuted host-side).

    One sigmoid over 3H lanes + one tanh per call (2 EUP issues instead of 4).
    All math in f32 (v5e-friendly).
    """
    sig = jax.nn.sigmoid(gates[:, :3 * H])       # i | f | o
    g = jnp.tanh(gates[:, 3 * H:4 * H])
    i_g = sig[:, :H]
    f_g = sig[:, H:2 * H]
    o_g = sig[:, 2 * H:3 * H]
    c_new = f_g * c_prev + i_g * g
    h_new = o_g * jnp.tanh(c_new)
    return h_new, c_new


def _bilstm_layer(pre, w_hh_bd, *, hidden, seq, batch):
    """Fused forward+backward recurrence over one bidirectional LSTM layer.

    pre:     (S*B, 8H) hoisted input preactivations, columns [fwd 4H | bwd 4H],
             rows in time-major order (row = s*B + b).  A VALUE, not a ref.
    w_hh_bd: (2H, 8H) block-diagonal [[W_hh_fwd, 0], [0, W_hh_bwd]] so a single
             (B, 2H) @ (2H, 8H) MXU push serves both directions per step.
    Returns y: (S*B, 2H) = [h_fwd | h_bwd] — assembled with dense concatenates
    (no masked per-step stores).
    """
    H, S, B = hidden, seq, batch
    h = jnp.zeros((B, 2 * H), jnp.float32)       # [h_fwd | h_bwd]
    c_f = jnp.zeros((B, H), jnp.float32)
    c_b = jnp.zeros((B, H), jnp.float32)
    hf = [None] * S
    hb = [None] * S
    # Statically unrolled (S small) so the scheduler can overlap the MXU push
    # with the EUP/VPU tail of the previous step.
    for s in range(S):
        tb = S - 1 - s
        rec = jnp.dot(h, w_hh_bd, preferred_element_type=jnp.float32)   # (B, 8H)
        gates_f = pre[s * B:(s + 1) * B, 0:4 * H] + rec[:, 0:4 * H]
        gates_b = pre[tb * B:(tb + 1) * B, 4 * H:8 * H] + rec[:, 4 * H:8 * H]
        h_f, c_f = _lstm_cell(gates_f, c_f, H)
        h_b, c_b = _lstm_cell(gates_b, c_b, H)
        h = jnp.concatenate([h_f, h_b], axis=-1)
        hf[s] = h_f
        hb[tb] = h_b
    y = jnp.concatenate(
        [jnp.concatenate(hf, axis=0), jnp.concatenate(hb, axis=0)], axis=1)
    return y                                                             # (S*B, 2H)


# -----------------------------------------------------------------------------
# Kernel (one batch block per grid step)
# -----------------------------------------------------------------------------
def predicate_disambiguation_kernel(
    hs_ref,          # (S*Bb, E)   matmul dtype — mean of last-4 hidden states
    feat_ref,        # (S*Bb, 1)   f32 predicate-indicator
    w0x_ref,         # (E, 8H)     layer-0 input proj (fwd | bwd), gates [i,f,o,g]
    w0f_ref,         # (1, 8H)     f32 layer-0 predicate-feature row
    b0_ref,          # (1, 8H)     f32
    whh0_ref,        # (2H, 8H)    f32 block-diag recurrent weights, layer 0
    w1x_ref,         # (2H, 8H)    layer-1 input proj (fwd | bwd)
    b1_ref,          # (1, 8H)     f32
    whh1_ref,        # (2H, 8H)    f32 block-diag recurrent weights, layer 1
    wout_ref,        # (2H, C)
    bout_ref,        # (1, C)      f32
    out_ref,         # (S*Bb, C)   f32
    *, hidden, seq, batch_block):
    H, S, B = hidden, seq, batch_block

    xm = hs_ref[...]                                                     # (S*Bb, E)
    feat = feat_ref[...]                                                 # (S*Bb, 1)

    # Layer 0: one hoisted (S*Bb, E) @ (E, 8H) projection serves both directions;
    # the predicate feature is folded in as an outer-product addend (keeps the
    # contraction E-lanes wide).  Result stays in registers.
    pre0 = (jnp.dot(xm, w0x_ref[...], preferred_element_type=jnp.float32)
            + feat * w0f_ref[...]
            + b0_ref[...])
    y0 = _bilstm_layer(pre0, whh0_ref[...], hidden=H, seq=S, batch=B)

    # Layer 1: hoisted projection over the concatenated layer-0 outputs.
    pre1 = (jnp.dot(y0.astype(w1x_ref.dtype), w1x_ref[...],
                    preferred_element_type=jnp.float32)
            + b1_ref[...])
    y1 = _bilstm_layer(pre1, whh1_ref[...], hidden=H, seq=S, batch=B)

    # Final classifier: single (S*Bb, 2H) @ (2H, C) matmul + bias; one dense store.
    out_ref[...] = (jnp.dot(y1.astype(wout_ref.dtype), wout_ref[...],
                            preferred_element_type=jnp.float32)
                    + bout_ref[...])


# -----------------------------------------------------------------------------
# Host-side weight packing (gate reorder + fwd/bwd concat + block-diag W_hh)
# -----------------------------------------------------------------------------
def _permute_gates(w, H):
    """Reorder gate blocks on the last axis from torch [i,f,g,o] to kernel [i,f,o,g]."""
    return jnp.concatenate(
        [w[..., :2 * H], w[..., 3 * H:4 * H], w[..., 2 * H:3 * H]], axis=-1)


def _block_diag(a, b):
    """[[a, 0], [0, b]] for (H, 4H) a, b -> (2H, 8H)."""
    z = jnp.zeros_like(a)
    return jnp.concatenate([jnp.concatenate([a, z], axis=1),
                            jnp.concatenate([z, b], axis=1)], axis=0)


def _pack_weights(params, embed_dim, matmul_dtype):
    H = params["n_hidden"]
    E = embed_dim
    w0 = jnp.concatenate([_permute_gates(params["w_ih_l0f"], H),
                          _permute_gates(params["w_ih_l0b"], H)], axis=1)  # (E+1, 8H)
    return dict(
        w0x=w0[:E].astype(matmul_dtype),   # (E, 8H) — MXU operand dtype
        w0f=w0[E:E + 1],                   # (1, 8H) f32 — added post-matmul
        b0=jnp.concatenate([_permute_gates(params["b_l0f"], H),
                            _permute_gates(params["b_l0b"], H)], axis=1),
        whh0=_block_diag(_permute_gates(params["w_hh_l0f"], H),
                         _permute_gates(params["w_hh_l0b"], H)),
        w1x=jnp.concatenate([_permute_gates(params["w_ih_l1f"], H),
                             _permute_gates(params["w_ih_l1b"], H)],
                            axis=1).astype(matmul_dtype),
        b1=jnp.concatenate([_permute_gates(params["b_l1f"], H),
                            _permute_gates(params["b_l1b"], H)], axis=1),
        whh1=_block_diag(_permute_gates(params["w_hh_l1f"], H),
                         _permute_gates(params["w_hh_l1b"], H)),
        w_out=params["w_out"].astype(matmul_dtype),
        b_out=params["b_out"],
    )


# -----------------------------------------------------------------------------
# Wrapper
# -----------------------------------------------------------------------------
def predicate_disambiguation_forward(hidden_states_4bse, predicates_bs, params,
                                     *, matmul_dtype=jnp.float32, batch_blocks=1):
    """hidden_states_4bse: (4, B, S, E) f32, predicates_bs: (B, S) int -> (B, S, C) f32.

    matmul_dtype: dtype of the hoisted-projection / classifier MXU operands
                  (bf16 recommended on v6e/v7x; accumulation stays f32).
    batch_blocks: grid size over batch blocks (set >1 on v7x to use both
                  TensorCores; 1 elsewhere).
    """
    H = params["n_hidden"]
    C = params["classes"]
    _, B, S, E = hidden_states_4bse.shape
    assert B % batch_blocks == 0, "batch must divide evenly into batch_blocks"
    Bb = B // batch_blocks
    pk = _pack_weights(params, E, matmul_dtype)

    # XLA preprocessing (cheap, bandwidth-bound): last-4 mean + dtype cast shrink
    # the resident hs footprint 4x (v7x VMEM), predicate feature precomputed in f32.
    hs_mean = jnp.mean(hidden_states_4bse, axis=0)                         # (B, S, E)
    feat = jnp.where(jnp.logical_and(predicates_bs != 0, predicates_bs != -100),
                     1.0, 0.0).astype(jnp.float32)[..., None]              # (B, S, 1)

    def to_blocks(x_bsf):
        # (B, S, F) -> (n_blk, S*Bb, F), time-major rows within each block.
        F = x_bsf.shape[-1]
        return jnp.transpose(x_bsf.reshape(batch_blocks, Bb, S, F),
                             (0, 2, 1, 3)).reshape(batch_blocks, S * Bb, F)

    hs_blk = to_blocks(hs_mean).astype(matmul_dtype)                       # (n, S*Bb, E)
    feat_blk = to_blocks(feat)                                             # (n, S*Bb, 1)

    weight_args = (pk["w0x"], pk["w0f"], pk["b0"], pk["whh0"],
                   pk["w1x"], pk["b1"], pk["whh1"], pk["w_out"], pk["b_out"])

    def data_spec(feature_dim):
        return pl.BlockSpec((None, S * Bb, feature_dim), lambda j: (j, 0, 0))

    def full_spec(w):
        nd = w.ndim
        return pl.BlockSpec(w.shape, lambda j, _nd=nd: (0,) * _nd)

    kernel = functools.partial(predicate_disambiguation_kernel,
                               hidden=H, seq=S, batch_block=Bb)

    out_blk = pl.pallas_call(
        kernel,
        grid=(batch_blocks,),
        out_shape=jax.ShapeDtypeStruct((batch_blocks, S * Bb, C), jnp.float32),
        in_specs=[data_spec(E), data_spec(1)] + [full_spec(w) for w in weight_args],
        out_specs=pl.BlockSpec((None, S * Bb, C), lambda j: (j, 0, 0)),
        compiler_params=pltpu.CompilerParams(
            dimension_semantics=("parallel",),
            vmem_limit_bytes=32 * 1024 * 1024),
    )(hs_blk, feat_blk, *weight_args)

    # (n_blk, S*Bb, C) -> (B, S, C)
    out = jnp.transpose(out_blk.reshape(batch_blocks, S, Bb, C), (0, 2, 1, 3))
    return out.reshape(B, S, C)


# -----------------------------------------------------------------------------
# Pure-JAX reference (torch gate order, torch semantics) for correctness check
# -----------------------------------------------------------------------------
def _reference_forward(hidden_states_4bse, predicates_bs, params):
    H = params["n_hidden"]
    hs = jnp.mean(hidden_states_4bse, axis=0)                              # (B, S, E)
    feat = jnp.where(jnp.logical_and(predicates_bs != 0, predicates_bs != -100),
                     1.0, 0.0).astype(jnp.float32)[..., None]              # (B, S, 1)
    x = jnp.concatenate([hs, feat], axis=-1)                               # (B, S, E+1)

    def lstm_dir(xin, w_ih, w_hh, b, reverse):
        Bb = xin.shape[0]

        def step(carry, xt):
            h, c = carry
            g = xt @ w_ih + h @ w_hh + b                                   # (B, 4H)
            i = jax.nn.sigmoid(g[:, :H])
            f = jax.nn.sigmoid(g[:, H:2 * H])
            gg = jnp.tanh(g[:, 2 * H:3 * H])
            o = jax.nn.sigmoid(g[:, 3 * H:])
            c = f * c + i * gg
            h = o * jnp.tanh(c)
            return (h, c), h

        xs = jnp.transpose(xin, (1, 0, 2))                                 # (S, B, Din)
        if reverse:
            xs = xs[::-1]
        init = (jnp.zeros((Bb, H), jnp.float32), jnp.zeros((Bb, H), jnp.float32))
        _, ys = lax.scan(step, init, xs)
        if reverse:
            ys = ys[::-1]
        return jnp.transpose(ys, (1, 0, 2))                                # (B, S, H)

    y0 = jnp.concatenate(
        [lstm_dir(x, params["w_ih_l0f"], params["w_hh_l0f"], params["b_l0f"], False),
         lstm_dir(x, params["w_ih_l0b"], params["w_hh_l0b"], params["b_l0b"], True)],
        axis=-1)
    y1 = jnp.concatenate(
        [lstm_dir(y0, params["w_ih_l1f"], params["w_hh_l1f"], params["b_l1f"], False),
         lstm_dir(y0, params["w_ih_l1b"], params["w_hh_l1b"], params["b_l1b"], True)],
        axis=-1)
    return y1 @ params["w_out"] + params["b_out"]


# -----------------------------------------------------------------------------
# Parameter init (PyTorch-shaped, torch gate order, pre-transposed for x @ W)
# -----------------------------------------------------------------------------
def init_params(key, embed_dim, n_hidden, classes):
    H = n_hidden
    bound_lstm = 1.0 / jnp.sqrt(jnp.float32(H))
    bound_lin = 1.0 / jnp.sqrt(jnp.float32(2 * H))
    keys = jax.random.split(key, 32)
    ki = iter(range(32))

    def u(shape, bound):
        return jax.random.uniform(keys[next(ki)], shape, jnp.float32, -bound, bound)

    def lstm_dir(din):
        w_ih = u((din, 4 * H), bound_lstm)          # transposed torch (4H, din)
        w_hh = u((H, 4 * H), bound_lstm)            # transposed torch (4H, H)
        b = u((1, 4 * H), bound_lstm) + u((1, 4 * H), bound_lstm)   # b_ih + b_hh
        return w_ih, w_hh, b

    p = {"n_hidden": H, "classes": classes}
    (p["w_ih_l0f"], p["w_hh_l0f"], p["b_l0f"]) = lstm_dir(embed_dim + 1)
    (p["w_ih_l0b"], p["w_hh_l0b"], p["b_l0b"]) = lstm_dir(embed_dim + 1)
    (p["w_ih_l1f"], p["w_hh_l1f"], p["b_l1f"]) = lstm_dir(2 * H)
    (p["w_ih_l1b"], p["w_hh_l1b"], p["b_l1b"]) = lstm_dir(2 * H)
    p["w_out"] = u((2 * H, classes), bound_lin)     # transposed torch (classes, 2H)
    p["b_out"] = u((1, classes), bound_lin)
    return p


if __name__ == "__main__":
    B, S, E, H, C = 2, 8, 32, 32, 16

    key = jax.random.PRNGKey(0)
    k_hs, k_params = jax.random.split(key)

    # Synthetic "last-4 BERT hidden states" and predicate ids.
    hidden_states = jax.random.normal(k_hs, (4, B, S, E), jnp.float32)
    predicates = jnp.array(
        [[0, 3, 0, -100, 7, 0, 0, 2],
         [5, 0, -100, 0, 0, 1, 0, 0]], dtype=jnp.int32)

    params = init_params(k_params, E, H, C)
    ref = _reference_forward(hidden_states, predicates, params)

    # 1) Default path: f32 MXU operands, single grid step (v5e/v6e style).
    out = predicate_disambiguation_forward(hidden_states, predicates, params)
    out = jax.block_until_ready(out)
    assert out.shape == (B, S, C), out.shape
    assert bool(jnp.all(jnp.isfinite(out)))
    err = float(jnp.max(jnp.abs(out - ref)))
    assert err < 1e-3, f"f32 kernel mismatch vs reference: {err}"

    # 2) Batch-block grid path (drives v7x's second TensorCore; harmless elsewhere).
    out_g = predicate_disambiguation_forward(hidden_states, predicates, params,
                                             batch_blocks=2)
    out_g = jax.block_until_ready(out_g)
    err_g = float(jnp.max(jnp.abs(out_g - ref)))
    assert err_g < 1e-3, f"gridded kernel mismatch vs reference: {err_g}"

    # 3) bf16 MXU-operand path (v6e/v7x): f32 accumulation, f32 cell math.
    out_bf = predicate_disambiguation_forward(hidden_states, predicates, params,
                                              matmul_dtype=jnp.bfloat16)
    out_bf = jax.block_until_ready(out_bf)
    assert bool(jnp.all(jnp.isfinite(out_bf)))
    err_bf = float(jnp.max(jnp.abs(out_bf - ref)))
    assert err_bf < 1e-1, f"bf16 kernel mismatch vs reference: {err_bf}"

    print("KERNEL_OK")
</pallas_src>

<mosaic_0001>
module attributes {stable_mosaic.version = 11 : i64} {
  func.func @predicate_disambiguation_kernel(%arg0: i32, %arg1: memref<1x16x32xf32, #tpu.memory_space<vmem>>, %arg2: memref<1x16x1xf32, #tpu.memory_space<vmem>>, %arg3: memref<32x256xf32, #tpu.memory_space<vmem>>, %arg4: memref<1x256xf32, #tpu.memory_space<vmem>>, %arg5: memref<1x256xf32, #tpu.memory_space<vmem>>, %arg6: memref<64x256xf32, #tpu.memory_space<vmem>>, %arg7: memref<64x256xf32, #tpu.memory_space<vmem>>, %arg8: memref<1x256xf32, #tpu.memory_space<vmem>>, %arg9: memref<64x256xf32, #tpu.memory_space<vmem>>, %arg10: memref<64x16xf32, #tpu.memory_space<vmem>>, %arg11: memref<1x16xf32, #tpu.memory_space<vmem>>, %arg12: memref<1x16x16xf32, #tpu.memory_space<vmem>>) attributes {dimension_semantics = [#tpu.dimension_semantics<parallel>], iteration_bounds = array<i64: 1>, scalar_prefetch = 0 : i64, scratch_operands = 0 : i64, tpu.core_type = #tpu.core_type<tc>, window_params = [{transform_indices = @transform_0, window_bounds = array<i64: 1, 16, 32>}, {transform_indices = @transform_1, window_bounds = array<i64: 1, 16, 1>}, {pipeline_mode = #tpu.pipeline_mode<synchronous>, transform_indices = @transform_2, window_bounds = array<i64: 32, 256>}, {pipeline_mode = #tpu.pipeline_mode<synchronous>, transform_indices = @transform_3, window_bounds = array<i64: 1, 256>}, {pipeline_mode = #tpu.pipeline_mode<synchronous>, transform_indices = @transform_4, window_bounds = array<i64: 1, 256>}, {pipeline_mode = #tpu.pipeline_mode<synchronous>, transform_indices = @transform_5, window_bounds = array<i64: 64, 256>}, {pipeline_mode = #tpu.pipeline_mode<synchronous>, transform_indices = @transform_6, window_bounds = array<i64: 64, 256>}, {pipeline_mode = #tpu.pipeline_mode<synchronous>, transform_indices = @transform_7, window_bounds = array<i64: 1, 256>}, {pipeline_mode = #tpu.pipeline_mode<synchronous>, transform_indices = @transform_8, window_bounds = array<i64: 64, 256>}, {pipeline_mode = #tpu.pipeline_mode<synchronous>, transform_indices = @transform_9, window_bounds = array<i64: 64, 16>}, {pipeline_mode = #tpu.pipeline_mode<synchronous>, transform_indices = @transform_10, window_bounds = array<i64: 1, 16>}, {transform_indices = @transform_11, window_bounds = array<i64: 1, 16, 16>}]} {
    %c0 = arith.constant 0 : index
    %c0_0 = arith.constant 0 : index
    %c0_1 = arith.constant 0 : index
    %0 = vector.load %arg1[%c0, %c0_0, %c0_1] : memref<1x16x32xf32, #tpu.memory_space<vmem>>, vector<1x16x32xf32>
    %1 = vector.shape_cast %0 : vector<1x16x32xf32> to vector<16x32xf32>
    %c0_2 = arith.constant 0 : index
    %c0_3 = arith.constant 0 : index
    %c0_4 = arith.constant 0 : index
    %2 = vector.load %arg2[%c0_2, %c0_3, %c0_4] : memref<1x16x1xf32, #tpu.memory_space<vmem>>, vector<1x16x1xf32>
    %3 = vector.shape_cast %2 : vector<1x16x1xf32> to vector<16x1xf32>
    %c0_5 = arith.constant 0 : index
    %c0_6 = arith.constant 0 : index
    %4 = vector.load %arg3[%c0_5, %c0_6] : memref<32x256xf32, #tpu.memory_space<vmem>>, vector<32x256xf32>
    %cst = arith.constant dense<0.000000e+00> : vector<16x256xf32>
    %5 = tpu.matmul %1, %4, %cst {dimension_numbers = #tpu.dot_dimension_numbers<[1], [0], [0], [1], [0, 0, 1, 1], [], []>} : vector<16x32xf32>, vector<32x256xf32>, vector<16x256xf32> -> vector<16x256xf32>
    %c0_7 = arith.constant 0 : index
    %c0_8 = arith.constant 0 : index
    %6 = vector.load %arg4[%c0_7, %c0_8] : memref<1x256xf32, #tpu.memory_space<vmem>>, vector<1x256xf32>
    %7 = vector.broadcast %3 : vector<16x1xf32> to vector<16x256xf32>
    %8 = vector.broadcast %6 : vector<1x256xf32> to vector<16x256xf32>
    %9 = arith.mulf %7, %8 : vector<16x256xf32>
    %10 = arith.addf %5, %9 : vector<16x256xf32>
    %c0_9 = arith.constant 0 : index
    %c0_10 = arith.constant 0 : index
    %11 = vector.load %arg5[%c0_9, %c0_10] : memref<1x256xf32, #tpu.memory_space<vmem>>, vector<1x256xf32>
    %12 = vector.broadcast %11 : vector<1x256xf32> to vector<16x256xf32>
    %13 = arith.addf %10, %12 : vector<16x256xf32>
    %c0_11 = arith.constant 0 : index
    %c0_12 = arith.constant 0 : index
    %14 = vector.load %arg6[%c0_11, %c0_12] : memref<64x256xf32, #tpu.memory_space<vmem>>, vector<64x256xf32>
    %cst_13 = arith.constant 0.000000e+00 : f32
    %15 = vector.broadcast %cst_13 : f32 to vector<2x64xf32>
    %cst_14 = arith.constant 0.000000e+00 : f32
    %16 = vector.broadcast %cst_14 : f32 to vector<2x32xf32>
    %cst_15 = arith.constant 0.000000e+00 : f32
    %17 = vector.broadcast %cst_15 : f32 to vector<2x32xf32>
    %cst_16 = arith.constant dense<0.000000e+00> : vector<2x256xf32>
    %18 = tpu.matmul %15, %14, %cst_16 {dimension_numbers = #tpu.dot_dimension_numbers<[1], [0], [0], [1], [0, 0, 1, 1], [], []>} : vector<2x64xf32>, vector<64x256xf32>, vector<2x256xf32> -> vector<2x256xf32>
    %19 = vector.extract_strided_slice %13 {offsets = [0, 0], sizes = [2, 128], strides = [1, 1]} : vector<16x256xf32> to vector<2x128xf32>
    %20 = vector.extract_strided_slice %18 {offsets = [0, 0], sizes = [2, 128], strides = [1, 1]} : vector<2x256xf32> to vector<2x128xf32>
    %21 = arith.addf %19, %20 : vector<2x128xf32>
    %22 = vector.extract_strided_slice %13 {offsets = [14, 128], sizes = [2, 128], strides = [1, 1]} : vector<16x256xf32> to vector<2x128xf32>
    %23 = vector.extract_strided_slice %18 {offsets = [0, 128], sizes = [2, 128], strides = [1, 1]} : vector<2x256xf32> to vector<2x128xf32>
    %24 = arith.addf %22, %23 : vector<2x128xf32>
    %25 = vector.extract_strided_slice %21 {offsets = [0, 0], sizes = [2, 96], strides = [1, 1]} : vector<2x128xf32> to vector<2x96xf32>
    %26 = arith.negf %25 : vector<2x96xf32>
    %27 = math.exp %26 : vector<2x96xf32>
    %cst_17 = arith.constant 1.000000e+00 : f32
    %28 = vector.broadcast %cst_17 : f32 to vector<2x96xf32>
    %29 = arith.addf %28, %27 : vector<2x96xf32>
    %30 = arith.divf %28, %29 : vector<2x96xf32>
    %31 = vector.extract_strided_slice %21 {offsets = [0, 96], sizes = [2, 32], strides = [1, 1]} : vector<2x128xf32> to vector<2x32xf32>
    %32 = math.tanh %31 : vector<2x32xf32>
    %33 = vector.extract_strided_slice %30 {offsets = [0, 0], sizes = [2, 32], strides = [1, 1]} : vector<2x96xf32> to vector<2x32xf32>
    %34 = vector.extract_strided_slice %30 {offsets = [0, 32], sizes = [2, 32], strides = [1, 1]} : vector<2x96xf32> to vector<2x32xf32>
    %35 = vector.extract_strided_slice %30 {offsets = [0, 64], sizes = [2, 32], strides = [1, 1]} : vector<2x96xf32> to vector<2x32xf32>
    %36 = arith.mulf %34, %16 : vector<2x32xf32>
    %37 = arith.mulf %33, %32 : vector<2x32xf32>
    %38 = arith.addf %36, %37 : vector<2x32xf32>
    %39 = math.tanh %38 : vector<2x32xf32>
    %40 = arith.mulf %35, %39 : vector<2x32xf32>
    %41 = vector.extract_strided_slice %24 {offsets = [0, 0], sizes = [2, 96], strides = [1, 1]} : vector<2x128xf32> to vector<2x96xf32>
    %42 = arith.negf %41 : vector<2x96xf32>
    %43 = math.exp %42 : vector<2x96xf32>
    %cst_18 = arith.constant 1.000000e+00 : f32
    %44 = vector.broadcast %cst_18 : f32 to vector<2x96xf32>
    %45 = arith.addf %44, %43 : vector<2x96xf32>
    %46 = arith.divf %44, %45 : vector<2x96xf32>
    %47 = vector.extract_strided_slice %24 {offsets = [0, 96], sizes = [2, 32], strides = [1, 1]} : vector<2x128xf32> to vector<2x32xf32>
    %48 = math.tanh %47 : vector<2x32xf32>
    %49 = vector.extract_strided_slice %46 {offsets = [0, 0], sizes = [2, 32], strides = [1, 1]} : vector<2x96xf32> to vector<2x32xf32>
    %50 = vector.extract_strided_slice %46 {offsets = [0, 32], sizes = [2, 32], strides = [1, 1]} : vector<2x96xf32> to vector<2x32xf32>
    %51 = vector.extract_strided_slice %46 {offsets = [0, 64], sizes = [2, 32], strides = [1, 1]} : vector<2x96xf32> to vector<2x32xf32>
    %52 = arith.mulf %50, %17 : vector<2x32xf32>
    %53 = arith.mulf %49, %48 : vector<2x32xf32>
    %54 = arith.addf %52, %53 : vector<2x32xf32>
    %55 = math.tanh %54 : vector<2x32xf32>
    %56 = arith.mulf %51, %55 : vector<2x32xf32>
    %57 = tpu.concatenate %40, %56 in 1 : vector<2x32xf32>, vector<2x32xf32> -> vector<2x64xf32>
    %cst_19 = arith.constant dense<0.000000e+00> : vector<2x256xf32>
    %58 = tpu.matmul %57, %14, %cst_19 {dimension_numbers = #tpu.dot_dimension_numbers<[1], [0], [0], [1], [0, 0, 1, 1], [], []>} : vector<2x64xf32>, vector<64x256xf32>, vector<2x256xf32> -> vector<2x256xf32>
    %59 = vector.extract_strided_slice %13 {offsets = [2, 0], sizes = [2, 128], strides = [1, 1]} : vector<16x256xf32> to vector<2x128xf32>
    %60 = vector.extract_strided_slice %58 {offsets = [0, 0], sizes = [2, 128], strides = [1, 1]} : vector<2x256xf32> to vector<2x128xf32>
    %61 = arith.addf %59, %60 : vector<2x128xf32>
    %62 = vector.extract_strided_slice %13 {offsets = [12, 128], sizes = [2, 128], strides = [1, 1]} : vector<16x256xf32> to vector<2x128xf32>
    %63 = vector.extract_strided_slice %58 {offsets = [0, 128], sizes = [2, 128], strides = [1, 1]} : vector<2x256xf32> to vector<2x128xf32>
    %64 = arith.addf %62, %63 : vector<2x128xf32>
    %65 = vector.extract_strided_slice %61 {offsets = [0, 0], sizes = [2, 96], strides = [1, 1]} : vector<2x128xf32> to vector<2x96xf32>
    %66 = arith.negf %65 : vector<2x96xf32>
    %67 = math.exp %66 : vector<2x96xf32>
    %cst_20 = arith.constant 1.000000e+00 : f32
    %68 = vector.broadcast %cst_20 : f32 to vector<2x96xf32>
    %69 = arith.addf %68, %67 : vector<2x96xf32>
    %70 = arith.divf %68, %69 : vector<2x96xf32>
    %71 = vector.extract_strided_slice %61 {offsets = [0, 96], sizes = [2, 32], strides = [1, 1]} : vector<2x128xf32> to vector<2x32xf32>
    %72 = math.tanh %71 : vector<2x32xf32>
    %73 = vector.extract_strided_slice %70 {offsets = [0, 0], sizes = [2, 32], strides = [1, 1]} : vector<2x96xf32> to vector<2x32xf32>
    %74 = vector.extract_strided_slice %70 {offsets = [0, 32], sizes = [2, 32], strides = [1, 1]} : vector<2x96xf32> to vector<2x32xf32>
    %75 = vector.extract_strided_slice %70 {offsets = [0, 64], sizes = [2, 32], strides = [1, 1]} : vector<2x96xf32> to vector<2x32xf32>
    %76 = arith.mulf %74, %38 : vector<2x32xf32>
    %77 = arith.mulf %73, %72 : vector<2x32xf32>
    %78 = arith.addf %76, %77 : vector<2x32xf32>
    %79 = math.tanh %78 : vector<2x32xf32>
    %80 = arith.mulf %75, %79 : vector<2x32xf32>
    %81 = vector.extract_strided_slice %64 {offsets = [0, 0], sizes = [2, 96], strides = [1, 1]} : vector<2x128xf32> to vector<2x96xf32>
    %82 = arith.negf %81 : vector<2x96xf32>
    %83 = math.exp %82 : vector<2x96xf32>
    %cst_21 = arith.constant 1.000000e+00 : f32
    %84 = vector.broadcast %cst_21 : f32 to vector<2x96xf32>
    %85 = arith.addf %84, %83 : vector<2x96xf32>
    %86 = arith.divf %84, %85 : vector<2x96xf32>
    %87 = vector.extract_strided_slice %64 {offsets = [0, 96], sizes = [2, 32], strides = [1, 1]} : vector<2x128xf32> to vector<2x32xf32>
    %88 = math.tanh %87 : vector<2x32xf32>
    %89 = vector.extract_strided_slice %86 {offsets = [0, 0], sizes = [2, 32], strides = [1, 1]} : vector<2x96xf32> to vector<2x32xf32>
    %90 = vector.extract_strided_slice %86 {offsets = [0, 32], sizes = [2, 32], strides = [1, 1]} : vector<2x96xf32> to vector<2x32xf32>
    %91 = vector.extract_strided_slice %86 {offsets = [0, 64], sizes = [2, 32], strides = [1, 1]} : vector<2x96xf32> to vector<2x32xf32>
    %92 = arith.mulf %90, %54 : vector<2x32xf32>
    %93 = arith.mulf %89, %88 : vector<2x32xf32>
    %94 = arith.addf %92, %93 : vector<2x32xf32>
    %95 = math.tanh %94 : vector<2x32xf32>
    %96 = arith.mulf %91, %95 : vector<2x32xf32>
    %97 = tpu.concatenate %80, %96 in 1 : vector<2x32xf32>, vector<2x32xf32> -> vector<2x64xf32>
    %cst_22 = arith.constant dense<0.000000e+00> : vector<2x256xf32>
    %98 = tpu.matmul %97, %14, %cst_22 {dimension_numbers = #tpu.dot_dimension_numbers<[1], [0], [0], [1], [0, 0, 1, 1], [], []>} : vector<2x64xf32>, vector<64x256xf32>, vector<2x256xf32> -> vector<2x256xf32>
    %99 = vector.extract_strided_slice %13 {offsets = [4, 0], sizes = [2, 128], strides = [1, 1]} : vector<16x256xf32> to vector<2x128xf32>
    %100 = vector.extract_strided_slice %98 {offsets = [0, 0], sizes = [2, 128], strides = [1, 1]} : vector<2x256xf32> to vector<2x128xf32>
    %101 = arith.addf %99, %100 : vector<2x128xf32>
    %102 = vector.extract_strided_slice %13 {offsets = [10, 128], sizes = [2, 128], strides = [1, 1]} : vector<16x256xf32> to vector<2x128xf32>
    %103 = vector.extract_strided_slice %98 {offsets = [0, 128], sizes = [2, 128], strides = [1, 1]} : vector<2x256xf32> to vector<2x128xf32>
    %104 = arith.addf %102, %103 : vector<2x128xf32>
    %105 = vector.extract_strided_slice %101 {offsets = [0, 0], sizes = [2, 96], strides = [1, 1]} : vector<2x128xf32> to vector<2x96xf32>
    %106 = arith.negf %105 : vector<2x96xf32>
    %107 = math.exp %106 : vector<2x96xf32>
    %cst_23 = arith.constant 1.000000e+00 : f32
    %108 = vector.broadcast %cst_23 : f32 to vector<2x96xf32>
    %109 = arith.addf %108, %107 : vector<2x96xf32>
    %110 = arith.divf %108, %109 : vector<2x96xf32>
    %111 = vector.extract_strided_slice %101 {offsets = [0, 96], sizes = [2, 32], strides = [1, 1]} : vector<2x128xf32> to vector<2x32xf32>
    %112 = math.tanh %111 : vector<2x32xf32>
    %113 = vector.extract_strided_slice %110 {offsets = [0, 0], sizes = [2, 32], strides = [1, 1]} : vector<2x96xf32> to vector<2x32xf32>
    %114 = vector.extract_strided_slice %110 {offsets = [0, 32], sizes = [2, 32], strides = [1, 1]} : vector<2x96xf32> to vector<2x32xf32>
    %115 = vector.extract_strided_slice %110 {offsets = [0, 64], sizes = [2, 32], strides = [1, 1]} : vector<2x96xf32> to vector<2x32xf32>
    %116 = arith.mulf %114, %78 : vector<2x32xf32>
    %117 = arith.mulf %113, %112 : vector<2x32xf32>
    %118 = arith.addf %116, %117 : vector<2x32xf32>
    %119 = math.tanh %118 : vector<2x32xf32>
    %120 = arith.mulf %115, %119 : vector<2x32xf32>
    %121 = vector.extract_strided_slice %104 {offsets = [0, 0], sizes = [2, 96], strides = [1, 1]} : vector<2x128xf32> to vector<2x96xf32>
    %122 = arith.negf %121 : vector<2x96xf32>
    %123 = math.exp %122 : vector<2x96xf32>
    %cst_24 = arith.constant 1.000000e+00 : f32
    %124 = vector.broadcast %cst_24 : f32 to vector<2x96xf32>
    %125 = arith.addf %124, %123 : vector<2x96xf32>
    %126 = arith.divf %124, %125 : vector<2x96xf32>
    %127 = vector.extract_strided_slice %104 {offsets = [0, 96], sizes = [2, 32], strides = [1, 1]} : vector<2x128xf32> to vector<2x32xf32>
    %128 = math.tanh %127 : vector<2x32xf32>
    %129 = vector.extract_strided_slice %126 {offsets = [0, 0], sizes = [2, 32], strides = [1, 1]} : vector<2x96xf32> to vector<2x32xf32>
    %130 = vector.extract_strided_slice %126 {offsets = [0, 32], sizes = [2, 32], strides = [1, 1]} : vector<2x96xf32> to vector<2x32xf32>
    %131 = vector.extract_strided_slice %126 {offsets = [0, 64], sizes = [2, 32], strides = [1, 1]} : vector<2x96xf32> to vector<2x32xf32>
    %132 = arith.mulf %130, %94 : vector<2x32xf32>
    %133 = arith.mulf %129, %128 : vector<2x32xf32>
    %134 = arith.addf %132, %133 : vector<2x32xf32>
    %135 = math.tanh %134 : vector<2x32xf32>
    %136 = arith.mulf %131, %135 : vector<2x32xf32>
    %137 = tpu.concatenate %120, %136 in 1 : vector<2x32xf32>, vector<2x32xf32> -> vector<2x64xf32>
    %cst_25 = arith.constant dense<0.000000e+00> : vector<2x256xf32>
    %138 = tpu.matmul %137, %14, %cst_25 {dimension_numbers = #tpu.dot_dimension_numbers<[1], [0], [0], [1], [0, 0, 1, 1], [], []>} : vector<2x64xf32>, vector<64x256xf32>, vector<2x256xf32> -> vector<2x256xf32>
    %139 = vector.extract_strided_slice %13 {offsets = [6, 0], sizes = [2, 128], strides = [1, 1]} : vector<16x256xf32> to vector<2x128xf32>
    %140 = vector.extract_strided_slice %138 {offsets = [0, 0], sizes = [2, 128], strides = [1, 1]} : vector<2x256xf32> to vector<2x128xf32>
    %141 = arith.addf %139, %140 : vector<2x128xf32>
    %142 = vector.extract_strided_slice %13 {offsets = [8, 128], sizes = [2, 128], strides = [1, 1]} : vector<16x256xf32> to vector<2x128xf32>
    %143 = vector.extract_strided_slice %138 {offsets = [0, 128], sizes = [2, 128], strides = [1, 1]} : vector<2x256xf32> to vector<2x128xf32>
    %144 = arith.addf %142, %143 : vector<2x128xf32>
    %145 = vector.extract_strided_slice %141 {offsets = [0, 0], sizes = [2, 96], strides = [1, 1]} : vector<2x128xf32> to vector<2x96xf32>
    %146 = arith.negf %145 : vector<2x96xf32>
    %147 = math.exp %146 : vector<2x96xf32>
    %cst_26 = arith.constant 1.000000e+00 : f32
    %148 = vector.broadcast %cst_26 : f32 to vector<2x96xf32>
    %149 = arith.addf %148, %147 : vector<2x96xf32>
    %150 = arith.divf %148, %149 : vector<2x96xf32>
    %151 = vector.extract_strided_slice %141 {offsets = [0, 96], sizes = [2, 32], strides = [1, 1]} : vector<2x128xf32> to vector<2x32xf32>
    %152 = math.tanh %151 : vector<2x32xf32>
    %153 = vector.extract_strided_slice %150 {offsets = [0, 0], sizes = [2, 32], strides = [1, 1]} : vector<2x96xf32> to vector<2x32xf32>
    %154 = vector.extract_strided_slice %150 {offsets = [0, 32], sizes = [2, 32], strides = [1, 1]} : vector<2x96xf32> to vector<2x32xf32>
    %155 = vector.extract_strided_slice %150 {offsets = [0, 64], sizes = [2, 32], strides = [1, 1]} : vector<2x96xf32> to vector<2x32xf32>
    %156 = arith.mulf %154, %118 : vector<2x32xf32>
    %157 = arith.mulf %153, %152 : vector<2x32xf32>
    %158 = arith.addf %156, %157 : vector<2x32xf32>
    %159 = math.tanh %158 : vector<2x32xf32>
    %160 = arith.mulf %155, %159 : vector<2x32xf32>
    %161 = vector.extract_strided_slice %144 {offsets = [0, 0], sizes = [2, 96], strides = [1, 1]} : vector<2x128xf32> to vector<2x96xf32>
    %162 = arith.negf %161 : vector<2x96xf32>
    %163 = math.exp %162 : vector<2x96xf32>
    %cst_27 = arith.constant 1.000000e+00 : f32
    %164 = vector.broadcast %cst_27 : f32 to vector<2x96xf32>
    %165 = arith.addf %164, %163 : vector<2x96xf32>
    %166 = arith.divf %164, %165 : vector<2x96xf32>
    %167 = vector.extract_strided_slice %144 {offsets = [0, 96], sizes = [2, 32], strides = [1, 1]} : vector<2x128xf32> to vector<2x32xf32>
    %168 = math.tanh %167 : vector<2x32xf32>
    %169 = vector.extract_strided_slice %166 {offsets = [0, 0], sizes = [2, 32], strides = [1, 1]} : vector<2x96xf32> to vector<2x32xf32>
    %170 = vector.extract_strided_slice %166 {offsets = [0, 32], sizes = [2, 32], strides = [1, 1]} : vector<2x96xf32> to vector<2x32xf32>
    %171 = vector.extract_strided_slice %166 {offsets = [0, 64], sizes = [2, 32], strides = [1, 1]} : vector<2x96xf32> to vector<2x32xf32>
    %172 = arith.mulf %170, %134 : vector<2x32xf32>
    %173 = arith.mulf %169, %168 : vector<2x32xf32>
    %174 = arith.addf %172, %173 : vector<2x32xf32>
    %175 = math.tanh %174 : vector<2x32xf32>
    %176 = arith.mulf %171, %175 : vector<2x32xf32>
    %177 = tpu.concatenate %160, %176 in 1 : vector<2x32xf32>, vector<2x32xf32> -> vector<2x64xf32>
    %cst_28 = arith.constant dense<0.000000e+00> : vector<2x256xf32>
    %178 = tpu.matmul %177, %14, %cst_28 {dimension_numbers = #tpu.dot_dimension_numbers<[1], [0], [0], [1], [0, 0, 1, 1], [], []>} : vector<2x64xf32>, vector<64x256xf32>, vector<2x256xf32> -> vector<2x256xf32>
    %179 = vector.extract_strided_slice %13 {offsets = [8, 0], sizes = [2, 128], strides = [1, 1]} : vector<16x256xf32> to vector<2x128xf32>
    %180 = vector.extract_strided_slice %178 {offsets = [0, 0], sizes = [2, 128], strides = [1, 1]} : vector<2x256xf32> to vector<2x128xf32>
    %181 = arith.addf %179, %180 : vector<2x128xf32>
    %182 = vector.extract_strided_slice %13 {offsets = [6, 128], sizes = [2, 128], strides = [1, 1]} : vector<16x256xf32> to vector<2x128xf32>
    %183 = vector.extract_strided_slice %178 {offsets = [0, 128], sizes = [2, 128], strides = [1, 1]} : vector<2x256xf32> to vector<2x128xf32>
    %184 = arith.addf %182, %183 : vector<2x128xf32>
    %185 = vector.extract_strided_slice %181 {offsets = [0, 0], sizes = [2, 96], strides = [1, 1]} : vector<2x128xf32> to vector<2x96xf32>
    %186 = arith.negf %185 : vector<2x96xf32>
    %187 = math.exp %186 : vector<2x96xf32>
    %cst_29 = arith.constant 1.000000e+00 : f32
    %188 = vector.broadcast %cst_29 : f32 to vector<2x96xf32>
    %189 = arith.addf %188, %187 : vector<2x96xf32>
    %190 = arith.divf %188, %189 : vector<2x96xf32>
    %191 = vector.extract_strided_slice %181 {offsets = [0, 96], sizes = [2, 32], strides = [1, 1]} : vector<2x128xf32> to vector<2x32xf32>
    %192 = math.tanh %191 : vector<2x32xf32>
    %193 = vector.extract_strided_slice %190 {offsets = [0, 0], sizes = [2, 32], strides = [1, 1]} : vector<2x96xf32> to vector<2x32xf32>
    %194 = vector.extract_strided_slice %190 {offsets = [0, 32], sizes = [2, 32], strides = [1, 1]} : vector<2x96xf32> to vector<2x32xf32>
    %195 = vector.extract_strided_slice %190 {offsets = [0, 64], sizes = [2, 32], strides = [1, 1]} : vector<2x96xf32> to vector<2x32xf32>
    %196 = arith.mulf %194, %158 : vector<2x32xf32>
    %197 = arith.mulf %193, %192 : vector<2x32xf32>
    %198 = arith.addf %196, %197 : vector<2x32xf32>
    %199 = math.tanh %198 : vector<2x32xf32>
    %200 = arith.mulf %195, %199 : vector<2x32xf32>
    %201 = vector.extract_strided_slice %184 {offsets = [0, 0], sizes = [2, 96], strides = [1, 1]} : vector<2x128xf32> to vector<2x96xf32>
    %202 = arith.negf %201 : vector<2x96xf32>
    %203 = math.exp %202 : vector<2x96xf32>
    %cst_30 = arith.constant 1.000000e+00 : f32
    %204 = vector.broadcast %cst_30 : f32 to vector<2x96xf32>
    %205 = arith.addf %204, %203 : vector<2x96xf32>
    %206 = arith.divf %204, %205 : vector<2x96xf32>
    %207 = vector.extract_strided_slice %184 {offsets = [0, 96], sizes = [2, 32], strides = [1, 1]} : vector<2x128xf32> to vector<2x32xf32>
    %208 = math.tanh %207 : vector<2x32xf32>
    %209 = vector.extract_strided_slice %206 {offsets = [0, 0], sizes = [2, 32], strides = [1, 1]} : vector<2x96xf32> to vector<2x32xf32>
    %210 = vector.extract_strided_slice %206 {offsets = [0, 32], sizes = [2, 32], strides = [1, 1]} : vector<2x96xf32> to vector<2x32xf32>
    %211 = vector.extract_strided_slice %206 {offsets = [0, 64], sizes = [2, 32], strides = [1, 1]} : vector<2x96xf32> to vector<2x32xf32>
    %212 = arith.mulf %210, %174 : vector<2x32xf32>
    %213 = arith.mulf %209, %208 : vector<2x32xf32>
    %214 = arith.addf %212, %213 : vector<2x32xf32>
    %215 = math.tanh %214 : vector<2x32xf32>
    %216 = arith.mulf %211, %215 : vector<2x32xf32>
    %217 = tpu.concatenate %200, %216 in 1 : vector<2x32xf32>, vector<2x32xf32> -> vector<2x64xf32>
    %cst_31 = arith.constant dense<0.000000e+00> : vector<2x256xf32>
    %218 = tpu.matmul %217, %14, %cst_31 {dimension_numbers = #tpu.dot_dimension_numbers<[1], [0], [0], [1], [0, 0, 1, 1], [], []>} : vector<2x64xf32>, vector<64x256xf32>, vector<2x256xf32> -> vector<2x256xf32>
    %219 = vector.extract_strided_slice %13 {offsets = [10, 0], sizes = [2, 128], strides = [1, 1]} : vector<16x256xf32> to vector<2x128xf32>
    %220 = vector.extract_strided_slice %218 {offsets = [0, 0], sizes = [2, 128], strides = [1, 1]} : vector<2x256xf32> to vector<2x128xf32>
    %221 = arith.addf %219, %220 : vector<2x128xf32>
    %222 = vector.extract_strided_slice %13 {offsets = [4, 128], sizes = [2, 128], strides = [1, 1]} : vector<16x256xf32> to vector<2x128xf32>
    %223 = vector.extract_strided_slice %218 {offsets = [0, 128], sizes = [2, 128], strides = [1, 1]} : vector<2x256xf32> to vector<2x128xf32>
    %224 = arith.addf %222, %223 : vector<2x128xf32>
    %225 = vector.extract_strided_slice %221 {offsets = [0, 0], sizes = [2, 96], strides = [1, 1]} : vector<2x128xf32> to vector<2x96xf32>
    %226 = arith.negf %225 : vector<2x96xf32>
    %227 = math.exp %226 : vector<2x96xf32>
    %cst_32 = arith.constant 1.000000e+00 : f32
    %228 = vector.broadcast %cst_32 : f32 to vector<2x96xf32>
    %229 = arith.addf %228, %227 : vector<2x96xf32>
    %230 = arith.divf %228, %229 : vector<2x96xf32>
    %231 = vector.extract_strided_slice %221 {offsets = [0, 96], sizes = [2, 32], strides = [1, 1]} : vector<2x128xf32> to vector<2x32xf32>
    %232 = math.tanh %231 : vector<2x32xf32>
    %233 = vector.extract_strided_slice %230 {offsets = [0, 0], sizes = [2, 32], strides = [1, 1]} : vector<2x96xf32> to vector<2x32xf32>
    %234 = vector.extract_strided_slice %230 {offsets = [0, 32], sizes = [2, 32], strides = [1, 1]} : vector<2x96xf32> to vector<2x32xf32>
    %235 = vector.extract_strided_slice %230 {offsets = [0, 64], sizes = [2, 32], strides = [1, 1]} : vector<2x96xf32> to vector<2x32xf32>
    %236 = arith.mulf %234, %198 : vector<2x32xf32>
    %237 = arith.mulf %233, %232 : vector<2x32xf32>
    %238 = arith.addf %236, %237 : vector<2x32xf32>
    %239 = math.tanh %238 : vector<2x32xf32>
    %240 = arith.mulf %235, %239 : vector<2x32xf32>
    %241 = vector.extract_strided_slice %224 {offsets = [0, 0], sizes = [2, 96], strides = [1, 1]} : vector<2x128xf32> to vector<2x96xf32>
    %242 = arith.negf %241 : vector<2x96xf32>
    %243 = math.exp %242 : vector<2x96xf32>
    %cst_33 = arith.constant 1.000000e+00 : f32
    %244 = vector.broadcast %cst_33 : f32 to vector<2x96xf32>
    %245 = arith.addf %244, %243 : vector<2x96xf32>
    %246 = arith.divf %244, %245 : vector<2x96xf32>
    %247 = vector.extract_strided_slice %224 {offsets = [0, 96], sizes = [2, 32], strides = [1, 1]} : vector<2x128xf32> to vector<2x32xf32>
    %248 = math.tanh %247 : vector<2x32xf32>
    %249 = vector.extract_strided_slice %246 {offsets = [0, 0], sizes = [2, 32], strides = [1, 1]} : vector<2x96xf32> to vector<2x32xf32>
    %250 = vector.extract_strided_slice %246 {offsets = [0, 32], sizes = [2, 32], strides = [1, 1]} : vector<2x96xf32> to vector<2x32xf32>
    %251 = vector.extract_strided_slice %246 {offsets = [0, 64], sizes = [2, 32], strides = [1, 1]} : vector<2x96xf32> to vector<2x32xf32>
    %252 = arith.mulf %250, %214 : vector<2x32xf32>
    %253 = arith.mulf %249, %248 : vector<2x32xf32>
    %254 = arith.addf %252, %253 : vector<2x32xf32>
    %255 = math.tanh %254 : vector<2x32xf32>
    %256 = arith.mulf %251, %255 : vector<2x32xf32>
    %257 = tpu.concatenate %240, %256 in 1 : vector<2x32xf32>, vector<2x32xf32> -> vector<2x64xf32>
    %cst_34 = arith.constant dense<0.000000e+00> : vector<2x256xf32>
    %258 = tpu.matmul %257, %14, %cst_34 {dimension_numbers = #tpu.dot_dimension_numbers<[1], [0], [0], [1], [0, 0, 1, 1], [], []>} : vector<2x64xf32>, vector<64x256xf32>, vector<2x256xf32> -> vector<2x256xf32>
    %259 = vector.extract_strided_slice %13 {offsets = [12, 0], sizes = [2, 128], strides = [1, 1]} : vector<16x256xf32> to vector<2x128xf32>
    %260 = vector.extract_strided_slice %258 {offsets = [0, 0], sizes = [2, 128], strides = [1, 1]} : vector<2x256xf32> to vector<2x128xf32>
    %261 = arith.addf %259, %260 : vector<2x128xf32>
    %262 = vector.extract_strided_slice %13 {offsets = [2, 128], sizes = [2, 128], strides = [1, 1]} : vector<16x256xf32> to vector<2x128xf32>
    %263 = vector.extract_strided_slice %258 {offsets = [0, 128], sizes = [2, 128], strides = [1, 1]} : vector<2x256xf32> to vector<2x128xf32>
    %264 = arith.addf %262, %263 : vector<2x128xf32>
    %265 = vector.extract_strided_slice %261 {offsets = [0, 0], sizes = [2, 96], strides = [1, 1]} : vector<2x128xf32> to vector<2x96xf32>
    %266 = arith.negf %265 : vector<2x96xf32>
    %267 = math.exp %266 : vector<2x96xf32>
    %cst_35 = arith.constant 1.000000e+00 : f32
    %268 = vector.broadcast %cst_35 : f32 to vector<2x96xf32>
    %269 = arith.addf %268, %267 : vector<2x96xf32>
    %270 = arith.divf %268, %269 : vector<2x96xf32>
    %271 = vector.extract_strided_slice %261 {offsets = [0, 96], sizes = [2, 32], strides = [1, 1]} : vector<2x128xf32> to vector<2x32xf32>
    %272 = math.tanh %271 : vector<2x32xf32>
    %273 = vector.extract_strided_slice %270 {offsets = [0, 0], sizes = [2, 32], strides = [1, 1]} : vector<2x96xf32> to vector<2x32xf32>
    %274 = vector.extract_strided_slice %270 {offsets = [0, 32], sizes = [2, 32], strides = [1, 1]} : vector<2x96xf32> to vector<2x32xf32>
    %275 = vector.extract_strided_slice %270 {offsets = [0, 64], sizes = [2, 32], strides = [1, 1]} : vector<2x96xf32> to vector<2x32xf32>
    %276 = arith.mulf %274, %238 : vector<2x32xf32>
    %277 = arith.mulf %273, %272 : vector<2x32xf32>
    %278 = arith.addf %276, %277 : vector<2x32xf32>
    %279 = math.tanh %278 : vector<2x32xf32>
    %280 = arith.mulf %275, %279 : vector<2x32xf32>
    %281 = vector.extract_strided_slice %264 {offsets = [0, 0], sizes = [2, 96], strides = [1, 1]} : vector<2x128xf32> to vector<2x96xf32>
    %282 = arith.negf %281 : vector<2x96xf32>
    %283 = math.exp %282 : vector<2x96xf32>
    %cst_36 = arith.constant 1.000000e+00 : f32
    %284 = vector.broadcast %cst_36 : f32 to vector<2x96xf32>
    %285 = arith.addf %284, %283 : vector<2x96xf32>
    %286 = arith.divf %284, %285 : vector<2x96xf32>
    %287 = vector.extract_strided_slice %264 {offsets = [0, 96], sizes = [2, 32], strides = [1, 1]} : vector<2x128xf32> to vector<2x32xf32>
    %288 = math.tanh %287 : vector<2x32xf32>
    %289 = vector.extract_strided_slice %286 {offsets = [0, 0], sizes = [2, 32], strides = [1, 1]} : vector<2x96xf32> to vector<2x32xf32>
    %290 = vector.extract_strided_slice %286 {offsets = [0, 32], sizes = [2, 32], strides = [1, 1]} : vector<2x96xf32> to vector<2x32xf32>
    %291 = vector.extract_strided_slice %286 {offsets = [0, 64], sizes = [2, 32], strides = [1, 1]} : vector<2x96xf32> to vector<2x32xf32>
    %292 = arith.mulf %290, %254 : vector<2x32xf32>
    %293 = arith.mulf %289, %288 : vector<2x32xf32>
    %294 = arith.addf %292, %293 : vector<2x32xf32>
    %295 = math.tanh %294 : vector<2x32xf32>
    %296 = arith.mulf %291, %295 : vector<2x32xf32>
    %297 = tpu.concatenate %280, %296 in 1 : vector<2x32xf32>, vector<2x32xf32> -> vector<2x64xf32>
    %cst_37 = arith.constant dense<0.000000e+00> : vector<2x256xf32>
    %298 = tpu.matmul %297, %14, %cst_37 {dimension_numbers = #tpu.dot_dimension_numbers<[1], [0], [0], [1], [0, 0, 1, 1], [], []>} : vector<2x64xf32>, vector<64x256xf32>, vector<2x256xf32> -> vector<2x256xf32>
    %299 = vector.extract_strided_slice %13 {offsets = [14, 0], sizes = [2, 128], strides = [1, 1]} : vector<16x256xf32> to vector<2x128xf32>
    %300 = vector.extract_strided_slice %298 {offsets = [0, 0], sizes = [2, 128], strides = [1, 1]} : vector<2x256xf32> to vector<2x128xf32>
    %301 = arith.addf %299, %300 : vector<2x128xf32>
    %302 = vector.extract_strided_slice %13 {offsets = [0, 128], sizes = [2, 128], strides = [1, 1]} : vector<16x256xf32> to vector<2x128xf32>
    %303 = vector.extract_strided_slice %298 {offsets = [0, 128], sizes = [2, 128], strides = [1, 1]} : vector<2x256xf32> to vector<2x128xf32>
    %304 = arith.addf %302, %303 : vector<2x128xf32>
    %305 = vector.extract_strided_slice %301 {offsets = [0, 0], sizes = [2, 96], strides = [1, 1]} : vector<2x128xf32> to vector<2x96xf32>
    %306 = arith.negf %305 : vector<2x96xf32>
    %307 = math.exp %306 : vector<2x96xf32>
    %cst_38 = arith.constant 1.000000e+00 : f32
    %308 = vector.broadcast %cst_38 : f32 to vector<2x96xf32>
    %309 = arith.addf %308, %307 : vector<2x96xf32>
    %310 = arith.divf %308, %309 : vector<2x96xf32>
    %311 = vector.extract_strided_slice %301 {offsets = [0, 96], sizes = [2, 32], strides = [1, 1]} : vector<2x128xf32> to vector<2x32xf32>
    %312 = math.tanh %311 : vector<2x32xf32>
    %313 = vector.extract_strided_slice %310 {offsets = [0, 0], sizes = [2, 32], strides = [1, 1]} : vector<2x96xf32> to vector<2x32xf32>
    %314 = vector.extract_strided_slice %310 {offsets = [0, 32], sizes = [2, 32], strides = [1, 1]} : vector<2x96xf32> to vector<2x32xf32>
    %315 = vector.extract_strided_slice %310 {offsets = [0, 64], sizes = [2, 32], strides = [1, 1]} : vector<2x96xf32> to vector<2x32xf32>
    %316 = arith.mulf %314, %278 : vector<2x32xf32>
    %317 = arith.mulf %313, %312 : vector<2x32xf32>
    %318 = arith.addf %316, %317 : vector<2x32xf32>
    %319 = math.tanh %318 : vector<2x32xf32>
    %320 = arith.mulf %315, %319 : vector<2x32xf32>
    %321 = vector.extract_strided_slice %304 {offsets = [0, 0], sizes = [2, 96], strides = [1, 1]} : vector<2x128xf32> to vector<2x96xf32>
    %322 = arith.negf %321 : vector<2x96xf32>
    %323 = math.exp %322 : vector<2x96xf32>
    %cst_39 = arith.constant 1.000000e+00 : f32
    %324 = vector.broadcast %cst_39 : f32 to vector<2x96xf32>
    %325 = arith.addf %324, %323 : vector<2x96xf32>
    %326 = arith.divf %324, %325 : vector<2x96xf32>
    %327 = vector.extract_strided_slice %304 {offsets = [0, 96], sizes = [2, 32], strides = [1, 1]} : vector<2x128xf32> to vector<2x32xf32>
    %328 = math.tanh %327 : vector<2x32xf32>
    %329 = vector.extract_strided_slice %326 {offsets = [0, 0], sizes = [2, 32], strides = [1, 1]} : vector<2x96xf32> to vector<2x32xf32>
    %330 = vector.extract_strided_slice %326 {offsets = [0, 32], sizes = [2, 32], strides = [1, 1]} : vector<2x96xf32> to vector<2x32xf32>
    %331 = vector.extract_strided_slice %326 {offsets = [0, 64], sizes = [2, 32], strides = [1, 1]} : vector<2x96xf32> to vector<2x32xf32>
    %332 = arith.mulf %330, %294 : vector<2x32xf32>
    %333 = arith.mulf %329, %328 : vector<2x32xf32>
    %334 = arith.addf %332, %333 : vector<2x32xf32>
    %335 = math.tanh %334 : vector<2x32xf32>
    %336 = arith.mulf %331, %335 : vector<2x32xf32>
    %337 = tpu.concatenate %40, %80, %120, %160, %200, %240, %280, %320 in 0 : vector<2x32xf32>, vector<2x32xf32>, vector<2x32xf32>, vector<2x32xf32>, vector<2x32xf32>, vector<2x32xf32>, vector<2x32xf32>, vector<2x32xf32> -> vector<16x32xf32>
    %338 = tpu.concatenate %336, %296, %256, %216, %176, %136, %96, %56 in 0 : vector<2x32xf32>, vector<2x32xf32>, vector<2x32xf32>, vector<2x32xf32>, vector<2x32xf32>, vector<2x32xf32>, vector<2x32xf32>, vector<2x32xf32> -> vector<16x32xf32>
    %339 = tpu.concatenate %337, %338 in 1 : vector<16x32xf32>, vector<16x32xf32> -> vector<16x64xf32>
    %c0_40 = arith.constant 0 : index
    %c0_41 = arith.constant 0 : index
    %340 = vector.load %arg7[%c0_40, %c0_41] : memref<64x256xf32, #tpu.memory_space<vmem>>, vector<64x256xf32>
    %cst_42 = arith.constant dense<0.000000e+00> : vector<16x256xf32>
    %341 = tpu.matmul %339, %340, %cst_42 {dimension_numbers = #tpu.dot_dimension_numbers<[1], [0], [0], [1], [0, 0, 1, 1], [], []>} : vector<16x64xf32>, vector<64x256xf32>, vector<16x256xf32> -> vector<16x256xf32>
    %c0_43 = arith.constant 0 : index
    %c0_44 = arith.constant 0 : index
    %342 = vector.load %arg8[%c0_43, %c0_44] : memref<1x256xf32, #tpu.memory_space<vmem>>, vector<1x256xf32>
    %343 = vector.broadcast %342 : vector<1x256xf32> to vector<16x256xf32>
    %344 = arith.addf %341, %343 : vector<16x256xf32>
    %c0_45 = arith.constant 0 : index
    %c0_46 = arith.constant 0 : index
    %345 = vector.load %arg9[%c0_45, %c0_46] : memref<64x256xf32, #tpu.memory_space<vmem>>, vector<64x256xf32>
    %cst_47 = arith.constant 0.000000e+00 : f32
    %346 = vector.broadcast %cst_47 : f32 to vector<2x64xf32>
    %cst_48 = arith.constant 0.000000e+00 : f32
    %347 = vector.broadcast %cst_48 : f32 to vector<2x32xf32>
    %cst_49 = arith.constant 0.000000e+00 : f32
    %348 = vector.broadcast %cst_49 : f32 to vector<2x32xf32>
    %cst_50 = arith.constant dense<0.000000e+00> : vector<2x256xf32>
    %349 = tpu.matmul %346, %345, %cst_50 {dimension_numbers = #tpu.dot_dimension_numbers<[1], [0], [0], [1], [0, 0, 1, 1], [], []>} : vector<2x64xf32>, vector<64x256xf32>, vector<2x256xf32> -> vector<2x256xf32>
    %350 = vector.extract_strided_slice %344 {offsets = [0, 0], sizes = [2, 128], strides = [1, 1]} : vector<16x256xf32> to vector<2x128xf32>
    %351 = vector.extract_strided_slice %349 {offsets = [0, 0], sizes = [2, 128], strides = [1, 1]} : vector<2x256xf32> to vector<2x128xf32>
    %352 = arith.addf %350, %351 : vector<2x128xf32>
    %353 = vector.extract_strided_slice %344 {offsets = [14, 128], sizes = [2, 128], strides = [1, 1]} : vector<16x256xf32> to vector<2x128xf32>
    %354 = vector.extract_strided_slice %349 {offsets = [0, 128], sizes = [2, 128], strides = [1, 1]} : vector<2x256xf32> to vector<2x128xf32>
    %355 = arith.addf %353, %354 : vector<2x128xf32>
    %356 = vector.extract_strided_slice %352 {offsets = [0, 0], sizes = [2, 96], strides = [1, 1]} : vector<2x128xf32> to vector<2x96xf32>
    %357 = arith.negf %356 : vector<2x96xf32>
    %358 = math.exp %357 : vector<2x96xf32>
    %cst_51 = arith.constant 1.000000e+00 : f32
    %359 = vector.broadcast %cst_51 : f32 to vector<2x96xf32>
    %360 = arith.addf %359, %358 : vector<2x96xf32>
    %361 = arith.divf %359, %360 : vector<2x96xf32>
    %362 = vector.extract_strided_slice %352 {offsets = [0, 96], sizes = [2, 32], strides = [1, 1]} : vector<2x128xf32> to vector<2x32xf32>
    %363 = math.tanh %362 : vector<2x32xf32>
    %364 = vector.extract_strided_slice %361 {offsets = [0, 0], sizes = [2, 32], strides = [1, 1]} : vector<2x96xf32> to vector<2x32xf32>
    %365 = vector.extract_strided_slice %361 {offsets = [0, 32], sizes = [2, 32], strides = [1, 1]} : vector<2x96xf32> to vector<2x32xf32>
    %366 = vector.extract_strided_slice %361 {offsets = [0, 64], sizes = [2, 32], strides = [1, 1]} : vector<2x96xf32> to vector<2x32xf32>
    %367 = arith.mulf %365, %347 : vector<2x32xf32>
    %368 = arith.mulf %364, %363 : vector<2x32xf32>
    %369 = arith.addf %367, %368 : vector<2x32xf32>
    %370 = math.tanh %369 : vector<2x32xf32>
    %371 = arith.mulf %366, %370 : vector<2x32xf32>
    %372 = vector.extract_strided_slice %355 {offsets = [0, 0], sizes = [2, 96], strides = [1, 1]} : vector<2x128xf32> to vector<2x96xf32>
    %373 = arith.negf %372 : vector<2x96xf32>
    %374 = math.exp %373 : vector<2x96xf32>
    %cst_52 = arith.constant 1.000000e+00 : f32
    %375 = vector.broadcast %cst_52 : f32 to vector<2x96xf32>
    %376 = arith.addf %375, %374 : vector<2x96xf32>
    %377 = arith.divf %375, %376 : vector<2x96xf32>
    %378 = vector.extract_strided_slice %355 {offsets = [0, 96], sizes = [2, 32], strides = [1, 1]} : vector<2x128xf32> to vector<2x32xf32>
    %379 = math.tanh %378 : vector<2x32xf32>
    %380 = vector.extract_strided_slice %377 {offsets = [0, 0], sizes = [2, 32], strides = [1, 1]} : vector<2x96xf32> to vector<2x32xf32>
    %381 = vector.extract_strided_slice %377 {offsets = [0, 32], sizes = [2, 32], strides = [1, 1]} : vector<2x96xf32> to vector<2x32xf32>
    %382 = vector.extract_strided_slice %377 {offsets = [0, 64], sizes = [2, 32], strides = [1, 1]} : vector<2x96xf32> to vector<2x32xf32>
    %383 = arith.mulf %381, %348 : vector<2x32xf32>
    %384 = arith.mulf %380, %379 : vector<2x32xf32>
    %385 = arith.addf %383, %384 : vector<2x32xf32>
    %386 = math.tanh %385 : vector<2x32xf32>
    %387 = arith.mulf %382, %386 : vector<2x32xf32>
    %388 = tpu.concatenate %371, %387 in 1 : vector<2x32xf32>, vector<2x32xf32> -> vector<2x64xf32>
    %cst_53 = arith.constant dense<0.000000e+00> : vector<2x256xf32>
    %389 = tpu.matmul %388, %345, %cst_53 {dimension_numbers = #tpu.dot_dimension_numbers<[1], [0], [0], [1], [0, 0, 1, 1], [], []>} : vector<2x64xf32>, vector<64x256xf32>, vector<2x256xf32> -> vector<2x256xf32>
    %390 = vector.extract_strided_slice %344 {offsets = [2, 0], sizes = [2, 128], strides = [1, 1]} : vector<16x256xf32> to vector<2x128xf32>
    %391 = vector.extract_strided_slice %389 {offsets = [0, 0], sizes = [2, 128], strides = [1, 1]} : vector<2x256xf32> to vector<2x128xf32>
    %392 = arith.addf %390, %391 : vector<2x128xf32>
    %393 = vector.extract_strided_slice %344 {offsets = [12, 128], sizes = [2, 128], strides = [1, 1]} : vector<16x256xf32> to vector<2x128xf32>
    %394 = vector.extract_strided_slice %389 {offsets = [0, 128], sizes = [2, 128], strides = [1, 1]} : vector<2x256xf32> to vector<2x128xf32>
    %395 = arith.addf %393, %394 : vector<2x128xf32>
    %396 = vector.extract_strided_slice %392 {offsets = [0, 0], sizes = [2, 96], strides = [1, 1]} : vector<2x128xf32> to vector<2x96xf32>
    %397 = arith.negf %396 : vector<2x96xf32>
    %398 = math.exp %397 : vector<2x96xf32>
    %cst_54 = arith.constant 1.000000e+00 : f32
    %399 = vector.broadcast %cst_54 : f32 to vector<2x96xf32>
    %400 = arith.addf %399, %398 : vector<2x96xf32>
    %401 = arith.divf %399, %400 : vector<2x96xf32>
    %402 = vector.extract_strided_slice %392 {offsets = [0, 96], sizes = [2, 32], strides = [1, 1]} : vector<2x128xf32> to vector<2x32xf32>
    %403 = math.tanh %402 : vector<2x32xf32>
    %404 = vector.extract_strided_slice %401 {offsets = [0, 0], sizes = [2, 32], strides = [1, 1]} : vector<2x96xf32> to vector<2x32xf32>
    %405 = vector.extract_strided_slice %401 {offsets = [0, 32], sizes = [2, 32], strides = [1, 1]} : vector<2x96xf32> to vector<2x32xf32>
    %406 = vector.extract_strided_slice %401 {offsets = [0, 64], sizes = [2, 32], strides = [1, 1]} : vector<2x96xf32> to vector<2x32xf32>
    %407 = arith.mulf %405, %369 : vector<2x32xf32>
    %408 = arith.mulf %404, %403 : vector<2x32xf32>
    %409 = arith.addf %407, %408 : vector<2x32xf32>
    %410 = math.tanh %409 : vector<2x32xf32>
    %411 = arith.mulf %406, %410 : vector<2x32xf32>
    %412 = vector.extract_strided_slice %395 {offsets = [0, 0], sizes = [2, 96], strides = [1, 1]} : vector<2x128xf32> to vector<2x96xf32>
    %413 = arith.negf %412 : vector<2x96xf32>
    %414 = math.exp %413 : vector<2x96xf32>
    %cst_55 = arith.constant 1.000000e+00 : f32
    %415 = vector.broadcast %cst_55 : f32 to vector<2x96xf32>
    %416 = arith.addf %415, %414 : vector<2x96xf32>
    %417 = arith.divf %415, %416 : vector<2x96xf32>
    %418 = vector.extract_strided_slice %395 {offsets = [0, 96], sizes = [2, 32], strides = [1, 1]} : vector<2x128xf32> to vector<2x32xf32>
    %419 = math.tanh %418 : vector<2x32xf32>
    %420 = vector.extract_strided_slice %417 {offsets = [0, 0], sizes = [2, 32], strides = [1, 1]} : vector<2x96xf32> to vector<2x32xf32>
    %421 = vector.extract_strided_slice %417 {offsets = [0, 32], sizes = [2, 32], strides = [1, 1]} : vector<2x96xf32> to vector<2x32xf32>
    %422 = vector.extract_strided_slice %417 {offsets = [0, 64], sizes = [2, 32], strides = [1, 1]} : vector<2x96xf32> to vector<2x32xf32>
    %423 = arith.mulf %421, %385 : vector<2x32xf32>
    %424 = arith.mulf %420, %419 : vector<2x32xf32>
    %425 = arith.addf %423, %424 : vector<2x32xf32>
    %426 = math.tanh %425 : vector<2x32xf32>
    %427 = arith.mulf %422, %426 : vector<2x32xf32>
    %428 = tpu.concatenate %411, %427 in 1 : vector<2x32xf32>, vector<2x32xf32> -> vector<2x64xf32>
    %cst_56 = arith.constant dense<0.000000e+00> : vector<2x256xf32>
    %429 = tpu.matmul %428, %345, %cst_56 {dimension_numbers = #tpu.dot_dimension_numbers<[1], [0], [0], [1], [0, 0, 1, 1], [], []>} : vector<2x64xf32>, vector<64x256xf32>, vector<2x256xf32> -> vector<2x256xf32>
    %430 = vector.extract_strided_slice %344 {offsets = [4, 0], sizes = [2, 128], strides = [1, 1]} : vector<16x256xf32> to vector<2x128xf32>
    %431 = vector.extract_strided_slice %429 {offsets = [0, 0], sizes = [2, 128], strides = [1, 1]} : vector<2x256xf32> to vector<2x128xf32>
    %432 = arith.addf %430, %431 : vector<2x128xf32>
    %433 = vector.extract_strided_slice %344 {offsets = [10, 128], sizes = [2, 128], strides = [1, 1]} : vector<16x256xf32> to vector<2x128xf32>
    %434 = vector.extract_strided_slice %429 {offsets = [0, 128], sizes = [2, 128], strides = [1, 1]} : vector<2x256xf32> to vector<2x128xf32>
    %435 = arith.addf %433, %434 : vector<2x128xf32>
    %436 = vector.extract_strided_slice %432 {offsets = [0, 0], sizes = [2, 96], strides = [1, 1]} : vector<2x128xf32> to vector<2x96xf32>
    %437 = arith.negf %436 : vector<2x96xf32>
    %438 = math.exp %437 : vector<2x96xf32>
    %cst_57 = arith.constant 1.000000e+00 : f32
    %439 = vector.broadcast %cst_57 : f32 to vector<2x96xf32>
    %440 = arith.addf %439, %438 : vector<2x96xf32>
    %441 = arith.divf %439, %440 : vector<2x96xf32>
    %442 = vector.extract_strided_slice %432 {offsets = [0, 96], sizes = [2, 32], strides = [1, 1]} : vector<2x128xf32> to vector<2x32xf32>
    %443 = math.tanh %442 : vector<2x32xf32>
    %444 = vector.extract_strided_slice %441 {offsets = [0, 0], sizes = [2, 32], strides = [1, 1]} : vector<2x96xf32> to vector<2x32xf32>
    %445 = vector.extract_strided_slice %441 {offsets = [0, 32], sizes = [2, 32], strides = [1, 1]} : vector<2x96xf32> to vector<2x32xf32>
    %446 = vector.extract_strided_slice %441 {offsets = [0, 64], sizes = [2, 32], strides = [1, 1]} : vector<2x96xf32> to vector<2x32xf32>
    %447 = arith.mulf %445, %409 : vector<2x32xf32>
    %448 = arith.mulf %444, %443 : vector<2x32xf32>
    %449 = arith.addf %447, %448 : vector<2x32xf32>
    %450 = math.tanh %449 : vector<2x32xf32>
    %451 = arith.mulf %446, %450 : vector<2x32xf32>
    %452 = vector.extract_strided_slice %435 {offsets = [0, 0], sizes = [2, 96], strides = [1, 1]} : vector<2x128xf32> to vector<2x96xf32>
    %453 = arith.negf %452 : vector<2x96xf32>
    %454 = math.exp %453 : vector<2x96xf32>
    %cst_58 = arith.constant 1.000000e+00 : f32
    %455 = vector.broadcast %cst_58 : f32 to vector<2x96xf32>
    %456 = arith.addf %455, %454 : vector<2x96xf32>
    %457 = arith.divf %455, %456 : vector<2x96xf32>
    %458 = vector.extract_strided_slice %435 {offsets = [0, 96], sizes = [2, 32], strides = [1, 1]} : vector<2x128xf32> to vector<2x32xf32>
    %459 = math.tanh %458 : vector<2x32xf32>
    %460 = vector.extract_strided_slice %457 {offsets = [0, 0], sizes = [2, 32], strides = [1, 1]} : vector<2x96xf32> to vector<2x32xf32>
    %461 = vector.extract_strided_slice %457 {offsets = [0, 32], sizes = [2, 32], strides = [1, 1]} : vector<2x96xf32> to vector<2x32xf32>
    %462 = vector.extract_strided_slice %457 {offsets = [0, 64], sizes = [2, 32], strides = [1, 1]} : vector<2x96xf32> to vector<2x32xf32>
    %463 = arith.mulf %461, %425 : vector<2x32xf32>
    %464 = arith.mulf %460, %459 : vector<2x32xf32>
    %465 = arith.addf %463, %464 : vector<2x32xf32>
    %466 = math.tanh %465 : vector<2x32xf32>
    %467 = arith.mulf %462, %466 : vector<2x32xf32>
    %468 = tpu.concatenate %451, %467 in 1 : vector<2x32xf32>, vector<2x32xf32> -> vector<2x64xf32>
    %cst_59 = arith.constant dense<0.000000e+00> : vector<2x256xf32>
    %469 = tpu.matmul %468, %345, %cst_59 {dimension_numbers = #tpu.dot_dimension_numbers<[1], [0], [0], [1], [0, 0, 1, 1], [], []>} : vector<2x64xf32>, vector<64x256xf32>, vector<2x256xf32> -> vector<2x256xf32>
    %470 = vector.extract_strided_slice %344 {offsets = [6, 0], sizes = [2, 128], strides = [1, 1]} : vector<16x256xf32> to vector<2x128xf32>
    %471 = vector.extract_strided_slice %469 {offsets = [0, 0], sizes = [2, 128], strides = [1, 1]} : vector<2x256xf32> to vector<2x128xf32>
    %472 = arith.addf %470, %471 : vector<2x128xf32>
    %473 = vector.extract_strided_slice %344 {offsets = [8, 128], sizes = [2, 128], strides = [1, 1]} : vector<16x256xf32> to vector<2x128xf32>
    %474 = vector.extract_strided_slice %469 {offsets = [0, 128], sizes = [2, 128], strides = [1, 1]} : vector<2x256xf32> to vector<2x128xf32>
    %475 = arith.addf %473, %474 : vector<2x128xf32>
    %476 = vector.extract_strided_slice %472 {offsets = [0, 0], sizes = [2, 96], strides = [1, 1]} : vector<2x128xf32> to vector<2x96xf32>
    %477 = arith.negf %476 : vector<2x96xf32>
    %478 = math.exp %477 : vector<2x96xf32>
    %cst_60 = arith.constant 1.000000e+00 : f32
    %479 = vector.broadcast %cst_60 : f32 to vector<2x96xf32>
    %480 = arith.addf %479, %478 : vector<2x96xf32>
    %481 = arith.divf %479, %480 : vector<2x96xf32>
    %482 = vector.extract_strided_slice %472 {offsets = [0, 96], sizes = [2, 32], strides = [1, 1]} : vector<2x128xf32> to vector<2x32xf32>
    %483 = math.tanh %482 : vector<2x32xf32>
    %484 = vector.extract_strided_slice %481 {offsets = [0, 0], sizes = [2, 32], strides = [1, 1]} : vector<2x96xf32> to vector<2x32xf32>
    %485 = vector.extract_strided_slice %481 {offsets = [0, 32], sizes = [2, 32], strides = [1, 1]} : vector<2x96xf32> to vector<2x32xf32>
    %486 = vector.extract_strided_slice %481 {offsets = [0, 64], sizes = [2, 32], strides = [1, 1]} : vector<2x96xf32> to vector<2x32xf32>
    %487 = arith.mulf %485, %449 : vector<2x32xf32>
    %488 = arith.mulf %484, %483 : vector<2x32xf32>
    %489 = arith.addf %487, %488 : vector<2x32xf32>
    %490 = math.tanh %489 : vector<2x32xf32>
    %491 = arith.mulf %486, %490 : vector<2x32xf32>
    %492 = vector.extract_strided_slice %475 {offsets = [0, 0], sizes = [2, 96], strides = [1, 1]} : vector<2x128xf32> to vector<2x96xf32>
    %493 = arith.negf %492 : vector<2x96xf32>
    %494 = math.exp %493 : vector<2x96xf32>
    %cst_61 = arith.constant 1.000000e+00 : f32
    %495 = vector.broadcast %cst_61 : f32 to vector<2x96xf32>
    %496 = arith.addf %495, %494 : vector<2x96xf32>
    %497 = arith.divf %495, %496 : vector<2x96xf32>
    %498 = vector.extract_strided_slice %475 {offsets = [0, 96], sizes = [2, 32], strides = [1, 1]} : vector<2x128xf32> to vector<2x32xf32>
    %499 = math.tanh %498 : vector<2x32xf32>
    %500 = vector.extract_strided_slice %497 {offsets = [0, 0], sizes = [2, 32], strides = [1, 1]} : vector<2x96xf32> to vector<2x32xf32>
    %501 = vector.extract_strided_slice %497 {offsets = [0, 32], sizes = [2, 32], strides = [1, 1]} : vector<2x96xf32> to vector<2x32xf32>
    %502 = vector.extract_strided_slice %497 {offsets = [0, 64], sizes = [2, 32], strides = [1, 1]} : vector<2x96xf32> to vector<2x32xf32>
    %503 = arith.mulf %501, %465 : vector<2x32xf32>
    %504 = arith.mulf %500, %499 : vector<2x32xf32>
    %505 = arith.addf %503, %504 : vector<2x32xf32>
    %506 = math.tanh %505 : vector<2x32xf32>
    %507 = arith.mulf %502, %506 : vector<2x32xf32>
    %508 = tpu.concatenate %491, %507 in 1 : vector<2x32xf32>, vector<2x32xf32> -> vector<2x64xf32>
    %cst_62 = arith.constant dense<0.000000e+00> : vector<2x256xf32>
    %509 = tpu.matmul %508, %345, %cst_62 {dimension_numbers = #tpu.dot_dimension_numbers<[1], [0], [0], [1], [0, 0, 1, 1], [], []>} : vector<2x64xf32>, vector<64x256xf32>, vector<2x256xf32> -> vector<2x256xf32>
    %510 = vector.extract_strided_slice %344 {offsets = [8, 0], sizes = [2, 128], strides = [1, 1]} : vector<16x256xf32> to vector<2x128xf32>
    %511 = vector.extract_strided_slice %509 {offsets = [0, 0], sizes = [2, 128], strides = [1, 1]} : vector<2x256xf32> to vector<2x128xf32>
    %512 = arith.addf %510, %511 : vector<2x128xf32>
    %513 = vector.extract_strided_slice %344 {offsets = [6, 128], sizes = [2, 128], strides = [1, 1]} : vector<16x256xf32> to vector<2x128xf32>
    %514 = vector.extract_strided_slice %509 {offsets = [0, 128], sizes = [2, 128], strides = [1, 1]} : vector<2x256xf32> to vector<2x128xf32>
    %515 = arith.addf %513, %514 : vector<2x128xf32>
    %516 = vector.extract_strided_slice %512 {offsets = [0, 0], sizes = [2, 96], strides = [1, 1]} : vector<2x128xf32> to vector<2x96xf32>
    %517 = arith.negf %516 : vector<2x96xf32>
    %518 = math.exp %517 : vector<2x96xf32>
    %cst_63 = arith.constant 1.000000e+00 : f32
    %519 = vector.broadcast %cst_63 : f32 to vector<2x96xf32>
    %520 = arith.addf %519, %518 : vector<2x96xf32>
    %521 = arith.divf %519, %520 : vector<2x96xf32>
    %522 = vector.extract_strided_slice %512 {offsets = [0, 96], sizes = [2, 32], strides = [1, 1]} : vector<2x128xf32> to vector<2x32xf32>
    %523 = math.tanh %522 : vector<2x32xf32>
    %524 = vector.extract_strided_slice %521 {offsets = [0, 0], sizes = [2, 32], strides = [1, 1]} : vector<2x96xf32> to vector<2x32xf32>
    %525 = vector.extract_strided_slice %521 {offsets = [0, 32], sizes = [2, 32], strides = [1, 1]} : vector<2x96xf32> to vector<2x32xf32>
    %526 = vector.extract_strided_slice %521 {offsets = [0, 64], sizes = [2, 32], strides = [1, 1]} : vector<2x96xf32> to vector<2x32xf32>
    %527 = arith.mulf %525, %489 : vector<2x32xf32>
    %528 = arith.mulf %524, %523 : vector<2x32xf32>
    %529 = arith.addf %527, %528 : vector<2x32xf32>
    %530 = math.tanh %529 : vector<2x32xf32>
    %531 = arith.mulf %526, %530 : vector<2x32xf32>
    %532 = vector.extract_strided_slice %515 {offsets = [0, 0], sizes = [2, 96], strides = [1, 1]} : vector<2x128xf32> to vector<2x96xf32>
    %533 = arith.negf %532 : vector<2x96xf32>
    %534 = math.exp %533 : vector<2x96xf32>
    %cst_64 = arith.constant 1.000000e+00 : f32
    %535 = vector.broadcast %cst_64 : f32 to vector<2x96xf32>
    %536 = arith.addf %535, %534 : vector<2x96xf32>
    %537 = arith.divf %535, %536 : vector<2x96xf32>
    %538 = vector.extract_strided_slice %515 {offsets = [0, 96], sizes = [2, 32], strides = [1, 1]} : vector<2x128xf32> to vector<2x32xf32>
    %539 = math.tanh %538 : vector<2x32xf32>
    %540 = vector.extract_strided_slice %537 {offsets = [0, 0], sizes = [2, 32], strides = [1, 1]} : vector<2x96xf32> to vector<2x32xf32>
    %541 = vector.extract_strided_slice %537 {offsets = [0, 32], sizes = [2, 32], strides = [1, 1]} : vector<2x96xf32> to vector<2x32xf32>
    %542 = vector.extract_strided_slice %537 {offsets = [0, 64], sizes = [2, 32], strides = [1, 1]} : vector<2x96xf32> to vector<2x32xf32>
    %543 = arith.mulf %541, %505 : vector<2x32xf32>
    %544 = arith.mulf %540, %539 : vector<2x32xf32>
    %545 = arith.addf %543, %544 : vector<2x32xf32>
    %546 = math.tanh %545 : vector<2x32xf32>
    %547 = arith.mulf %542, %546 : vector<2x32xf32>
    %548 = tpu.concatenate %531, %547 in 1 : vector<2x32xf32>, vector<2x32xf32> -> vector<2x64xf32>
    %cst_65 = arith.constant dense<0.000000e+00> : vector<2x256xf32>
    %549 = tpu.matmul %548, %345, %cst_65 {dimension_numbers = #tpu.dot_dimension_numbers<[1], [0], [0], [1], [0, 0, 1, 1], [], []>} : vector<2x64xf32>, vector<64x256xf32>, vector<2x256xf32> -> vector<2x256xf32>
    %550 = vector.extract_strided_slice %344 {offsets = [10, 0], sizes = [2, 128], strides = [1, 1]} : vector<16x256xf32> to vector<2x128xf32>
    %551 = vector.extract_strided_slice %549 {offsets = [0, 0], sizes = [2, 128], strides = [1, 1]} : vector<2x256xf32> to vector<2x128xf32>
    %552 = arith.addf %550, %551 : vector<2x128xf32>
    %553 = vector.extract_strided_slice %344 {offsets = [4, 128], sizes = [2, 128], strides = [1, 1]} : vector<16x256xf32> to vector<2x128xf32>
    %554 = vector.extract_strided_slice %549 {offsets = [0, 128], sizes = [2, 128], strides = [1, 1]} : vector<2x256xf32> to vector<2x128xf32>
    %555 = arith.addf %553, %554 : vector<2x128xf32>
    %556 = vector.extract_strided_slice %552 {offsets = [0, 0], sizes = [2, 96], strides = [1, 1]} : vector<2x128xf32> to vector<2x96xf32>
    %557 = arith.negf %556 : vector<2x96xf32>
    %558 = math.exp %557 : vector<2x96xf32>
    %cst_66 = arith.constant 1.000000e+00 : f32
    %559 = vector.broadcast %cst_66 : f32 to vector<2x96xf32>
    %560 = arith.addf %559, %558 : vector<2x96xf32>
    %561 = arith.divf %559, %560 : vector<2x96xf32>
    %562 = vector.extract_strided_slice %552 {offsets = [0, 96], sizes = [2, 32], strides = [1, 1]} : vector<2x128xf32> to vector<2x32xf32>
    %563 = math.tanh %562 : vector<2x32xf32>
    %564 = vector.extract_strided_slice %561 {offsets = [0, 0], sizes = [2, 32], strides = [1, 1]} : vector<2x96xf32> to vector<2x32xf32>
    %565 = vector.extract_strided_slice %561 {offsets = [0, 32], sizes = [2, 32], strides = [1, 1]} : vector<2x96xf32> to vector<2x32xf32>
    %566 = vector.extract_strided_slice %561 {offsets = [0, 64], sizes = [2, 32], strides = [1, 1]} : vector<2x96xf32> to vector<2x32xf32>
    %567 = arith.mulf %565, %529 : vector<2x32xf32>
    %568 = arith.mulf %564, %563 : vector<2x32xf32>
    %569 = arith.addf %567, %568 : vector<2x32xf32>
    %570 = math.tanh %569 : vector<2x32xf32>
    %571 = arith.mulf %566, %570 : vector<2x32xf32>
    %572 = vector.extract_strided_slice %555 {offsets = [0, 0], sizes = [2, 96], strides = [1, 1]} : vector<2x128xf32> to vector<2x96xf32>
    %573 = arith.negf %572 : vector<2x96xf32>
    %574 = math.exp %573 : vector<2x96xf32>
    %cst_67 = arith.constant 1.000000e+00 : f32
    %575 = vector.broadcast %cst_67 : f32 to vector<2x96xf32>
    %576 = arith.addf %575, %574 : vector<2x96xf32>
    %577 = arith.divf %575, %576 : vector<2x96xf32>
    %578 = vector.extract_strided_slice %555 {offsets = [0, 96], sizes = [2, 32], strides = [1, 1]} : vector<2x128xf32> to vector<2x32xf32>
    %579 = math.tanh %578 : vector<2x32xf32>
    %580 = vector.extract_strided_slice %577 {offsets = [0, 0], sizes = [2, 32], strides = [1, 1]} : vector<2x96xf32> to vector<2x32xf32>
    %581 = vector.extract_strided_slice %577 {offsets = [0, 32], sizes = [2, 32], strides = [1, 1]} : vector<2x96xf32> to vector<2x32xf32>
    %582 = vector.extract_strided_slice %577 {offsets = [0, 64], sizes = [2, 32], strides = [1, 1]} : vector<2x96xf32> to vector<2x32xf32>
    %583 = arith.mulf %581, %545 : vector<2x32xf32>
    %584 = arith.mulf %580, %579 : vector<2x32xf32>
    %585 = arith.addf %583, %584 : vector<2x32xf32>
    %586 = math.tanh %585 : vector<2x32xf32>
    %587 = arith.mulf %582, %586 : vector<2x32xf32>
    %588 = tpu.concatenate %571, %587 in 1 : vector<2x32xf32>, vector<2x32xf32> -> vector<2x64xf32>
    %cst_68 = arith.constant dense<0.000000e+00> : vector<2x256xf32>
    %589 = tpu.matmul %588, %345, %cst_68 {dimension_numbers = #tpu.dot_dimension_numbers<[1], [0], [0], [1], [0, 0, 1, 1], [], []>} : vector<2x64xf32>, vector<64x256xf32>, vector<2x256xf32> -> vector<2x256xf32>
    %590 = vector.extract_strided_slice %344 {offsets = [12, 0], sizes = [2, 128], strides = [1, 1]} : vector<16x256xf32> to vector<2x128xf32>
    %591 = vector.extract_strided_slice %589 {offsets = [0, 0], sizes = [2, 128], strides = [1, 1]} : vector<2x256xf32> to vector<2x128xf32>
    %592 = arith.addf %590, %591 : vector<2x128xf32>
    %593 = vector.extract_strided_slice %344 {offsets = [2, 128], sizes = [2, 128], strides = [1, 1]} : vector<16x256xf32> to vector<2x128xf32>
    %594 = vector.extract_strided_slice %589 {offsets = [0, 128], sizes = [2, 128], strides = [1, 1]} : vector<2x256xf32> to vector<2x128xf32>
    %595 = arith.addf %593, %594 : vector<2x128xf32>
    %596 = vector.extract_strided_slice %592 {offsets = [0, 0], sizes = [2, 96], strides = [1, 1]} : vector<2x128xf32> to vector<2x96xf32>
    %597 = arith.negf %596 : vector<2x96xf32>
    %598 = math.exp %597 : vector<2x96xf32>
    %cst_69 = arith.constant 1.000000e+00 : f32
    %599 = vector.broadcast %cst_69 : f32 to vector<2x96xf32>
    %600 = arith.addf %599, %598 : vector<2x96xf32>
    %601 = arith.divf %599, %600 : vector<2x96xf32>
    %602 = vector.extract_strided_slice %592 {offsets = [0, 96], sizes = [2, 32], strides = [1, 1]} : vector<2x128xf32> to vector<2x32xf32>
    %603 = math.tanh %602 : vector<2x32xf32>
    %604 = vector.extract_strided_slice %601 {offsets = [0, 0], sizes = [2, 32], strides = [1, 1]} : vector<2x96xf32> to vector<2x32xf32>
    %605 = vector.extract_strided_slice %601 {offsets = [0, 32], sizes = [2, 32], strides = [1, 1]} : vector<2x96xf32> to vector<2x32xf32>
    %606 = vector.extract_strided_slice %601 {offsets = [0, 64], sizes = [2, 32], strides = [1, 1]} : vector<2x96xf32> to vector<2x32xf32>
    %607 = arith.mulf %605, %569 : vector<2x32xf32>
    %608 = arith.mulf %604, %603 : vector<2x32xf32>
    %609 = arith.addf %607, %608 : vector<2x32xf32>
    %610 = math.tanh %609 : vector<2x32xf32>
    %611 = arith.mulf %606, %610 : vector<2x32xf32>
    %612 = vector.extract_strided_slice %595 {offsets = [0, 0], sizes = [2, 96], strides = [1, 1]} : vector<2x128xf32> to vector<2x96xf32>
    %613 = arith.negf %612 : vector<2x96xf32>
    %614 = math.exp %613 : vector<2x96xf32>
    %cst_70 = arith.constant 1.000000e+00 : f32
    %615 = vector.broadcast %cst_70 : f32 to vector<2x96xf32>
    %616 = arith.addf %615, %614 : vector<2x96xf32>
    %617 = arith.divf %615, %616 : vector<2x96xf32>
    %618 = vector.extract_strided_slice %595 {offsets = [0, 96], sizes = [2, 32], strides = [1, 1]} : vector<2x128xf32> to vector<2x32xf32>
    %619 = math.tanh %618 : vector<2x32xf32>
    %620 = vector.extract_strided_slice %617 {offsets = [0, 0], sizes = [2, 32], strides = [1, 1]} : vector<2x96xf32> to vector<2x32xf32>
    %621 = vector.extract_strided_slice %617 {offsets = [0, 32], sizes = [2, 32], strides = [1, 1]} : vector<2x96xf32> to vector<2x32xf32>
    %622 = vector.extract_strided_slice %617 {offsets = [0, 64], sizes = [2, 32], strides = [1, 1]} : vector<2x96xf32> to vector<2x32xf32>
    %623 = arith.mulf %621, %585 : vector<2x32xf32>
    %624 = arith.mulf %620, %619 : vector<2x32xf32>
    %625 = arith.addf %623, %624 : vector<2x32xf32>
    %626 = math.tanh %625 : vector<2x32xf32>
    %627 = arith.mulf %622, %626 : vector<2x32xf32>
    %628 = tpu.concatenate %611, %627 in 1 : vector<2x32xf32>, vector<2x32xf32> -> vector<2x64xf32>
    %cst_71 = arith.constant dense<0.000000e+00> : vector<2x256xf32>
    %629 = tpu.matmul %628, %345, %cst_71 {dimension_numbers = #tpu.dot_dimension_numbers<[1], [0], [0], [1], [0, 0, 1, 1], [], []>} : vector<2x64xf32>, vector<64x256xf32>, vector<2x256xf32> -> vector<2x256xf32>
    %630 = vector.extract_strided_slice %344 {offsets = [14, 0], sizes = [2, 128], strides = [1, 1]} : vector<16x256xf32> to vector<2x128xf32>
    %631 = vector.extract_strided_slice %629 {offsets = [0, 0], sizes = [2, 128], strides = [1, 1]} : vector<2x256xf32> to vector<2x128xf32>
    %632 = arith.addf %630, %631 : vector<2x128xf32>
    %633 = vector.extract_strided_slice %344 {offsets = [0, 128], sizes = [2, 128], strides = [1, 1]} : vector<16x256xf32> to vector<2x128xf32>
    %634 = vector.extract_strided_slice %629 {offsets = [0, 128], sizes = [2, 128], strides = [1, 1]} : vector<2x256xf32> to vector<2x128xf32>
    %635 = arith.addf %633, %634 : vector<2x128xf32>
    %636 = vector.extract_strided_slice %632 {offsets = [0, 0], sizes = [2, 96], strides = [1, 1]} : vector<2x128xf32> to vector<2x96xf32>
    %637 = arith.negf %636 : vector<2x96xf32>
    %638 = math.exp %637 : vector<2x96xf32>
    %cst_72 = arith.constant 1.000000e+00 : f32
    %639 = vector.broadcast %cst_72 : f32 to vector<2x96xf32>
    %640 = arith.addf %639, %638 : vector<2x96xf32>
    %641 = arith.divf %639, %640 : vector<2x96xf32>
    %642 = vector.extract_strided_slice %632 {offsets = [0, 96], sizes = [2, 32], strides = [1, 1]} : vector<2x128xf32> to vector<2x32xf32>
    %643 = math.tanh %642 : vector<2x32xf32>
    %644 = vector.extract_strided_slice %641 {offsets = [0, 0], sizes = [2, 32], strides = [1, 1]} : vector<2x96xf32> to vector<2x32xf32>
    %645 = vector.extract_strided_slice %641 {offsets = [0, 32], sizes = [2, 32], strides = [1, 1]} : vector<2x96xf32> to vector<2x32xf32>
    %646 = vector.extract_strided_slice %641 {offsets = [0, 64], sizes = [2, 32], strides = [1, 1]} : vector<2x96xf32> to vector<2x32xf32>
    %647 = arith.mulf %645, %609 : vector<2x32xf32>
    %648 = arith.mulf %644, %643 : vector<2x32xf32>
    %649 = arith.addf %647, %648 : vector<2x32xf32>
    %650 = math.tanh %649 : vector<2x32xf32>
    %651 = arith.mulf %646, %650 : vector<2x32xf32>
    %652 = vector.extract_strided_slice %635 {offsets = [0, 0], sizes = [2, 96], strides = [1, 1]} : vector<2x128xf32> to vector<2x96xf32>
    %653 = arith.negf %652 : vector<2x96xf32>
    %654 = math.exp %653 : vector<2x96xf32>
    %cst_73 = arith.constant 1.000000e+00 : f32
    %655 = vector.broadcast %cst_73 : f32 to vector<2x96xf32>
    %656 = arith.addf %655, %654 : vector<2x96xf32>
    %657 = arith.divf %655, %656 : vector<2x96xf32>
    %658 = vector.extract_strided_slice %635 {offsets = [0, 96], sizes = [2, 32], strides = [1, 1]} : vector<2x128xf32> to vector<2x32xf32>
    %659 = math.tanh %658 : vector<2x32xf32>
    %660 = vector.extract_strided_slice %657 {offsets = [0, 0], sizes = [2, 32], strides = [1, 1]} : vector<2x96xf32> to vector<2x32xf32>
    %661 = vector.extract_strided_slice %657 {offsets = [0, 32], sizes = [2, 32], strides = [1, 1]} : vector<2x96xf32> to vector<2x32xf32>
    %662 = vector.extract_strided_slice %657 {offsets = [0, 64], sizes = [2, 32], strides = [1, 1]} : vector<2x96xf32> to vector<2x32xf32>
    %663 = arith.mulf %661, %625 : vector<2x32xf32>
    %664 = arith.mulf %660, %659 : vector<2x32xf32>
    %665 = arith.addf %663, %664 : vector<2x32xf32>
    %666 = math.tanh %665 : vector<2x32xf32>
    %667 = arith.mulf %662, %666 : vector<2x32xf32>
    %668 = tpu.concatenate %371, %411, %451, %491, %531, %571, %611, %651 in 0 : vector<2x32xf32>, vector<2x32xf32>, vector<2x32xf32>, vector<2x32xf32>, vector<2x32xf32>, vector<2x32xf32>, vector<2x32xf32>, vector<2x32xf32> -> vector<16x32xf32>
    %669 = tpu.concatenate %667, %627, %587, %547, %507, %467, %427, %387 in 0 : vector<2x32xf32>, vector<2x32xf32>, vector<2x32xf32>, vector<2x32xf32>, vector<2x32xf32>, vector<2x32xf32>, vector<2x32xf32>, vector<2x32xf32> -> vector<16x32xf32>
    %670 = tpu.concatenate %668, %669 in 1 : vector<16x32xf32>, vector<16x32xf32> -> vector<16x64xf32>
    %c0_74 = arith.constant 0 : index
    %c0_75 = arith.constant 0 : index
    %671 = vector.load %arg10[%c0_74, %c0_75] : memref<64x16xf32, #tpu.memory_space<vmem>>, vector<64x16xf32>
    %cst_76 = arith.constant dense<0.000000e+00> : vector<16x16xf32>
    %672 = tpu.matmul %670, %671, %cst_76 {dimension_numbers = #tpu.dot_dimension_numbers<[1], [0], [0], [1], [0, 0, 1, 1], [], []>} : vector<16x64xf32>, vector<64x16xf32>, vector<16x16xf32> -> vector<16x16xf32>
    %c0_77 = arith.constant 0 : index
    %c0_78 = arith.constant 0 : index
    %673 = vector.load %arg11[%c0_77, %c0_78] : memref<1x16xf32, #tpu.memory_space<vmem>>, vector<1x16xf32>
    %674 = vector.broadcast %673 : vector<1x16xf32> to vector<16x16xf32>
    %675 = arith.addf %672, %674 : vector<16x16xf32>
    %c0_79 = arith.constant 0 : index
    %c0_80 = arith.constant 0 : index
    %c0_81 = arith.constant 0 : index
    %676 = vector.load %arg12[%c0_79, %c0_80, %c0_81] : memref<1x16x16xf32, #tpu.memory_space<vmem>>, vector<1x16x16xf32>
    %677 = vector.shape_cast %676 : vector<1x16x16xf32> to vector<16x16xf32>
    %678 = vector.shape_cast %675 : vector<16x16xf32> to vector<1x16x16xf32>
    tpu.vector_store %arg12[%c0_79, %c0_80, %c0_81], %678 {strides = array<i32>} : memref<1x16x16xf32, #tpu.memory_space<vmem>>, vector<1x16x16xf32>,
    return
  }
  func.func @transform_0(%arg0: i32) -> (i32, i32, i32) {
    %c0_i32 = arith.constant 0 : i32
    %c0_i32_0 = arith.constant 0 : i32
    %c0_i32_1 = arith.constant 0 : i32
    return %arg0, %c0_i32, %c0_i32_0 : i32, i32, i32
  }
  func.func @transform_1(%arg0: i32) -> (i32, i32, i32) {
    %c0_i32 = arith.constant 0 : i32
    %c0_i32_0 = arith.constant 0 : i32
    %c0_i32_1 = arith.constant 0 : i32
    return %arg0, %c0_i32, %c0_i32_0 : i32, i32, i32
  }
  func.func @transform_2(%arg0: i32) -> (i32, i32) {
    %c0_i32 = arith.constant 0 : i32
    %c0_i32_0 = arith.constant 0 : i32
    %c0_i32_1 = arith.constant 0 : i32
    return %c0_i32, %c0_i32_0 : i32, i32
  }
  func.func @transform_3(%arg0: i32) -> (i32, i32) {
    %c0_i32 = arith.constant 0 : i32
    %c0_i32_0 = arith.constant 0 : i32
    %c0_i32_1 = arith.constant 0 : i32
    return %c0_i32, %c0_i32_0 : i32, i32
  }
  func.func @transform_4(%arg0: i32) -> (i32, i32) {
    %c0_i32 = arith.constant 0 : i32
    %c0_i32_0 = arith.constant 0 : i32
    %c0_i32_1 = arith.constant 0 : i32
    return %c0_i32, %c0_i32_0 : i32, i32
  }
  func.func @transform_5(%arg0: i32) -> (i32, i32) {
    %c0_i32 = arith.constant 0 : i32
    %c0_i32_0 = arith.constant 0 : i32
    %c0_i32_1 = arith.constant 0 : i32
    return %c0_i32, %c0_i32_0 : i32, i32
  }
  func.func @transform_6(%arg0: i32) -> (i32, i32) {
    %c0_i32 = arith.constant 0 : i32
    %c0_i32_0 = arith.constant 0 : i32
    %c0_i32_1 = arith.constant 0 : i32
    return %c0_i32, %c0_i32_0 : i32, i32
  }
  func.func @transform_7(%arg0: i32) -> (i32, i32) {
    %c0_i32 = arith.constant 0 : i32
    %c0_i32_0 = arith.constant 0 : i32
    %c0_i32_1 = arith.constant 0 : i32
    return %c0_i32, %c0_i32_0 : i32, i32
  }
  func.func @transform_8(%arg0: i32) -> (i32, i32) {
    %c0_i32 = arith.constant 0 : i32
    %c0_i32_0 = arith.constant 0 : i32
    %c0_i32_1 = arith.constant 0 : i32
    return %c0_i32, %c0_i32_0 : i32, i32
  }
  func.func @transform_9(%arg0: i32) -> (i32, i32) {
    %c0_i32 = arith.constant 0 : i32
    %c0_i32_0 = arith.constant 0 : i32
    %c0_i32_1 = arith.constant 0 : i32
    return %c0_i32, %c0_i32_0 : i32, i32
  }
  func.func @transform_10(%arg0: i32) -> (i32, i32) {
    %c0_i32 = arith.constant 0 : i32
    %c0_i32_0 = arith.constant 0 : i32
    %c0_i32_1 = arith.constant 0 : i32
    return %c0_i32, %c0_i32_0 : i32, i32
  }
  func.func @transform_11(%arg0: i32) -> (i32, i32, i32) {
    %c0_i32 = arith.constant 0 : i32
    %c0_i32_0 = arith.constant 0 : i32
    %c0_i32_1 = arith.constant 0 : i32
    return %arg0, %c0_i32, %c0_i32_0 : i32, i32, i32
  }
}

</mosaic_0001>

<llo_original>
// kernel: tpu_custom_call.1
$region0: #{tpu_custom_call.1}
  #allocation0 [shape = 'u32[]', space=smem, size = 0x4, offset = 0x4, fixed_abs, tag = 'smem constant byte address 0x4 - core index']
  #allocation1 [shape = 'u32[144,128]{1,0:T(1,128)}', space=vmem, size = 0x12000, scoped, tag = 'internal scratch']
  %s0 = inlined_call_operand.vmem [shape: f32[1,16,32], index: 0, kind: input, shape index: {}]
  %s1 = inlined_call_operand.vmem [shape: f32[1,16,1], index: 1, kind: input, shape index: {}]
  %s2 = inlined_call_operand.vmem [shape: f32[32,256], index: 2, kind: input, shape index: {}]
  %s3 = inlined_call_operand.vmem [shape: f32[1,256], index: 3, kind: input, shape index: {}]
  %s4 = inlined_call_operand.vmem [shape: f32[1,256], index: 4, kind: input, shape index: {}]
  %s5 = inlined_call_operand.hbm [shape: f32[64,256], index: 5, kind: input, shape index: {}]
  %s6 = inlined_call_operand.hbm [shape: f32[64,256], index: 6, kind: input, shape index: {}]
  %s7 = inlined_call_operand.vmem [shape: f32[1,256], index: 7, kind: input, shape index: {}]
  %s8 = inlined_call_operand.hbm [shape: f32[64,256], index: 8, kind: input, shape index: {}]
  %s9 = inlined_call_operand.vmem [shape: f32[64,16], index: 9, kind: input, shape index: {}]
  %s10 = inlined_call_operand.vmem [shape: f32[1,16], index: 10, kind: input, shape index: {}]
  %s11 = inlined_call_operand.hbm [shape: f32[1,16,16], index: 11, kind: output, shape index: {}]
  %s12 = sld [smem:[#allocation0]]
  $region66: #{tpu_custom_call.1} parent=0
    _
  %s14 = ssub.s32 1, %s12
  %s15 = scalar_select 0, %s14, %s12
  $region1: #{tpu_custom_call.1} parent=0
    #allocation2 [shape = 'u8[65536]{0}', space=vmem, size = 0x10000, scoped, tag = 'input window, operand 5, single buffered']
    #allocation3 [shape = 's32[1]{0}', space=sflag, size = 0x4, scoped, tag = 'scoped memory for tpu_custom_call.1']
    #allocation4 [shape = 's32[1]{0}', space=sflag, size = 0x4, scoped, tag = 'scoped memory for tpu_custom_call.1']
    #allocation5 [shape = 'u8[65536]{0}', space=vmem, size = 0x10000, scoped, tag = 'input window, operand 6, single buffered']
    #allocation6 [shape = 's32[1]{0}', space=sflag, size = 0x4, scoped, tag = 'scoped memory for tpu_custom_call.1']
    #allocation7 [shape = 'u8[65536]{0}', space=vmem, size = 0x10000, scoped, tag = 'input window, operand 8, single buffered']
    #allocation8 [shape = 'u8[8192]{0}', space=vmem, size = 0x2000, scoped, tag = 'output window, operand 0, single buffered']
    %16 = vsyncpa [#allocation3], 0
    %17 = vsyncpa [#allocation6], 0
    %18 = vsyncpa [#allocation4], 0
    // Predicated region
    $region2: #{tpu_custom_call.1} parent=1 // pred_check
      _
    $region3: #{tpu_custom_call.1} parent=1 // pred_check_branch
      %20 = sbr.rel (0) target = $region5
    $region4: #{tpu_custom_call.1} parent=1 // pred_region
      _
    $region5: #{tpu_custom_call.1} parent=1 // pred_fallthru
      _
    // Predicated region
    $region6: #{tpu_custom_call.1} parent=1 // pred_check
      _
    $region7: #{tpu_custom_call.1} parent=1 // pred_check_branch
      %22 = sbr.rel (0) target = $region9
    $region8: #{tpu_custom_call.1} parent=1 // pred_region
      _
    $region9: #{tpu_custom_call.1} parent=1 // pred_fallthru
      _
    // Predicated region
    $region10: #{tpu_custom_call.1} parent=1 // pred_check
      _
    $region11: #{tpu_custom_call.1} parent=1 // pred_check_branch
      %24 = sbr.rel (0) target = $region13
    $region12: #{tpu_custom_call.1} parent=1 // pred_region
      _
    $region13: #{tpu_custom_call.1} parent=1 // pred_fallthru
      _
    // Predicated region
    $region14: #{tpu_custom_call.1} parent=1 // pred_check
      _
    $region15: #{tpu_custom_call.1} parent=1 // pred_check_branch
      %26 = sbr.rel (0) target = $region17
    $region16: #{tpu_custom_call.1} parent=1 // pred_region
      _
    $region17: #{tpu_custom_call.1} parent=1 // pred_fallthru
      _
    // Predicated region
    $region18: #{tpu_custom_call.1} parent=1 // pred_check
      _
    $region19: #{tpu_custom_call.1} parent=1 // pred_check_branch
      %28 = sbr.rel (0) target = $region21
    $region20: #{tpu_custom_call.1} parent=1 // pred_region
      _
    $region21: #{tpu_custom_call.1} parent=1 // pred_fallthru
      _
    // Predicated region
    $region22: #{tpu_custom_call.1} parent=1 // pred_check
      _
    $region23: #{tpu_custom_call.1} parent=1 // pred_check_branch
      %30 = sbr.rel (0) target = $region25
    $region24: #{tpu_custom_call.1} parent=1 // pred_region
      %s32 = ssub.s32 2048, 2048
      %33 = vsyncadd [#allocation3], %s32
      %s34 = sshll.u32 [#allocation2], 4
      %s35 = int_to_ptr.vmem [resolvable:$true] %s34
      %40 = dma.hbm_to_vmem [thread:$0]  %s5, 2048, %s35, [#allocation3], 256, 256, 16
    $region25: #{tpu_custom_call.1} parent=1 // pred_fallthru
      _
    // Predicated region
    $region26: #{tpu_custom_call.1} parent=1 // pred_check
      _
    $region27: #{tpu_custom_call.1} parent=1 // pred_check_branch
      %42 = sbr.rel (0) target = $region29
    $region28: #{tpu_custom_call.1} parent=1 // pred_region
      %s44 = ssub.s32 2048, 2048
      %45 = vsyncadd [#allocation6], %s44
      %s46 = sshll.u32 [#allocation5], 4
      %s47 = int_to_ptr.vmem [resolvable:$true] %s46
      %52 = dma.hbm_to_vmem [thread:$0]  %s6, 2048, %s47, [#allocation6], 256, 256, 16
    $region29: #{tpu_custom_call.1} parent=1 // pred_fallthru
      _
    // Predicated region
    $region30: #{tpu_custom_call.1} parent=1 // pred_check
      _
    $region31: #{tpu_custom_call.1} parent=1 // pred_check_branch
      %54 = sbr.rel (0) target = $region33
    $region32: #{tpu_custom_call.1} parent=1 // pred_region
      _
    $region33: #{tpu_custom_call.1} parent=1 // pred_fallthru
      _
    // Predicated region
    $region34: #{tpu_custom_call.1} parent=1 // pred_check
      _
    $region35: #{tpu_custom_call.1} parent=1 // pred_check_branch
      %56 = sbr.rel (0) target = $region37
    $region36: #{tpu_custom_call.1} parent=1 // pred_region
      %s58 = ssub.s32 2048, 2048
      %59 = vsyncadd [#allocation6], %s58
      %s60 = sshll.u32 [#allocation7], 4
      %s61 = int_to_ptr.vmem [resolvable:$true] %s60
      %66 = dma.hbm_to_vmem [thread:$0]  %s8, 2048, %s61, [#allocation6], 256, 256, 16
    $region37: #{tpu_custom_call.1} parent=1 // pred_fallthru
      _
    // Predicated region
    $region38: #{tpu_custom_call.1} parent=1 // pred_check
      _
    $region39: #{tpu_custom_call.1} parent=1 // pred_check_branch
      %68 = sbr.rel (0) target = $region41
    $region40: #{tpu_custom_call.1} parent=1 // pred_region
      _
    $region41: #{tpu_custom_call.1} parent=1 // pred_fallthru
      _
    // Predicated region
    $region42: #{tpu_custom_call.1} parent=1 // pred_check
      _
    $region43: #{tpu_custom_call.1} parent=1 // pred_check_branch
      %70 = sbr.rel (0) target = $region45
    $region44: #{tpu_custom_call.1} parent=1 // pred_region
      _
    $region45: #{tpu_custom_call.1} parent=1 // pred_fallthru
      _
    // Predicated region
    $region46: #{tpu_custom_call.1} parent=1 // pred_check
      _
    $region47: #{tpu_custom_call.1} parent=1 // pred_check_branch
      %72 = sbr.rel (0) target = $region49
    $region48: #{tpu_custom_call.1} parent=1 // pred_region
      %73 = dma.done [#allocation3], 2048
    $region49: #{tpu_custom_call.1} parent=1 // pred_fallthru
      _
    // Predicated region
    $region50: #{tpu_custom_call.1} parent=1 // pred_check
      _
    $region51: #{tpu_custom_call.1} parent=1 // pred_check_branch
      %75 = sbr.rel (0) target = $region53
    $region52: #{tpu_custom_call.1} parent=1 // pred_region
      %76 = dma.done [#allocation6], 2048
    $region53: #{tpu_custom_call.1} parent=1 // pred_fallthru
      _
    // Predicated region
    $region54: #{tpu_custom_call.1} parent=1 // pred_check
      _
    $region55: #{tpu_custom_call.1} parent=1 // pred_check_branch
      %78 = sbr.rel (0) target = $region57
    $region56: #{tpu_custom_call.1} parent=1 // pred_region
      %79 = dma.done [#allocation6], 2048
    $region57: #{tpu_custom_call.1} parent=1 // pred_fallthru
      _
    %v80 = vld [vmem:[%s0] sm:$0xff]
    %v81 = vld [vmem:[%s0 + $0x8] sm:$0xff]
    %v82 = vld [vmem:[%s1] sm:$0xff]
    %v83 = vld [vmem:[%s1 + $0x8] sm:$0xff]
    %v84 = vld [vmem:[%s2] sm:$0xff]
    %v85 = vld [vmem:[%s2 + $0x8] sm:$0xff]
    %v86 = vld [vmem:[%s2 + $0x10] sm:$0xff]
    %v87 = vld [vmem:[%s2 + $0x18] sm:$0xff]
    %v88 = vld [vmem:[%s2 + $0x20] sm:$0xff]
    %v89 = vld [vmem:[%s2 + $0x28] sm:$0xff]
    %v90 = vld [vmem:[%s2 + $0x30] sm:$0xff]
    %v91 = vld [vmem:[%s2 + $0x38] sm:$0xff]
    %v92 = vld [vmem:[%s3] sm:$0x3]
    %94 = vset.pattern.permute.xlu0 0
    %95 = vperm.xlu0 %94, %v82
    %v96 = vpop.permute.xlu0 %95
    %99 = vset.pattern.permute.xlu0 0
    %100 = vperm.xlu0 %99, %v83
    %v101 = vpop.permute.xlu0 %100
    %v104 = vlaneseq
    %v105 = vshrl.u32 %v104, 7
    %v106 = vsub.s32 0, %v105
    %v107 = vrot.slane %v92, %v106
    %v108 = vlaneseq
    %v109 = vshrl.u32 %v108, 7
    %v110 = vsub.s32 1, %v109
    %v111 = vrot.slane %v92, %v110
    %v114 = vmul.f32 %v96, %v107
    %v115 = vmul.f32 %v96, %v111
    %v116 = vmul.f32 %v101, %v107
    %v117 = vmul.f32 %v101, %v111
    %vm118 = vcmask 261120
    %v120 = vsel %vm118, %v80, 0
    %v123 = vsel %vm118, %v81, 0
    %125 = vmatprep.subr.mxu0 %v85
    %126 = vmatpush1.msra.mxu0 %v84
    %127 = vmatprep.subr.mxu0 %v87
    %128 = vmatpush1.msra.mxu0 %v86
    %129 = vmatprep.subr.mxu0 %v89
    %130 = vmatpush1.msra.mxu0 %v88
    %131 = vmatprep.subr.mxu0 %v91
    %132 = vmatpush1.msra.mxu0 %v90
    %133 = vmatprep.subr.mxu0 0.0
    %134 = vmatpush1.msra.mxu0 0.0
    %135 = vmatprep.subr.mxu0 0.0
    %136 = vmatpush1.msra.mxu0 0.0
    %137 = vmatprep.subr.mxu0 0.0
    %138 = vmatpush1.msra.mxu0 0.0
    %139 = vmatprep.subr.mxu0 0.0
    %140 = vmatpush1.msra.mxu0 0.0
    %141 = vmatprep.subr.mxu0 0.0
    %142 = vmatpush1.msra.mxu0 0.0
    %143 = vmatprep.subr.mxu0 0.0
    %144 = vmatpush1.msra.mxu0 0.0
    %145 = vmatprep.subr.mxu0 0.0
    %146 = vmatpush1.msra.mxu0 0.0
    %147 = vmatprep.subr.mxu0 0.0
    %148 = vmatpush1.msra.mxu0 0.0
    %149 = vmatprep.subr.mxu0 0.0
    %150 = vmatpush1.msra.mxu0 0.0
    %151 = vmatprep.subr.mxu0 0.0
    %152 = vmatpush1.msra.mxu0 0.0
    %153 = vmatprep.subr.mxu0 0.0
    %154 = vmatpush1.msra.mxu0 0.0
    %155 = vmatprep.subr.mxu0 0.0
    %156 = vmatpush1.msra.mxu0 0.0
    %157 = vmatprep.subr.mxu0 0.0
    %158 = vmatpush1.msra.mxu0 0.0
    %159 = vmatprep.subr.mxu0 0.0
    %160 = vmatpush1.msra.mxu0 0.0
    %161 = vmatprep.subr.mxu0 0.0
    %162 = vmatpush1.msra.mxu0 0.0
    %163 = vmatprep.subr.mxu0 0.0
    %164 = vmatpush1.msra.mxu0 0.0
    %165 = vmatprep.subr.mxu0 0.0
    %166 = vmatpush1.msra.mxu0 0.0
    %167 = vmatprep.subr.mxu0 0.0
    %168 = vmatpush1.msra.mxu0 0.0
    %169 = vmatprep.subr.mxu0 0.0
    %170 = vmatpush1.msra.mxu0 0.0
    %171 = vmatprep.subr.mxu0 0.0
    %172 = vmatpush1.msra.mxu0 0.0
    %173 = vmatprep.subr.mxu0 0.0
    %174 = vmatpush1.msra.mxu0 0.0
    %175 = vmatprep.subr.mxu0 0.0
    %176 = vmatpush1.msra.mxu0 0.0
    %177 = vmatprep.subr.mxu0 0.0
    %178 = vmatpush1.msra.mxu0 0.0
    %179 = vmatprep.subr.mxu0 0.0
    %180 = vmatpush1.msra.mxu0 0.0
    %181 = vmatprep.subr.mxu0 0.0
    %182 = vmatpush1.msra.mxu0 0.0
    %183 = vmatprep.subr.mxu0 0.0
    %184 = vmatpush1.msra.mxu0 0.0
    %185 = vmatprep.subr.mxu0 0.0
    %186 = vmatpush1.msra.mxu0 0.0
    %187 = vmatprep.subr.mxu0 0.0
    %188 = vmatpush1.msra.mxu0 0.0
    %189 = vmatprep.mubr.f32.mxu0 0.0
    %190 = vmatmul.mubr.f32.gmra.mrb[0].mxu0 %v120
    %v191 = vpop.f32.mrb[0].mxu0
    %v192 = vadd.f32 %v114, %v191
    %v193 = vpop.f32.mrb[0].mxu0
    %v194 = vadd.f32 %v115, %v193
    %195 = vmatprep.mubr.f32.mxu0 0.0
    %196 = vmatmul.mubr.f32.gmra.mrb[0].mxu0 %v123
    %v197 = vpop.f32.mrb[0].mxu0
    %v198 = vadd.f32 %v116, %v197
    %v199 = vpop.f32.mrb[0].mxu0
    %v200 = vadd.f32 %v117, %v199
    %201 = vdwg.mxu0
    %v202 = vld [vmem:[%s4] sm:$0x3]
    %v204 = vlaneseq
    %v205 = vshrl.u32 %v204, 7
    %v206 = vsub.s32 0, %v205
    %v207 = vrot.slane %v202, %v206
    %v208 = vlaneseq
    %v209 = vshrl.u32 %v208, 7
    %v210 = vsub.s32 1, %v209
    %v211 = vrot.slane %v202, %v210
    %v214 = vadd.f32 %v192, %v207
    %v215 = vadd.f32 %v194, %v211
    %v216 = vadd.f32 %v198, %v207
    %v217 = vadd.f32 %v200, %v211
    %v218 = vld [vmem:[#allocation2] sm:$0xff]
    %v219 = vld [vmem:[#allocation2 + $0x8] sm:$0xff]
    %v220 = vld [vmem:[#allocation2 + $0x10] sm:$0xff]
    %v221 = vld [vmem:[#allocation2 + $0x18] sm:$0xff]
    %v222 = vld [vmem:[#allocation2 + $0x20] sm:$0xff]
    %v223 = vld [vmem:[#allocation2 + $0x28] sm:$0xff]
    %v224 = vld [vmem:[#allocation2 + $0x30] sm:$0xff]
    %v225 = vld [vmem:[#allocation2 + $0x38] sm:$0xff]
    %v226 = vld [vmem:[#allocation2 + $0x40] sm:$0xff]
    %v227 = vld [vmem:[#allocation2 + $0x48] sm:$0xff]
    %v228 = vld [vmem:[#allocation2 + $0x50] sm:$0xff]
    %v229 = vld [vmem:[#allocation2 + $0x58] sm:$0xff]
    %v230 = vld [vmem:[#allocation2 + $0x60] sm:$0xff]
    %v231 = vld [vmem:[#allocation2 + $0x68] sm:$0xff]
    %v232 = vld [vmem:[#allocation2 + $0x70] sm:$0xff]
    %v233 = vld [vmem:[#allocation2 + $0x78] sm:$0xff]
    %vm234 = vcmask 523264
    %v236 = vsel %vm234, 0.0, 0
    %238 = vmatprep.subr.mxu0 %v219
    %239 = vmatpush1.msra.mxu0 %v218
    %240 = vmatprep.subr.mxu0 %v221
    %241 = vmatpush1.msra.mxu0 %v220
    %242 = vmatprep.subr.mxu0 %v223
    %243 = vmatpush1.msra.mxu0 %v222
    %244 = vmatprep.subr.mxu0 %v225
    %245 = vmatpush1.msra.mxu0 %v224
    %246 = vmatprep.subr.mxu0 %v227
    %247 = vmatpush1.msra.mxu0 %v226
    %248 = vmatprep.subr.mxu0 %v229
    %249 = vmatpush1.msra.mxu0 %v228
    %250 = vmatprep.subr.mxu0 %v231
    %251 = vmatpush1.msra.mxu0 %v230
    %252 = vmatprep.subr.mxu0 %v233
    %253 = vmatpush1.msra.mxu0 %v232
    %254 = vmatprep.subr.mxu0 0.0
    %255 = vmatpush1.msra.mxu0 0.0
    %256 = vmatprep.subr.mxu0 0.0
    %257 = vmatpush1.msra.mxu0 0.0
    %258 = vmatprep.subr.mxu0 0.0
    %259 = vmatpush1.msra.mxu0 0.0
    %260 = vmatprep.subr.mxu0 0.0
    %261 = vmatpush1.msra.mxu0 0.0
    %262 = vmatprep.subr.mxu0 0.0
    %263 = vmatpush1.msra.mxu0 0.0
    %264 = vmatprep.subr.mxu0 0.0
    %265 = vmatpush1.msra.mxu0 0.0
    %266 = vmatprep.subr.mxu0 0.0
    %267 = vmatpush1.msra.mxu0 0.0
    %268 = vmatprep.subr.mxu0 0.0
    %269 = vmatpush1.msra.mxu0 0.0
    %270 = vmatprep.subr.mxu0 0.0
    %271 = vmatpush1.msra.mxu0 0.0
    %272 = vmatprep.subr.mxu0 0.0
    %273 = vmatpush1.msra.mxu0 0.0
    %274 = vmatprep.subr.mxu0 0.0
    %275 = vmatpush1.msra.mxu0 0.0
    %276 = vmatprep.subr.mxu0 0.0
    %277 = vmatpush1.msra.mxu0 0.0
    %278 = vmatprep.subr.mxu0 0.0
    %279 = vmatpush1.msra.mxu0 0.0
    %280 = vmatprep.subr.mxu0 0.0
    %281 = vmatpush1.msra.mxu0 0.0
    %282 = vmatprep.subr.mxu0 0.0
    %283 = vmatpush1.msra.mxu0 0.0
    %284 = vmatprep.subr.mxu0 0.0
    %285 = vmatpush1.msra.mxu0 0.0
    %286 = vmatprep.subr.mxu0 0.0
    %287 = vmatpush1.msra.mxu0 0.0
    %288 = vmatprep.subr.mxu0 0.0
    %289 = vmatpush1.msra.mxu0 0.0
    %290 = vmatprep.subr.mxu0 0.0
    %291 = vmatpush1.msra.mxu0 0.0
    %292 = vmatprep.subr.mxu0 0.0
    %293 = vmatpush1.msra.mxu0 0.0
    %294 = vmatprep.subr.mxu0 0.0
    %295 = vmatpush1.msra.mxu0 0.0
    %296 = vmatprep.subr.mxu0 0.0
    %297 = vmatpush1.msra.mxu0 0.0
    %298 = vmatprep.subr.mxu0 0.0
    %299 = vmatpush1.msra.mxu0 0.0
    %300 = vmatprep.subr.mxu0 0.0
    %301 = vmatpush1.msra.mxu0 0.0
    %302 = vmatprep.mubr.f32.mxu0 0.0
    %303 = vmatmul.mubr.f32.gmra.mrb[0].mxu0 %v236
    %v304 = vpop.f32.mrb[0].mxu0
    %v305 = vadd.f32 0.0, %v304
    %v306 = vpop.f32.mrb[0].mxu0
    %v307 = vadd.f32 0.0, %v306
    %308 = vdwg.mxu0
    %v309 = vadd.f32 %v214, %v305
    %v311 = vrot.slane %v307, 2
    %v313 = vadd.f32 %v217, %v311
    %v314 = vxor.u32 %v309, 2147483648
    %v315 = vmul.f32 %v314, 1.442695
    %v316 = vpow.pop %v315
    %v317 = vadd.f32 %v316, 1.0
    %v318 = vrcp.pop %v317
    %v319 = vmul.f32 1.0, %v318
    %v320 = vtanh.pop %v309
    %v321 = vmul.f32 %v319, 0.0
    %323 = vrot.lane.b32.xlu0 %v320, 32
    %v324 = vpop.permute.xlu0 %323
    %v326 = vmul.f32 %v319, %v324
    %328 = vrot.lane.b32.xlu0 %v326, 32
    %v329 = vpop.permute.xlu0 %328
    %v331 = vadd.f32 %v321, %v329
    %v332 = vtanh.pop %v331
    %334 = vrot.lane.b32.xlu0 %v332, 32
    %v335 = vpop.permute.xlu0 %334
    %v337 = vmul.f32 %v319, %v335
    %v338 = vxor.u32 %v313, 2147483648
    %v339 = vmul.f32 %v338, 1.442695
    %v340 = vpow.pop %v339
    %v341 = vadd.f32 %v340, 1.0
    %v342 = vrcp.pop %v341
    %v343 = vmul.f32 1.0, %v342
    %v344 = vtanh.pop %v313
    %v345 = vmul.f32 %v343, 0.0
    %347 = vrot.lane.b32.xlu0 %v344, 32
    %v348 = vpop.permute.xlu0 %347
    %v350 = vmul.f32 %v343, %v348
    %352 = vrot.lane.b32.xlu0 %v350, 32
    %v353 = vpop.permute.xlu0 %352
    %v355 = vadd.f32 %v345, %v353
    %v356 = vtanh.pop %v355
    %358 = vrot.lane.b32.xlu0 %v356, 32
    %v359 = vpop.permute.xlu0 %358
    %v361 = vmul.f32 %v343, %v359
    %363 = vrot.lane.b32.xlu0 %v337, 64
    %v364 = vpop.permute.xlu0 %363
    %v367 = vrot.slane %v361, 6
    %368 = vrot.lane.b32.xlu0 %v367, 96
    %v369 = vpop.permute.xlu0 %368
    %v371 = vsel %vm118, %v364, %v369
    %v373 = vsel %vm234, %v371, 0
    %375 = vmatprep.subr.mxu0 %v219
    %376 = vmatpush1.msra.mxu0 %v218
    %377 = vmatprep.subr.mxu0 %v221
    %378 = vmatpush1.msra.mxu0 %v220
    %379 = vmatprep.subr.mxu0 %v223
    %380 = vmatpush1.msra.mxu0 %v222
    %381 = vmatprep.subr.mxu0 %v225
    %382 = vmatpush1.msra.mxu0 %v224
    %383 = vmatprep.subr.mxu0 %v227
    %384 = vmatpush1.msra.mxu0 %v226
    %385 = vmatprep.subr.mxu0 %v229
    %386 = vmatpush1.msra.mxu0 %v228
    %387 = vmatprep.subr.mxu0 %v231
    %388 = vmatpush1.msra.mxu0 %v230
    %389 = vmatprep.subr.mxu0 %v233
    %390 = vmatpush1.msra.mxu0 %v232
    %391 = vmatprep.subr.mxu0 0.0
    %392 = vmatpush1.msra.mxu0 0.0
    %393 = vmatprep.subr.mxu0 0.0
    %394 = vmatpush1.msra.mxu0 0.0
    %395 = vmatprep.subr.mxu0 0.0
    %396 = vmatpush1.msra.mxu0 0.0
    %397 = vmatprep.subr.mxu0 0.0
    %398 = vmatpush1.msra.mxu0 0.0
    %399 = vmatprep.subr.mxu0 0.0
    %400 = vmatpush1.msra.mxu0 0.0
    %401 = vmatprep.subr.mxu0 0.0
    %402 = vmatpush1.msra.mxu0 0.0
    %403 = vmatprep.subr.mxu0 0.0
    %404 = vmatpush1.msra.mxu0 0.0
    %405 = vmatprep.subr.mxu0 0.0
    %406 = vmatpush1.msra.mxu0 0.0
    %407 = vmatprep.subr.mxu0 0.0
    %408 = vmatpush1.msra.mxu0 0.0
    %409 = vmatprep.subr.mxu0 0.0
    %410 = vmatpush1.msra.mxu0 0.0
    %411 = vmatprep.subr.mxu0 0.0
    %412 = vmatpush1.msra.mxu0 0.0
    %413 = vmatprep.subr.mxu0 0.0
    %414 = vmatpush1.msra.mxu0 0.0
    %415 = vmatprep.subr.mxu0 0.0
    %416 = vmatpush1.msra.mxu0 0.0
    %417 = vmatprep.subr.mxu0 0.0
    %418 = vmatpush1.msra.mxu0 0.0
    %419 = vmatprep.subr.mxu0 0.0
    %420 = vmatpush1.msra.mxu0 0.0
    %421 = vmatprep.subr.mxu0 0.0
    %422 = vmatpush1.msra.mxu0 0.0
    %423 = vmatprep.subr.mxu0 0.0
    %424 = vmatpush1.msra.mxu0 0.0
    %425 = vmatprep.subr.mxu0 0.0
    %426 = vmatpush1.msra.mxu0 0.0
    %427 = vmatprep.subr.mxu0 0.0
    %428 = vmatpush1.msra.mxu0 0.0
    %429 = vmatprep.subr.mxu0 0.0
    %430 = vmatpush1.msra.mxu0 0.0
    %431 = vmatprep.subr.mxu0 0.0
    %432 = vmatpush1.msra.mxu0 0.0
    %433 = vmatprep.subr.mxu0 0.0
    %434 = vmatpush1.msra.mxu0 0.0
    %435 = vmatprep.subr.mxu0 0.0
    %436 = vmatpush1.msra.mxu0 0.0
    %437 = vmatprep.subr.mxu0 0.0
    %438 = vmatpush1.msra.mxu0 0.0
    %439 = vmatprep.mubr.f32.mxu0 0.0
    %440 = vmatmul.mubr.f32.gmra.mrb[0].mxu0 %v373
    %v441 = vpop.f32.mrb[0].mxu0
    %v442 = vadd.f32 0.0, %v441
    %v443 = vpop.f32.mrb[0].mxu0
    %v444 = vadd.f32 0.0, %v443
    %445 = vdwg.mxu0
    %v447 = vrot.slane %v442, 6
    %v449 = vadd.f32 %v214, %v447
    %v451 = vrot.slane %v444, 4
    %v453 = vadd.f32 %v217, %v451
    %v454 = vxor.u32 %v449, 2147483648
    %v455 = vmul.f32 %v454, 1.442695
    %v456 = vpow.pop %v455
    %v457 = vadd.f32 %v456, 1.0
    %v458 = vrcp.pop %v457
    %v459 = vmul.f32 1.0, %v458
    %v460 = vtanh.pop %v449
    %v462 = vrot.slane %v331, 6
    %v464 = vmul.f32 %v459, %v462
    %466 = vrot.lane.b32.xlu0 %v460, 32
    %v467 = vpop.permute.xlu0 %466
    %v469 = vmul.f32 %v459, %v467
    %471 = vrot.lane.b32.xlu0 %v469, 32
    %v472 = vpop.permute.xlu0 %471
    %v474 = vadd.f32 %v464, %v472
    %v475 = vtanh.pop %v474
    %477 = vrot.lane.b32.xlu0 %v475, 32
    %v478 = vpop.permute.xlu0 %477
    %v480 = vmul.f32 %v459, %v478
    %v481 = vxor.u32 %v453, 2147483648
    %v482 = vmul.f32 %v481, 1.442695
    %v483 = vpow.pop %v482
    %v484 = vadd.f32 %v483, 1.0
    %v485 = vrcp.pop %v484
    %v486 = vmul.f32 1.0, %v485
    %v487 = vtanh.pop %v453
    %v489 = vrot.slane %v355, 2
    %v491 = vmul.f32 %v486, %v489
    %493 = vrot.lane.b32.xlu0 %v487, 32
    %v494 = vpop.permute.xlu0 %493
    %v496 = vmul.f32 %v486, %v494
    %498 = vrot.lane.b32.xlu0 %v496, 32
    %v499 = vpop.permute.xlu0 %498
    %v501 = vadd.f32 %v491, %v499
    %v502 = vtanh.pop %v501
    %504 = vrot.lane.b32.xlu0 %v502, 32
    %v505 = vpop.permute.xlu0 %504
    %v507 = vmul.f32 %v486, %v505
    %509 = vrot.lane.b32.xlu0 %v480, 64
    %v510 = vpop.permute.xlu0 %509
    %v513 = vrot.slane %v507, 2
    %514 = vrot.lane.b32.xlu0 %v513, 96
    %v515 = vpop.permute.xlu0 %514
    %v517 = vsel %vm118, %v510, %v515
    %v519 = vrot.slane %v517, 2
    %v520 = vsel %vm234, %v519, 0
    %522 = vmatprep.subr.mxu0 %v219
    %523 = vmatpush1.msra.mxu0 %v218
    %524 = vmatprep.subr.mxu0 %v221
    %525 = vmatpush1.msra.mxu0 %v220
    %526 = vmatprep.subr.mxu0 %v223
    %527 = vmatpush1.msra.mxu0 %v222
    %528 = vmatprep.subr.mxu0 %v225
    %529 = vmatpush1.msra.mxu0 %v224
    %530 = vmatprep.subr.mxu0 %v227
    %531 = vmatpush1.msra.mxu0 %v226
    %532 = vmatprep.subr.mxu0 %v229
    %533 = vmatpush1.msra.mxu0 %v228
    %534 = vmatprep.subr.mxu0 %v231
    %535 = vmatpush1.msra.mxu0 %v230
    %536 = vmatprep.subr.mxu0 %v233
    %537 = vmatpush1.msra.mxu0 %v232
    %538 = vmatprep.subr.mxu0 0.0
    %539 = vmatpush1.msra.mxu0 0.0
    %540 = vmatprep.subr.mxu0 0.0
    %541 = vmatpush1.msra.mxu0 0.0
    %542 = vmatprep.subr.mxu0 0.0
    %543 = vmatpush1.msra.mxu0 0.0
    %544 = vmatprep.subr.mxu0 0.0
    %545 = vmatpush1.msra.mxu0 0.0
    %546 = vmatprep.subr.mxu0 0.0
    %547 = vmatpush1.msra.mxu0 0.0
    %548 = vmatprep.subr.mxu0 0.0
    %549 = vmatpush1.msra.mxu0 0.0
    %550 = vmatprep.subr.mxu0 0.0
    %551 = vmatpush1.msra.mxu0 0.0
    %552 = vmatprep.subr.mxu0 0.0
    %553 = vmatpush1.msra.mxu0 0.0
    %554 = vmatprep.subr.mxu0 0.0
    %555 = vmatpush1.msra.mxu0 0.0
    %556 = vmatprep.subr.mxu0 0.0
    %557 = vmatpush1.msra.mxu0 0.0
    %558 = vmatprep.subr.mxu0 0.0
    %559 = vmatpush1.msra.mxu0 0.0
    %560 = vmatprep.subr.mxu0 0.0
    %561 = vmatpush1.msra.mxu0 0.0
    %562 = vmatprep.subr.mxu0 0.0
    %563 = vmatpush1.msra.mxu0 0.0
    %564 = vmatprep.subr.mxu0 0.0
    %565 = vmatpush1.msra.mxu0 0.0
    %566 = vmatprep.subr.mxu0 0.0
    %567 = vmatpush1.msra.mxu0 0.0
    %568 = vmatprep.subr.mxu0 0.0
    %569 = vmatpush1.msra.mxu0 0.0
    %570 = vmatprep.subr.mxu0 0.0
    %571 = vmatpush1.msra.mxu0 0.0
    %572 = vmatprep.subr.mxu0 0.0
    %573 = vmatpush1.msra.mxu0 0.0
    %574 = vmatprep.subr.mxu0 0.0
    %575 = vmatpush1.msra.mxu0 0.0
    %576 = vmatprep.subr.mxu0 0.0
    %577 = vmatpush1.msra.mxu0 0.0
    %578 = vmatprep.subr.mxu0 0.0
    %579 = vmatpush1.msra.mxu0 0.0
    %580 = vmatprep.subr.mxu0 0.0
    %581 = vmatpush1.msra.mxu0 0.0
    %582 = vmatprep.subr.mxu0 0.0
    %583 = vmatpush1.msra.mxu0 0.0
    %584 = vmatprep.subr.mxu0 0.0
    %585 = vmatpush1.msra.mxu0 0.0
    %586 = vmatprep.mubr.f32.mxu0 0.0
    %587 = vmatmul.mubr.f32.gmra.mrb[0].mxu0 %v520
    %v588 = vpop.f32.mrb[0].mxu0
    %v589 = vadd.f32 0.0, %v588
    %v590 = vpop.f32.mrb[0].mxu0
    %v591 = vadd.f32 0.0, %v590
    %592 = vdwg.mxu0
    %v594 = vrot.slane %v589, 4
    %v596 = vadd.f32 %v214, %v594
    %v598 = vrot.slane %v591, 6
    %v600 = vadd.f32 %v217, %v598
    %v601 = vxor.u32 %v596, 2147483648
    %v602 = vmul.f32 %v601, 1.442695
    %v603 = vpow.pop %v602
    %v604 = vadd.f32 %v603, 1.0
    %v605 = vrcp.pop %v604
    %v606 = vmul.f32 1.0, %v605
    %v607 = vtanh.pop %v596
    %v609 = vrot.slane %v474, 6
    %v611 = vmul.f32 %v606, %v609
    %613 = vrot.lane.b32.xlu0 %v607, 32
    %v614 = vpop.permute.xlu0 %613
    %v616 = vmul.f32 %v606, %v614
    %618 = vrot.lane.b32.xlu0 %v616, 32
    %v619 = vpop.permute.xlu0 %618
    %v621 = vadd.f32 %v611, %v619
    %v622 = vtanh.pop %v621
    %624 = vrot.lane.b32.xlu0 %v622, 32
    %v625 = vpop.permute.xlu0 %624
    %v627 = vmul.f32 %v606, %v625
    %v628 = vxor.u32 %v600, 2147483648
    %v629 = vmul.f32 %v628, 1.442695
    %v630 = vpow.pop %v629
    %v631 = vadd.f32 %v630, 1.0
    %v632 = vrcp.pop %v631
    %v633 = vmul.f32 1.0, %v632
    %v634 = vtanh.pop %v600
    %v636 = vrot.slane %v501, 2
    %v638 = vmul.f32 %v633, %v636
    %640 = vrot.lane.b32.xlu0 %v634, 32
    %v641 = vpop.permute.xlu0 %640
    %v643 = vmul.f32 %v633, %v641
    %645 = vrot.lane.b32.xlu0 %v643, 32
    %v646 = vpop.permute.xlu0 %645
    %v648 = vadd.f32 %v638, %v646
    %v649 = vtanh.pop %v648
    %651 = vrot.lane.b32.xlu0 %v649, 32
    %v652 = vpop.permute.xlu0 %651
    %v654 = vmul.f32 %v633, %v652
    %656 = vrot.lane.b32.xlu0 %v627, 64
    %v657 = vpop.permute.xlu0 %656
    %v660 = vrot.slane %v654, 6
    %661 = vrot.lane.b32.xlu0 %v660, 96
    %v662 = vpop.permute.xlu0 %661
    %v664 = vsel %vm118, %v657, %v662
    %v666 = vrot.slane %v664, 4
    %v667 = vsel %vm234, %v666, 0
    %669 = vmatprep.subr.mxu0 %v219
    %670 = vmatpush1.msra.mxu0 %v218
    %671 = vmatprep.subr.mxu0 %v221
    %672 = vmatpush1.msra.mxu0 %v220
    %673 = vmatprep.subr.mxu0 %v223
    %674 = vmatpush1.msra.mxu0 %v222
    %675 = vmatprep.subr.mxu0 %v225
    %676 = vmatpush1.msra.mxu0 %v224
    %677 = vmatprep.subr.mxu0 %v227
    %678 = vmatpush1.msra.mxu0 %v226
    %679 = vmatprep.subr.mxu0 %v229
    %680 = vmatpush1.msra.mxu0 %v228
    %681 = vmatprep.subr.mxu0 %v231
    %682 = vmatpush1.msra.mxu0 %v230
    %683 = vmatprep.subr.mxu0 %v233
    %684 = vmatpush1.msra.mxu0 %v232
    %685 = vmatprep.subr.mxu0 0.0
    %686 = vmatpush1.msra.mxu0 0.0
    %687 = vmatprep.subr.mxu0 0.0
    %688 = vmatpush1.msra.mxu0 0.0
    %689 = vmatprep.subr.mxu0 0.0
    %690 = vmatpush1.msra.mxu0 0.0
    %691 = vmatprep.subr.mxu0 0.0
    %692 = vmatpush1.msra.mxu0 0.0
    %693 = vmatprep.subr.mxu0 0.0
    %694 = vmatpush1.msra.mxu0 0.0
    %695 = vmatprep.subr.mxu0 0.0
    %696 = vmatpush1.msra.mxu0 0.0
    %697 = vmatprep.subr.mxu0 0.0
    %698 = vmatpush1.msra.mxu0 0.0
    %699 = vmatprep.subr.mxu0 0.0
    %700 = vmatpush1.msra.mxu0 0.0
    %701 = vmatprep.subr.mxu0 0.0
    %702 = vmatpush1.msra.mxu0 0.0
    %703 = vmatprep.subr.mxu0 0.0
    %704 = vmatpush1.msra.mxu0 0.0
    %705 = vmatprep.subr.mxu0 0.0
    %706 = vmatpush1.msra.mxu0 0.0
    %707 = vmatprep.subr.mxu0 0.0
    %708 = vmatpush1.msra.mxu0 0.0
    %709 = vmatprep.subr.mxu0 0.0
    %710 = vmatpush1.msra.mxu0 0.0
    %711 = vmatprep.subr.mxu0 0.0
    %712 = vmatpush1.msra.mxu0 0.0
    %713 = vmatprep.subr.mxu0 0.0
    %714 = vmatpush1.msra.mxu0 0.0
    %715 = vmatprep.subr.mxu0 0.0
    %716 = vmatpush1.msra.mxu0 0.0
    %717 = vmatprep.subr.mxu0 0.0
    %718 = vmatpush1.msra.mxu0 0.0
    %719 = vmatprep.subr.mxu0 0.0
    %720 = vmatpush1.msra.mxu0 0.0
    %721 = vmatprep.subr.mxu0 0.0
    %722 = vmatpush1.msra.mxu0 0.0
    %723 = vmatprep.subr.mxu0 0.0
    %724 = vmatpush1.msra.mxu0 0.0
    %725 = vmatprep.subr.mxu0 0.0
    %726 = vmatpush1.msra.mxu0 0.0
    %727 = vmatprep.subr.mxu0 0.0
    %728 = vmatpush1.msra.mxu0 0.0
    %729 = vmatprep.subr.mxu0 0.0
    %730 = vmatpush1.msra.mxu0 0.0
    %731 = vmatprep.subr.mxu0 0.0
    %732 = vmatpush1.msra.mxu0 0.0
    %733 = vmatprep.mubr.f32.mxu0 0.0
    %734 = vmatmul.mubr.f32.gmra.mrb[0].mxu0 %v667
    %v735 = vpop.f32.mrb[0].mxu0
    %v736 = vadd.f32 0.0, %v735
    %v737 = vpop.f32.mrb[0].mxu0
    %v738 = vadd.f32 0.0, %v737
    %739 = vdwg.mxu0
    %v741 = vrot.slane %v736, 2
    %v743 = vadd.f32 %v214, %v741
    %v744 = vadd.f32 %v217, %v738
    %v745 = vxor.u32 %v743, 2147483648
    %v746 = vmul.f32 %v745, 1.442695
    %v747 = vpow.pop %v746
    %v748 = vadd.f32 %v747, 1.0
    %v749 = vrcp.pop %v748
    %v750 = vmul.f32 1.0, %v749
    %v751 = vtanh.pop %v743
    %v753 = vrot.slane %v621, 6
    %v755 = vmul.f32 %v750, %v753
    %757 = vrot.lane.b32.xlu0 %v751, 32
    %v758 = vpop.permute.xlu0 %757
    %v760 = vmul.f32 %v750, %v758
    %762 = vrot.lane.b32.xlu0 %v760, 32
    %v763 = vpop.permute.xlu0 %762
    %v765 = vadd.f32 %v755, %v763
    %v766 = vtanh.pop %v765
    %768 = vrot.lane.b32.xlu0 %v766, 32
    %v769 = vpop.permute.xlu0 %768
    %v771 = vmul.f32 %v750, %v769
    %v772 = vxor.u32 %v744, 2147483648
    %v773 = vmul.f32 %v772, 1.442695
    %v774 = vpow.pop %v773
    %v775 = vadd.f32 %v774, 1.0
    %v776 = vrcp.pop %v775
    %v777 = vmul.f32 1.0, %v776
    %v778 = vtanh.pop %v744
    %v780 = vrot.slane %v648, 2
    %v782 = vmul.f32 %v777, %v780
    %784 = vrot.lane.b32.xlu0 %v778, 32
    %v785 = vpop.permute.xlu0 %784
    %v787 = vmul.f32 %v777, %v785
    %789 = vrot.lane.b32.xlu0 %v787, 32
    %v790 = vpop.permute.xlu0 %789
    %v792 = vadd.f32 %v782, %v790
    %v793 = vtanh.pop %v792
    %795 = vrot.lane.b32.xlu0 %v793, 32
    %v796 = vpop.permute.xlu0 %795
    %v798 = vmul.f32 %v777, %v796
    %800 = vrot.lane.b32.xlu0 %v771, 64
    %v801 = vpop.permute.xlu0 %800
    %v804 = vrot.slane %v798, 2
    %805 = vrot.lane.b32.xlu0 %v804, 96
    %v806 = vpop.permute.xlu0 %805
    %v808 = vsel %vm118, %v801, %v806
    %v810 = vrot.slane %v808, 6
    %v811 = vsel %vm234, %v810, 0
    %813 = vmatprep.subr.mxu0 %v219
    %814 = vmatpush1.msra.mxu0 %v218
    %815 = vmatprep.subr.mxu0 %v221
    %816 = vmatpush1.msra.mxu0 %v220
    %817 = vmatprep.subr.mxu0 %v223
    %818 = vmatpush1.msra.mxu0 %v222
    %819 = vmatprep.subr.mxu0 %v225
    %820 = vmatpush1.msra.mxu0 %v224
    %821 = vmatprep.subr.mxu0 %v227
    %822 = vmatpush1.msra.mxu0 %v226
    %823 = vmatprep.subr.mxu0 %v229
    %824 = vmatpush1.msra.mxu0 %v228
    %825 = vmatprep.subr.mxu0 %v231
    %826 = vmatpush1.msra.mxu0 %v230
    %827 = vmatprep.subr.mxu0 %v233
    %828 = vmatpush1.msra.mxu0 %v232
    %829 = vmatprep.subr.mxu0 0.0
    %830 = vmatpush1.msra.mxu0 0.0
    %831 = vmatprep.subr.mxu0 0.0
    %832 = vmatpush1.msra.mxu0 0.0
    %833 = vmatprep.subr.mxu0 0.0
    %834 = vmatpush1.msra.mxu0 0.0
    %835 = vmatprep.subr.mxu0 0.0
    %836 = vmatpush1.msra.mxu0 0.0
    %837 = vmatprep.subr.mxu0 0.0
    %838 = vmatpush1.msra.mxu0 0.0
    %839 = vmatprep.subr.mxu0 0.0
    %840 = vmatpush1.msra.mxu0 0.0
    %841 = vmatprep.subr.mxu0 0.0
    %842 = vmatpush1.msra.mxu0 0.0
    %843 = vmatprep.subr.mxu0 0.0
    %844 = vmatpush1.msra.mxu0 0.0
    %845 = vmatprep.subr.mxu0 0.0
    %846 = vmatpush1.msra.mxu0 0.0
    %847 = vmatprep.subr.mxu0 0.0
    %848 = vmatpush1.msra.mxu0 0.0
    %849 = vmatprep.subr.mxu0 0.0
    %850 = vmatpush1.msra.mxu0 0.0
    %851 = vmatprep.subr.mxu0 0.0
    %852 = vmatpush1.msra.mxu0 0.0
    %853 = vmatprep.subr.mxu0 0.0
    %854 = vmatpush1.msra.mxu0 0.0
    %855 = vmatprep.subr.mxu0 0.0
    %856 = vmatpush1.msra.mxu0 0.0
    %857 = vmatprep.subr.mxu0 0.0
    %858 = vmatpush1.msra.mxu0 0.0
    %859 = vmatprep.subr.mxu0 0.0
    %860 = vmatpush1.msra.mxu0 0.0
    %861 = vmatprep.subr.mxu0 0.0
    %862 = vmatpush1.msra.mxu0 0.0
    %863 = vmatprep.subr.mxu0 0.0
    %864 = vmatpush1.msra.mxu0 0.0
    %865 = vmatprep.subr.mxu0 0.0
    %866 = vmatpush1.msra.mxu0 0.0
    %867 = vmatprep.subr.mxu0 0.0
    %868 = vmatpush1.msra.mxu0 0.0
    %869 = vmatprep.subr.mxu0 0.0
    %870 = vmatpush1.msra.mxu0 0.0
    %871 = vmatprep.subr.mxu0 0.0
    %872 = vmatpush1.msra.mxu0 0.0
    %873 = vmatprep.subr.mxu0 0.0
    %874 = vmatpush1.msra.mxu0 0.0
    %875 = vmatprep.subr.mxu0 0.0
    %876 = vmatpush1.msra.mxu0 0.0
    %877 = vmatprep.mubr.f32.mxu0 0.0
    %878 = vmatmul.mubr.f32.gmra.mrb[0].mxu0 %v811
    %v879 = vpop.f32.mrb[0].mxu0
    %v880 = vadd.f32 0.0, %v879
    %v881 = vpop.f32.mrb[0].mxu0
    %v882 = vadd.f32 0.0, %v881
    %883 = vdwg.mxu0
    %v884 = vadd.f32 %v216, %v880
    %v886 = vrot.slane %v882, 2
    %v888 = vadd.f32 %v215, %v886
    %v889 = vxor.u32 %v884, 2147483648
    %v890 = vmul.f32 %v889, 1.442695
    %v891 = vpow.pop %v890
    %v892 = vadd.f32 %v891, 1.0
    %v893 = vrcp.pop %v892
    %v894 = vmul.f32 1.0, %v893
    %v895 = vtanh.pop %v884
    %v897 = vrot.slane %v765, 6
    %v899 = vmul.f32 %v894, %v897
    %901 = vrot.lane.b32.xlu0 %v895, 32
    %v902 = vpop.permute.xlu0 %901
    %v904 = vmul.f32 %v894, %v902
    %906 = vrot.lane.b32.xlu0 %v904, 32
    %v907 = vpop.permute.xlu0 %906
    %v909 = vadd.f32 %v899, %v907
    %v910 = vtanh.pop %v909
    %912 = vrot.lane.b32.xlu0 %v910, 32
    %v913 = vpop.permute.xlu0 %912
    %v915 = vmul.f32 %v894, %v913
    %v916 = vxor.u32 %v888, 2147483648
    %v917 = vmul.f32 %v916, 1.442695
    %v918 = vpow.pop %v917
    %v919 = vadd.f32 %v918, 1.0
    %v920 = vrcp.pop %v919
    %v921 = vmul.f32 1.0, %v920
    %v922 = vtanh.pop %v888
    %v924 = vrot.slane %v792, 2
    %v926 = vmul.f32 %v921, %v924
    %928 = vrot.lane.b32.xlu0 %v922, 32
    %v929 = vpop.permute.xlu0 %928
    %v931 = vmul.f32 %v921, %v929
    %933 = vrot.lane.b32.xlu0 %v931, 32
    %v934 = vpop.permute.xlu0 %933
    %v936 = vadd.f32 %v926, %v934
    %v937 = vtanh.pop %v936
    %939 = vrot.lane.b32.xlu0 %v937, 32
    %v940 = vpop.permute.xlu0 %939
    %v942 = vmul.f32 %v921, %v940
    %944 = vrot.lane.b32.xlu0 %v915, 64
    %v945 = vpop.permute.xlu0 %944
    %v948 = vrot.slane %v942, 6
    %949 = vrot.lane.b32.xlu0 %v948, 96
    %v950 = vpop.permute.xlu0 %949
    %v952 = vsel %vm118, %v945, %v950
    %v954 = vsel %vm234, %v952, 0
    %956 = vmatprep.subr.mxu0 %v219
    %957 = vmatpush1.msra.mxu0 %v218
    %958 = vmatprep.subr.mxu0 %v221
    %959 = vmatpush1.msra.mxu0 %v220
    %960 = vmatprep.subr.mxu0 %v223
    %961 = vmatpush1.msra.mxu0 %v222
    %962 = vmatprep.subr.mxu0 %v225
    %963 = vmatpush1.msra.mxu0 %v224
    %964 = vmatprep.subr.mxu0 %v227
    %965 = vmatpush1.msra.mxu0 %v226
    %966 = vmatprep.subr.mxu0 %v229
    %967 = vmatpush1.msra.mxu0 %v228
    %968 = vmatprep.subr.mxu0 %v231
    %969 = vmatpush1.msra.mxu0 %v230
    %970 = vmatprep.subr.mxu0 %v233
    %971 = vmatpush1.msra.mxu0 %v232
    %972 = vmatprep.subr.mxu0 0.0
    %973 = vmatpush1.msra.mxu0 0.0
    %974 = vmatprep.subr.mxu0 0.0
    %975 = vmatpush1.msra.mxu0 0.0
    %976 = vmatprep.subr.mxu0 0.0
    %977 = vmatpush1.msra.mxu0 0.0
    %978 = vmatprep.subr.mxu0 0.0
    %979 = vmatpush1.msra.mxu0 0.0
    %980 = vmatprep.subr.mxu0 0.0
    %981 = vmatpush1.msra.mxu0 0.0
    %982 = vmatprep.subr.mxu0 0.0
    %983 = vmatpush1.msra.mxu0 0.0
    %984 = vmatprep.subr.mxu0 0.0
    %985 = vmatpush1.msra.mxu0 0.0
    %986 = vmatprep.subr.mxu0 0.0
    %987 = vmatpush1.msra.mxu0 0.0
    %988 = vmatprep.subr.mxu0 0.0
    %989 = vmatpush1.msra.mxu0 0.0
    %990 = vmatprep.subr.mxu0 0.0
    %991 = vmatpush1.msra.mxu0 0.0
    %992 = vmatprep.subr.mxu0 0.0
    %993 = vmatpush1.msra.mxu0 0.0
    %994 = vmatprep.subr.mxu0 0.0
    %995 = vmatpush1.msra.mxu0 0.0
    %996 = vmatprep.subr.mxu0 0.0
    %997 = vmatpush1.msra.mxu0 0.0
    %998 = vmatprep.subr.mxu0 0.0
    %999 = vmatpush1.msra.mxu0 0.0
    %1000 = vmatprep.subr.mxu0 0.0
    %1001 = vmatpush1.msra.mxu0 0.0
    %1002 = vmatprep.subr.mxu0 0.0
    %1003 = vmatpush1.msra.mxu0 0.0
    %1004 = vmatprep.subr.mxu0 0.0
    %1005 = vmatpush1.msra.mxu0 0.0
    %1006 = vmatprep.subr.mxu0 0.0
    %1007 = vmatpush1.msra.mxu0 0.0
    %1008 = vmatprep.subr.mxu0 0.0
    %1009 = vmatpush1.msra.mxu0 0.0
    %1010 = vmatprep.subr.mxu0 0.0
    %1011 = vmatpush1.msra.mxu0 0.0
    %1012 = vmatprep.subr.mxu0 0.0
    %1013 = vmatpush1.msra.mxu0 0.0
    %1014 = vmatprep.subr.mxu0 0.0
    %1015 = vmatpush1.msra.mxu0 0.0
    %1016 = vmatprep.subr.mxu0 0.0
    %1017 = vmatpush1.msra.mxu0 0.0
    %1018 = vmatprep.subr.mxu0 0.0
    %1019 = vmatpush1.msra.mxu0 0.0
    %1020 = vmatprep.mubr.f32.mxu0 0.0
    %1021 = vmatmul.mubr.f32.gmra.mrb[0].mxu0 %v954
    %v1022 = vpop.f32.mrb[0].mxu0
    %v1023 = vadd.f32 0.0, %v1022
    %v1024 = vpop.f32.mrb[0].mxu0
    %v1025 = vadd.f32 0.0, %v1024
    %1026 = vdwg.mxu0
    %v1028 = vrot.slane %v1023, 6
    %v1030 = vadd.f32 %v216, %v1028
    %v1032 = vrot.slane %v1025, 4
    %v1034 = vadd.f32 %v215, %v1032
    %v1035 = vxor.u32 %v1030, 2147483648
    %v1036 = vmul.f32 %v1035, 1.442695
    %v1037 = vpow.pop %v1036
    %v1038 = vadd.f32 %v1037, 1.0
    %v1039 = vrcp.pop %v1038
    %v1040 = vmul.f32 1.0, %v1039
    %v1041 = vtanh.pop %v1030
    %v1043 = vrot.slane %v909, 6
    %v1045 = vmul.f32 %v1040, %v1043
    %1047 = vrot.lane.b32.xlu0 %v1041, 32
    %v1048 = vpop.permute.xlu0 %1047
    %v1050 = vmul.f32 %v1040, %v1048
    %1052 = vrot.lane.b32.xlu0 %v1050, 32
    %v1053 = vpop.permute.xlu0 %1052
    %v1055 = vadd.f32 %v1045, %v1053
    %v1056 = vtanh.pop %v1055
    %1058 = vrot.lane.b32.xlu0 %v1056, 32
    %v1059 = vpop.permute.xlu0 %1058
    %v1061 = vmul.f32 %v1040, %v1059
    %v1062 = vxor.u32 %v1034, 2147483648
    %v1063 = vmul.f32 %v1062, 1.442695
    %v1064 = vpow.pop %v1063
    %v1065 = vadd.f32 %v1064, 1.0
    %v1066 = vrcp.pop %v1065
    %v1067 = vmul.f32 1.0, %v1066
    %v1068 = vtanh.pop %v1034
    %v1070 = vrot.slane %v936, 2
    %v1072 = vmul.f32 %v1067, %v1070
    %1074 = vrot.lane.b32.xlu0 %v1068, 32
    %v1075 = vpop.permute.xlu0 %1074
    %v1077 = vmul.f32 %v1067, %v1075
    %1079 = vrot.lane.b32.xlu0 %v1077, 32
    %v1080 = vpop.permute.xlu0 %1079
    %v1082 = vadd.f32 %v1072, %v1080
    %v1083 = vtanh.pop %v1082
    %1085 = vrot.lane.b32.xlu0 %v1083, 32
    %v1086 = vpop.permute.xlu0 %1085
    %v1088 = vmul.f32 %v1067, %v1086
    %1090 = vrot.lane.b32.xlu0 %v1061, 64
    %v1091 = vpop.permute.xlu0 %1090
    %v1094 = vrot.slane %v1088, 2
    %1095 = vrot.lane.b32.xlu0 %v1094, 96
    %v1096 = vpop.permute.xlu0 %1095
    %v1098 = vsel %vm118, %v1091, %v1096
    %v1100 = vrot.slane %v1098, 2
    %v1101 = vsel %vm234, %v1100, 0
    %1103 = vmatprep.subr.mxu0 %v219
    %1104 = vmatpush1.msra.mxu0 %v218
    %1105 = vmatprep.subr.mxu0 %v221
    %1106 = vmatpush1.msra.mxu0 %v220
    %1107 = vmatprep.subr.mxu0 %v223
    %1108 = vmatpush1.msra.mxu0 %v222
    %1109 = vmatprep.subr.mxu0 %v225
    %1110 = vmatpush1.msra.mxu0 %v224
    %1111 = vmatprep.subr.mxu0 %v227
    %1112 = vmatpush1.msra.mxu0 %v226
    %1113 = vmatprep.subr.mxu0 %v229
    %1114 = vmatpush1.msra.mxu0 %v228
    %1115 = vmatprep.subr.mxu0 %v231
    %1116 = vmatpush1.msra.mxu0 %v230
    %1117 = vmatprep.subr.mxu0 %v233
    %1118 = vmatpush1.msra.mxu0 %v232
    %1119 = vmatprep.subr.mxu0 0.0
    %1120 = vmatpush1.msra.mxu0 0.0
    %1121 = vmatprep.subr.mxu0 0.0
    %1122 = vmatpush1.msra.mxu0 0.0
    %1123 = vmatprep.subr.mxu0 0.0
    %1124 = vmatpush1.msra.mxu0 0.0
    %1125 = vmatprep.subr.mxu0 0.0
    %1126 = vmatpush1.msra.mxu0 0.0
    %1127 = vmatprep.subr.mxu0 0.0
    %1128 = vmatpush1.msra.mxu0 0.0
    %1129 = vmatprep.subr.mxu0 0.0
    %1130 = vmatpush1.msra.mxu0 0.0
    %1131 = vmatprep.subr.mxu0 0.0
    %1132 = vmatpush1.msra.mxu0 0.0
    %1133 = vmatprep.subr.mxu0 0.0
    %1134 = vmatpush1.msra.mxu0 0.0
    %1135 = vmatprep.subr.mxu0 0.0
    %1136 = vmatpush1.msra.mxu0 0.0
    %1137 = vmatprep.subr.mxu0 0.0
    %1138 = vmatpush1.msra.mxu0 0.0
    %1139 = vmatprep.subr.mxu0 0.0
    %1140 = vmatpush1.msra.mxu0 0.0
    %1141 = vmatprep.subr.mxu0 0.0
    %1142 = vmatpush1.msra.mxu0 0.0
    %1143 = vmatprep.subr.mxu0 0.0
    %1144 = vmatpush1.msra.mxu0 0.0
    %1145 = vmatprep.subr.mxu0 0.0
    %1146 = vmatpush1.msra.mxu0 0.0
    %1147 = vmatprep.subr.mxu0 0.0
    %1148 = vmatpush1.msra.mxu0 0.0
    %1149 = vmatprep.subr.mxu0 0.0
    %1150 = vmatpush1.msra.mxu0 0.0
    %1151 = vmatprep.subr.mxu0 0.0
    %1152 = vmatpush1.msra.mxu0 0.0
    %1153 = vmatprep.subr.mxu0 0.0
    %1154 = vmatpush1.msra.mxu0 0.0
    %1155 = vmatprep.subr.mxu0 0.0
    %1156 = vmatpush1.msra.mxu0 0.0
    %1157 = vmatprep.subr.mxu0 0.0
    %1158 = vmatpush1.msra.mxu0 0.0
    %1159 = vmatprep.subr.mxu0 0.0
    %1160 = vmatpush1.msra.mxu0 0.0
    %1161 = vmatprep.subr.mxu0 0.0
    %1162 = vmatpush1.msra.mxu0 0.0
    %1163 = vmatprep.subr.mxu0 0.0
    %1164 = vmatpush1.msra.mxu0 0.0
    %1165 = vmatprep.subr.mxu0 0.0
    %1166 = vmatpush1.msra.mxu0 0.0
    %1167 = vmatprep.mubr.f32.mxu0 0.0
    %1168 = vmatmul.mubr.f32.gmra.mrb[0].mxu0 %v1101
    %v1169 = vpop.f32.mrb[0].mxu0
    %v1170 = vadd.f32 0.0, %v1169
    %v1171 = vpop.f32.mrb[0].mxu0
    %v1172 = vadd.f32 0.0, %v1171
    %1173 = vdwg.mxu0
    %v1175 = vrot.slane %v1170, 4
    %v1177 = vadd.f32 %v216, %v1175
    %v1179 = vrot.slane %v1172, 6
    %v1181 = vadd.f32 %v215, %v1179
    %v1182 = vxor.u32 %v1177, 2147483648
    %v1183 = vmul.f32 %v1182, 1.442695
    %v1184 = vpow.pop %v1183
    %v1185 = vadd.f32 %v1184, 1.0
    %v1186 = vrcp.pop %v1185
    %v1187 = vmul.f32 1.0, %v1186
    %v1188 = vtanh.pop %v1177
    %v1190 = vrot.slane %v1055, 6
    %v1192 = vmul.f32 %v1187, %v1190
    %1194 = vrot.lane.b32.xlu0 %v1188, 32
    %v1195 = vpop.permute.xlu0 %1194
    %v1197 = vmul.f32 %v1187, %v1195
    %1199 = vrot.lane.b32.xlu0 %v1197, 32
    %v1200 = vpop.permute.xlu0 %1199
    %v1202 = vadd.f32 %v1192, %v1200
    %v1203 = vtanh.pop %v1202
    %1205 = vrot.lane.b32.xlu0 %v1203, 32
    %v1206 = vpop.permute.xlu0 %1205
    %v1208 = vmul.f32 %v1187, %v1206
    %v1209 = vxor.u32 %v1181, 2147483648
    %v1210 = vmul.f32 %v1209, 1.442695
    %v1211 = vpow.pop %v1210
    %v1212 = vadd.f32 %v1211, 1.0
    %v1213 = vrcp.pop %v1212
    %v1214 = vmul.f32 1.0, %v1213
    %v1215 = vtanh.pop %v1181
    %v1217 = vrot.slane %v1082, 2
    %v1219 = vmul.f32 %v1214, %v1217
    %1221 = vrot.lane.b32.xlu0 %v1215, 32
    %v1222 = vpop.permute.xlu0 %1221
    %v1224 = vmul.f32 %v1214, %v1222
    %1226 = vrot.lane.b32.xlu0 %v1224, 32
    %v1227 = vpop.permute.xlu0 %1226
    %v1229 = vadd.f32 %v1219, %v1227
    %v1230 = vtanh.pop %v1229
    %1232 = vrot.lane.b32.xlu0 %v1230, 32
    %v1233 = vpop.permute.xlu0 %1232
    %v1235 = vmul.f32 %v1214, %v1233
    %1237 = vrot.lane.b32.xlu0 %v1208, 64
    %v1238 = vpop.permute.xlu0 %1237
    %v1241 = vrot.slane %v1235, 6
    %1242 = vrot.lane.b32.xlu0 %v1241, 96
    %v1243 = vpop.permute.xlu0 %1242
    %v1245 = vsel %vm118, %v1238, %v1243
    %v1247 = vrot.slane %v1245, 4
    %v1248 = vsel %vm234, %v1247, 0
    %1250 = vmatprep.subr.mxu0 %v219
    %1251 = vmatpush1.msra.mxu0 %v218
    %1252 = vmatprep.subr.mxu0 %v221
    %1253 = vmatpush1.msra.mxu0 %v220
    %1254 = vmatprep.subr.mxu0 %v223
    %1255 = vmatpush1.msra.mxu0 %v222
    %1256 = vmatprep.subr.mxu0 %v225
    %1257 = vmatpush1.msra.mxu0 %v224
    %1258 = vmatprep.subr.mxu0 %v227
    %1259 = vmatpush1.msra.mxu0 %v226
    %1260 = vmatprep.subr.mxu0 %v229
    %1261 = vmatpush1.msra.mxu0 %v228
    %1262 = vmatprep.subr.mxu0 %v231
    %1263 = vmatpush1.msra.mxu0 %v230
    %1264 = vmatprep.subr.mxu0 %v233
    %1265 = vmatpush1.msra.mxu0 %v232
    %1266 = vmatprep.subr.mxu0 0.0
    %1267 = vmatpush1.msra.mxu0 0.0
    %1268 = vmatprep.subr.mxu0 0.0
    %1269 = vmatpush1.msra.mxu0 0.0
    %1270 = vmatprep.subr.mxu0 0.0
    %1271 = vmatpush1.msra.mxu0 0.0
    %1272 = vmatprep.subr.mxu0 0.0
    %1273 = vmatpush1.msra.mxu0 0.0
    %1274 = vmatprep.subr.mxu0 0.0
    %1275 = vmatpush1.msra.mxu0 0.0
    %1276 = vmatprep.subr.mxu0 0.0
    %1277 = vmatpush1.msra.mxu0 0.0
    %1278 = vmatprep.subr.mxu0 0.0
    %1279 = vmatpush1.msra.mxu0 0.0
    %1280 = vmatprep.subr.mxu0 0.0
    %1281 = vmatpush1.msra.mxu0 0.0
    %1282 = vmatprep.subr.mxu0 0.0
    %1283 = vmatpush1.msra.mxu0 0.0
    %1284 = vmatprep.subr.mxu0 0.0
    %1285 = vmatpush1.msra.mxu0 0.0
    %1286 = vmatprep.subr.mxu0 0.0
    %1287 = vmatpush1.msra.mxu0 0.0
    %1288 = vmatprep.subr.mxu0 0.0
    %1289 = vmatpush1.msra.mxu0 0.0
    %1290 = vmatprep.subr.mxu0 0.0
    %1291 = vmatpush1.msra.mxu0 0.0
    %1292 = vmatprep.subr.mxu0 0.0
    %1293 = vmatpush1.msra.mxu0 0.0
    %1294 = vmatprep.subr.mxu0 0.0
    %1295 = vmatpush1.msra.mxu0 0.0
    %1296 = vmatprep.subr.mxu0 0.0
    %1297 = vmatpush1.msra.mxu0 0.0
    %1298 = vmatprep.subr.mxu0 0.0
    %1299 = vmatpush1.msra.mxu0 0.0
    %1300 = vmatprep.subr.mxu0 0.0
    %1301 = vmatpush1.msra.mxu0 0.0
    %1302 = vmatprep.subr.mxu0 0.0
    %1303 = vmatpush1.msra.mxu0 0.0
    %1304 = vmatprep.subr.mxu0 0.0
    %1305 = vmatpush1.msra.mxu0 0.0
    %1306 = vmatprep.subr.mxu0 0.0
    %1307 = vmatpush1.msra.mxu0 0.0
    %1308 = vmatprep.subr.mxu0 0.0
    %1309 = vmatpush1.msra.mxu0 0.0
    %1310 = vmatprep.subr.mxu0 0.0
    %1311 = vmatpush1.msra.mxu0 0.0
    %1312 = vmatprep.subr.mxu0 0.0
    %1313 = vmatpush1.msra.mxu0 0.0
    %1314 = vmatprep.mubr.f32.mxu0 0.0
    %1315 = vmatmul.mubr.f32.gmra.mrb[0].mxu0 %v1248
    %v1316 = vpop.f32.mrb[0].mxu0
    %v1317 = vadd.f32 0.0, %v1316
    %v1318 = vpop.f32.mrb[0].mxu0
    %v1319 = vadd.f32 0.0, %v1318
    %1320 = vdwg.mxu0
    %v1322 = vrot.slane %v1317, 2
    %v1324 = vadd.f32 %v216, %v1322
    %v1325 = vadd.f32 %v215, %v1319
    %v1326 = vxor.u32 %v1324, 2147483648
    %v1327 = vmul.f32 %v1326, 1.442695
    %v1328 = vpow.pop %v1327
    %v1329 = vadd.f32 %v1328, 1.0
    %v1330 = vrcp.pop %v1329
    %v1331 = vmul.f32 1.0, %v1330
    %v1332 = vtanh.pop %v1324
    %v1334 = vrot.slane %v1202, 6
    %v1336 = vmul.f32 %v1331, %v1334
    %1338 = vrot.lane.b32.xlu0 %v1332, 32
    %v1339 = vpop.permute.xlu0 %1338
    %v1341 = vmul.f32 %v1331, %v1339
    %1343 = vrot.lane.b32.xlu0 %v1341, 32
    %v1344 = vpop.permute.xlu0 %1343
    %v1346 = vadd.f32 %v1336, %v1344
    %v1347 = vtanh.pop %v1346
    %1349 = vrot.lane.b32.xlu0 %v1347, 32
    %v1350 = vpop.permute.xlu0 %1349
    %v1352 = vmul.f32 %v1331, %v1350
    %v1353 = vxor.u32 %v1325, 2147483648
    %v1354 = vmul.f32 %v1353, 1.442695
    %v1355 = vpow.pop %v1354
    %v1356 = vadd.f32 %v1355, 1.0
    %v1357 = vrcp.pop %v1356
    %v1358 = vmul.f32 1.0, %v1357
    %v1359 = vtanh.pop %v1325
    %v1361 = vrot.slane %v1229, 2
    %v1363 = vmul.f32 %v1358, %v1361
    %1365 = vrot.lane.b32.xlu0 %v1359, 32
    %v1366 = vpop.permute.xlu0 %1365
    %v1368 = vmul.f32 %v1358, %v1366
    %1370 = vrot.lane.b32.xlu0 %v1368, 32
    %v1371 = vpop.permute.xlu0 %1370
    %v1373 = vadd.f32 %v1363, %v1371
    %v1374 = vtanh.pop %v1373
    %1376 = vrot.lane.b32.xlu0 %v1374, 32
    %v1377 = vpop.permute.xlu0 %1376
    %v1379 = vmul.f32 %v1358, %v1377
    %vm1380 = vcmask 1041408
    %v1381 = vsel %vm1380, %v337, %v480
    %vm1382 = vcmask 1043456
    %v1383 = vsel %vm1382, %v1381, %v627
    %vm1384 = vcmask 1045504
    %v1385 = vsel %vm1384, %v1383, %v771
    %v1386 = vsel %vm1380, %v915, %v1061
    %v1387 = vsel %vm1382, %v1386, %v1208
    %v1388 = vsel %vm1384, %v1387, %v1352
    %v1389 = vsel %vm1380, %v1379, %v1235
    %v1390 = vsel %vm1382, %v1389, %v1088
    %v1391 = vsel %vm1384, %v1390, %v942
    %v1392 = vsel %vm1380, %v798, %v654
    %v1393 = vsel %vm1382, %v1392, %v507
    %v1394 = vsel %vm1384, %v1393, %v361
    %1397 = vrot.lane.b32.xlu0 %v1385, 64
    %v1398 = vpop.permute.xlu0 %1397
    %1399 = vrot.lane.b32.xlu0 %v1388, 64
    %v1400 = vpop.permute.xlu0 %1399
    %1405 = vrot.lane.b32.xlu0 %v1391, 96
    %v1406 = vpop.permute.xlu0 %1405
    %1407 = vrot.lane.b32.xlu0 %v1394, 96
    %v1408 = vpop.permute.xlu0 %1407
    %v1411 = vsel %vm118, %v1398, %v1406
    %v1412 = vsel %vm118, %v1400, %v1408
    %v1413 = vld [vmem:[#allocation5] sm:$0xff]
    %v1414 = vld [vmem:[#allocation5 + $0x8] sm:$0xff]
    %v1415 = vld [vmem:[#allocation5 + $0x10] sm:$0xff]
    %v1416 = vld [vmem:[#allocation5 + $0x18] sm:$0xff]
    %v1417 = vld [vmem:[#allocation5 + $0x20] sm:$0xff]
    %v1418 = vld [vmem:[#allocation5 + $0x28] sm:$0xff]
    %v1419 = vld [vmem:[#allocation5 + $0x30] sm:$0xff]
    %v1420 = vld [vmem:[#allocation5 + $0x38] sm:$0xff]
    %v1421 = vld [vmem:[#allocation5 + $0x40] sm:$0xff]
    %v1422 = vld [vmem:[#allocation5 + $0x48] sm:$0xff]
    %v1423 = vld [vmem:[#allocation5 + $0x50] sm:$0xff]
    %v1424 = vld [vmem:[#allocation5 + $0x58] sm:$0xff]
    %v1425 = vld [vmem:[#allocation5 + $0x60] sm:$0xff]
    %v1426 = vld [vmem:[#allocation5 + $0x68] sm:$0xff]
    %v1427 = vld [vmem:[#allocation5 + $0x70] sm:$0xff]
    %v1428 = vld [vmem:[#allocation5 + $0x78] sm:$0xff]
    %v1429 = vld [vmem:[%s7] sm:$0x3]
    %v1431 = vlaneseq
    %v1432 = vshrl.u32 %v1431, 7
    %v1433 = vsub.s32 0, %v1432
    %v1434 = vrot.slane %v1429, %v1433
    %v1435 = vlaneseq
    %v1436 = vshrl.u32 %v1435, 7
    %v1437 = vsub.s32 1, %v1436
    %v1438 = vrot.slane %v1429, %v1437
    %v1442 = vsel %vm234, %v1411, 0
    %v1445 = vsel %vm234, %v1412, 0
    %1447 = vmatprep.subr.mxu0 %v1414
    %1448 = vmatpush1.msra.mxu0 %v1413
    %1449 = vmatprep.subr.mxu0 %v1416
    %1450 = vmatpush1.msra.mxu0 %v1415
    %1451 = vmatprep.subr.mxu0 %v1418
    %1452 = vmatpush1.msra.mxu0 %v1417
    %1453 = vmatprep.subr.mxu0 %v1420
    %1454 = vmatpush1.msra.mxu0 %v1419
    %1455 = vmatprep.subr.mxu0 %v1422
    %1456 = vmatpush1.msra.mxu0 %v1421
    %1457 = vmatprep.subr.mxu0 %v1424
    %1458 = vmatpush1.msra.mxu0 %v1423
    %1459 = vmatprep.subr.mxu0 %v1426
    %1460 = vmatpush1.msra.mxu0 %v1425
    %1461 = vmatprep.subr.mxu0 %v1428
    %1462 = vmatpush1.msra.mxu0 %v1427
    %1463 = vmatprep.subr.mxu0 0.0
    %1464 = vmatpush1.msra.mxu0 0.0
    %1465 = vmatprep.subr.mxu0 0.0
    %1466 = vmatpush1.msra.mxu0 0.0
    %1467 = vmatprep.subr.mxu0 0.0
    %1468 = vmatpush1.msra.mxu0 0.0
    %1469 = vmatprep.subr.mxu0 0.0
    %1470 = vmatpush1.msra.mxu0 0.0
    %1471 = vmatprep.subr.mxu0 0.0
    %1472 = vmatpush1.msra.mxu0 0.0
    %1473 = vmatprep.subr.mxu0 0.0
    %1474 = vmatpush1.msra.mxu0 0.0
    %1475 = vmatprep.subr.mxu0 0.0
    %1476 = vmatpush1.msra.mxu0 0.0
    %1477 = vmatprep.subr.mxu0 0.0
    %1478 = vmatpush1.msra.mxu0 0.0
    %1479 = vmatprep.subr.mxu0 0.0
    %1480 = vmatpush1.msra.mxu0 0.0
    %1481 = vmatprep.subr.mxu0 0.0
    %1482 = vmatpush1.msra.mxu0 0.0
    %1483 = vmatprep.subr.mxu0 0.0
    %1484 = vmatpush1.msra.mxu0 0.0
    %1485 = vmatprep.subr.mxu0 0.0
    %1486 = vmatpush1.msra.mxu0 0.0
    %1487 = vmatprep.subr.mxu0 0.0
    %1488 = vmatpush1.msra.mxu0 0.0
    %1489 = vmatprep.subr.mxu0 0.0
    %1490 = vmatpush1.msra.mxu0 0.0
    %1491 = vmatprep.subr.mxu0 0.0
    %1492 = vmatpush1.msra.mxu0 0.0
    %1493 = vmatprep.subr.mxu0 0.0
    %1494 = vmatpush1.msra.mxu0 0.0
    %1495 = vmatprep.subr.mxu0 0.0
    %1496 = vmatpush1.msra.mxu0 0.0
    %1497 = vmatprep.subr.mxu0 0.0
    %1498 = vmatpush1.msra.mxu0 0.0
    %1499 = vmatprep.subr.mxu0 0.0
    %1500 = vmatpush1.msra.mxu0 0.0
    %1501 = vmatprep.subr.mxu0 0.0
    %1502 = vmatpush1.msra.mxu0 0.0
    %1503 = vmatprep.subr.mxu0 0.0
    %1504 = vmatpush1.msra.mxu0 0.0
    %1505 = vmatprep.subr.mxu0 0.0
    %1506 = vmatpush1.msra.mxu0 0.0
    %1507 = vmatprep.subr.mxu0 0.0
    %1508 = vmatpush1.msra.mxu0 0.0
    %1509 = vmatprep.subr.mxu0 0.0
    %1510 = vmatpush1.msra.mxu0 0.0
    %1511 = vmatprep.mubr.f32.mxu0 0.0
    %1512 = vmatmul.mubr.f32.gmra.mrb[0].mxu0 %v1442
    %v1513 = vpop.f32.mrb[0].mxu0
    %v1514 = vadd.f32 %v1434, %v1513
    %v1515 = vpop.f32.mrb[0].mxu0
    %v1516 = vadd.f32 %v1438, %v1515
    %1517 = vmatprep.mubr.f32.mxu0 0.0
    %1518 = vmatmul.mubr.f32.gmra.mrb[0].mxu0 %v1445
    %v1519 = vpop.f32.mrb[0].mxu0
    %v1520 = vadd.f32 %v1434, %v1519
    %v1521 = vpop.f32.mrb[0].mxu0
    %v1522 = vadd.f32 %v1438, %v1521
    %1523 = vdwg.mxu0
    %v1524 = vld [vmem:[#allocation7] sm:$0xff]
    %v1525 = vld [vmem:[#allocation7 + $0x8] sm:$0xff]
    %v1526 = vld [vmem:[#allocation7 + $0x10] sm:$0xff]
    %v1527 = vld [vmem:[#allocation7 + $0x18] sm:$0xff]
    %v1528 = vld [vmem:[#allocation7 + $0x20] sm:$0xff]
    %v1529 = vld [vmem:[#allocation7 + $0x28] sm:$0xff]
    %v1530 = vld [vmem:[#allocation7 + $0x30] sm:$0xff]
    %v1531 = vld [vmem:[#allocation7 + $0x38] sm:$0xff]
    %v1532 = vld [vmem:[#allocation7 + $0x40] sm:$0xff]
    %v1533 = vld [vmem:[#allocation7 + $0x48] sm:$0xff]
    %v1534 = vld [vmem:[#allocation7 + $0x50] sm:$0xff]
    %v1535 = vld [vmem:[#allocation7 + $0x58] sm:$0xff]
    %v1536 = vld [vmem:[#allocation7 + $0x60] sm:$0xff]
    %v1537 = vld [vmem:[#allocation7 + $0x68] sm:$0xff]
    %v1538 = vld [vmem:[#allocation7 + $0x70] sm:$0xff]
    %v1539 = vld [vmem:[#allocation7 + $0x78] sm:$0xff]
    %1540 = vmatprep.subr.mxu0 %v1525
    %1541 = vmatpush1.msra.mxu0 %v1524
    %1542 = vmatprep.subr.mxu0 %v1527
    %1543 = vmatpush1.msra.mxu0 %v1526
    %1544 = vmatprep.subr.mxu0 %v1529
    %1545 = vmatpush1.msra.mxu0 %v1528
    %1546 = vmatprep.subr.mxu0 %v1531
    %1547 = vmatpush1.msra.mxu0 %v1530
    %1548 = vmatprep.subr.mxu0 %v1533
    %1549 = vmatpush1.msra.mxu0 %v1532
    %1550 = vmatprep.subr.mxu0 %v1535
    %1551 = vmatpush1.msra.mxu0 %v1534
    %1552 = vmatprep.subr.mxu0 %v1537
    %1553 = vmatpush1.msra.mxu0 %v1536
    %1554 = vmatprep.subr.mxu0 %v1539
    %1555 = vmatpush1.msra.mxu0 %v1538
    %1556 = vmatprep.subr.mxu0 0.0
    %1557 = vmatpush1.msra.mxu0 0.0
    %1558 = vmatprep.subr.mxu0 0.0
    %1559 = vmatpush1.msra.mxu0 0.0
    %1560 = vmatprep.subr.mxu0 0.0
    %1561 = vmatpush1.msra.mxu0 0.0
    %1562 = vmatprep.subr.mxu0 0.0
    %1563 = vmatpush1.msra.mxu0 0.0
    %1564 = vmatprep.subr.mxu0 0.0
    %1565 = vmatpush1.msra.mxu0 0.0
    %1566 = vmatprep.subr.mxu0 0.0
    %1567 = vmatpush1.msra.mxu0 0.0
    %1568 = vmatprep.subr.mxu0 0.0
    %1569 = vmatpush1.msra.mxu0 0.0
    %1570 = vmatprep.subr.mxu0 0.0
    %1571 = vmatpush1.msra.mxu0 0.0
    %1572 = vmatprep.subr.mxu0 0.0
    %1573 = vmatpush1.msra.mxu0 0.0
    %1574 = vmatprep.subr.mxu0 0.0
    %1575 = vmatpush1.msra.mxu0 0.0
    %1576 = vmatprep.subr.mxu0 0.0
    %1577 = vmatpush1.msra.mxu0 0.0
    %1578 = vmatprep.subr.mxu0 0.0
    %1579 = vmatpush1.msra.mxu0 0.0
    %1580 = vmatprep.subr.mxu0 0.0
    %1581 = vmatpush1.msra.mxu0 0.0
    %1582 = vmatprep.subr.mxu0 0.0
    %1583 = vmatpush1.msra.mxu0 0.0
    %1584 = vmatprep.subr.mxu0 0.0
    %1585 = vmatpush1.msra.mxu0 0.0
    %1586 = vmatprep.subr.mxu0 0.0
    %1587 = vmatpush1.msra.mxu0 0.0
    %1588 = vmatprep.subr.mxu0 0.0
    %1589 = vmatpush1.msra.mxu0 0.0
    %1590 = vmatprep.subr.mxu0 0.0
    %1591 = vmatpush1.msra.mxu0 0.0
    %1592 = vmatprep.subr.mxu0 0.0
    %1593 = vmatpush1.msra.mxu0 0.0
    %1594 = vmatprep.subr.mxu0 0.0
    %1595 = vmatpush1.msra.mxu0 0.0
    %1596 = vmatprep.subr.mxu0 0.0
    %1597 = vmatpush1.msra.mxu0 0.0
    %1598 = vmatprep.subr.mxu0 0.0
    %1599 = vmatpush1.msra.mxu0 0.0
    %1600 = vmatprep.subr.mxu0 0.0
    %1601 = vmatpush1.msra.mxu0 0.0
    %1602 = vmatprep.subr.mxu0 0.0
    %1603 = vmatpush1.msra.mxu0 0.0
    %1604 = vmatprep.mubr.f32.mxu0 0.0
    %1605 = vmatmul.mubr.f32.gmra.mrb[0].mxu0 %v236
    %v1606 = vpop.f32.mrb[0].mxu0
    %v1607 = vadd.f32 0.0, %v1606
    %v1608 = vpop.f32.mrb[0].mxu0
    %v1609 = vadd.f32 0.0, %v1608
    %1610 = vdwg.mxu0
    %v1611 = vadd.f32 %v1514, %v1607
    %v1613 = vrot.slane %v1609, 2
    %v1615 = vadd.f32 %v1522, %v1613
    %v1616 = vxor.u32 %v1611, 2147483648
    %v1617 = vmul.f32 %v1616, 1.442695
    %v1618 = vpow.pop %v1617
    %v1619 = vadd.f32 %v1618, 1.0
    %v1620 = vrcp.pop %v1619
    %v1621 = vmul.f32 1.0, %v1620
    %v1622 = vtanh.pop %v1611
    %v1623 = vmul.f32 %v1621, 0.0
    %1625 = vrot.lane.b32.xlu0 %v1622, 32
    %v1626 = vpop.permute.xlu0 %1625
    %v1628 = vmul.f32 %v1621, %v1626
    %1630 = vrot.lane.b32.xlu0 %v1628, 32
    %v1631 = vpop.permute.xlu0 %1630
    %v1633 = vadd.f32 %v1623, %v1631
    %v1634 = vtanh.pop %v1633
    %1636 = vrot.lane.b32.xlu0 %v1634, 32
    %v1637 = vpop.permute.xlu0 %1636
    %v1639 = vmul.f32 %v1621, %v1637
    %v1640 = vxor.u32 %v1615, 2147483648
    %v1641 = vmul.f32 %v1640, 1.442695
    %v1642 = vpow.pop %v1641
    %v1643 = vadd.f32 %v1642, 1.0
    %v1644 = vrcp.pop %v1643
    %v1645 = vmul.f32 1.0, %v1644
    %v1646 = vtanh.pop %v1615
    %v1647 = vmul.f32 %v1645, 0.0
    %1649 = vrot.lane.b32.xlu0 %v1646, 32
    %v1650 = vpop.permute.xlu0 %1649
    %v1652 = vmul.f32 %v1645, %v1650
    %1654 = vrot.lane.b32.xlu0 %v1652, 32
    %v1655 = vpop.permute.xlu0 %1654
    %v1657 = vadd.f32 %v1647, %v1655
    %v1658 = vtanh.pop %v1657
    %1660 = vrot.lane.b32.xlu0 %v1658, 32
    %v1661 = vpop.permute.xlu0 %1660
    %v1663 = vmul.f32 %v1645, %v1661
    %1665 = vrot.lane.b32.xlu0 %v1639, 64
    %v1666 = vpop.permute.xlu0 %1665
    %v1669 = vrot.slane %v1663, 6
    %1670 = vrot.lane.b32.xlu0 %v1669, 96
    %v1671 = vpop.permute.xlu0 %1670
    %v1673 = vsel %vm118, %v1666, %v1671
    %v1675 = vsel %vm234, %v1673, 0
    %1677 = vmatprep.subr.mxu0 %v1525
    %1678 = vmatpush1.msra.mxu0 %v1524
    %1679 = vmatprep.subr.mxu0 %v1527
    %1680 = vmatpush1.msra.mxu0 %v1526
    %1681 = vmatprep.subr.mxu0 %v1529
    %1682 = vmatpush1.msra.mxu0 %v1528
    %1683 = vmatprep.subr.mxu0 %v1531
    %1684 = vmatpush1.msra.mxu0 %v1530
    %1685 = vmatprep.subr.mxu0 %v1533
    %1686 = vmatpush1.msra.mxu0 %v1532
    %1687 = vmatprep.subr.mxu0 %v1535
    %1688 = vmatpush1.msra.mxu0 %v1534
    %1689 = vmatprep.subr.mxu0 %v1537
    %1690 = vmatpush1.msra.mxu0 %v1536
    %1691 = vmatprep.subr.mxu0 %v1539
    %1692 = vmatpush1.msra.mxu0 %v1538
    %1693 = vmatprep.subr.mxu0 0.0
    %1694 = vmatpush1.msra.mxu0 0.0
    %1695 = vmatprep.subr.mxu0 0.0
    %1696 = vmatpush1.msra.mxu0 0.0
    %1697 = vmatprep.subr.mxu0 0.0
    %1698 = vmatpush1.msra.mxu0 0.0
    %1699 = vmatprep.subr.mxu0 0.0
    %1700 = vmatpush1.msra.mxu0 0.0
    %1701 = vmatprep.subr.mxu0 0.0
    %1702 = vmatpush1.msra.mxu0 0.0
    %1703 = vmatprep.subr.mxu0 0.0
    %1704 = vmatpush1.msra.mxu0 0.0
    %1705 = vmatprep.subr.mxu0 0.0
    %1706 = vmatpush1.msra.mxu0 0.0
    %1707 = vmatprep.subr.mxu0 0.0
    %1708 = vmatpush1.msra.mxu0 0.0
    %1709 = vmatprep.subr.mxu0 0.0
    %1710 = vmatpush1.msra.mxu0 0.0
    %1711 = vmatprep.subr.mxu0 0.0
    %1712 = vmatpush1.msra.mxu0 0.0
    %1713 = vmatprep.subr.mxu0 0.0
    %1714 = vmatpush1.msra.mxu0 0.0
    %1715 = vmatprep.subr.mxu0 0.0
    %1716 = vmatpush1.msra.mxu0 0.0
    %1717 = vmatprep.subr.mxu0 0.0
    %1718 = vmatpush1.msra.mxu0 0.0
    %1719 = vmatprep.subr.mxu0 0.0
    %1720 = vmatpush1.msra.mxu0 0.0
    %1721 = vmatprep.subr.mxu0 0.0
    %1722 = vmatpush1.msra.mxu0 0.0
    %1723 = vmatprep.subr.mxu0 0.0
    %1724 = vmatpush1.msra.mxu0 0.0
    %1725 = vmatprep.subr.mxu0 0.0
    %1726 = vmatpush1.msra.mxu0 0.0
    %1727 = vmatprep.subr.mxu0 0.0
    %1728 = vmatpush1.msra.mxu0 0.0
    %1729 = vmatprep.subr.mxu0 0.0
    %1730 = vmatpush1.msra.mxu0 0.0
    %1731 = vmatprep.subr.mxu0 0.0
    %1732 = vmatpush1.msra.mxu0 0.0
    %1733 = vmatprep.subr.mxu0 0.0
    %1734 = vmatpush1.msra.mxu0 0.0
    %1735 = vmatprep.subr.mxu0 0.0
    %1736 = vmatpush1.msra.mxu0 0.0
    %1737 = vmatprep.subr.mxu0 0.0
    %1738 = vmatpush1.msra.mxu0 0.0
    %1739 = vmatprep.subr.mxu0 0.0
    %1740 = vmatpush1.msra.mxu0 0.0
    %1741 = vmatprep.mubr.f32.mxu0 0.0
    %1742 = vmatmul.mubr.f32.gmra.mrb[0].mxu0 %v1675
    %v1743 = vpop.f32.mrb[0].mxu0
    %v1744 = vadd.f32 0.0, %v1743
    %v1745 = vpop.f32.mrb[0].mxu0
    %v1746 = vadd.f32 0.0, %v1745
    %1747 = vdwg.mxu0
    %v1749 = vrot.slane %v1744, 6
    %v1751 = vadd.f32 %v1514, %v1749
    %v1753 = vrot.slane %v1746, 4
    %v1755 = vadd.f32 %v1522, %v1753
    %v1756 = vxor.u32 %v1751, 2147483648
    %v1757 = vmul.f32 %v1756, 1.442695
    %v1758 = vpow.pop %v1757
    %v1759 = vadd.f32 %v1758, 1.0
    %v1760 = vrcp.pop %v1759
    %v1761 = vmul.f32 1.0, %v1760
    %v1762 = vtanh.pop %v1751
    %v1764 = vrot.slane %v1633, 6
    %v1766 = vmul.f32 %v1761, %v1764
    %1768 = vrot.lane.b32.xlu0 %v1762, 32
    %v1769 = vpop.permute.xlu0 %1768
    %v1771 = vmul.f32 %v1761, %v1769
    %1773 = vrot.lane.b32.xlu0 %v1771, 32
    %v1774 = vpop.permute.xlu0 %1773
    %v1776 = vadd.f32 %v1766, %v1774
    %v1777 = vtanh.pop %v1776
    %1779 = vrot.lane.b32.xlu0 %v1777, 32
    %v1780 = vpop.permute.xlu0 %1779
    %v1782 = vmul.f32 %v1761, %v1780
    %v1783 = vxor.u32 %v1755, 2147483648
    %v1784 = vmul.f32 %v1783, 1.442695
    %v1785 = vpow.pop %v1784
    %v1786 = vadd.f32 %v1785, 1.0
    %v1787 = vrcp.pop %v1786
    %v1788 = vmul.f32 1.0, %v1787
    %v1789 = vtanh.pop %v1755
    %v1791 = vrot.slane %v1657, 2
    %v1793 = vmul.f32 %v1788, %v1791
    %1795 = vrot.lane.b32.xlu0 %v1789, 32
    %v1796 = vpop.permute.xlu0 %1795
    %v1798 = vmul.f32 %v1788, %v1796
    %1800 = vrot.lane.b32.xlu0 %v1798, 32
    %v1801 = vpop.permute.xlu0 %1800
    %v1803 = vadd.f32 %v1793, %v1801
    %v1804 = vtanh.pop %v1803
    %1806 = vrot.lane.b32.xlu0 %v1804, 32
    %v1807 = vpop.permute.xlu0 %1806
    %v1809 = vmul.f32 %v1788, %v1807
    %1811 = vrot.lane.b32.xlu0 %v1782, 64
    %v1812 = vpop.permute.xlu0 %1811
    %v1815 = vrot.slane %v1809, 2
    %1816 = vrot.lane.b32.xlu0 %v1815, 96
    %v1817 = vpop.permute.xlu0 %1816
    %v1819 = vsel %vm118, %v1812, %v1817
    %v1821 = vrot.slane %v1819, 2
    %v1822 = vsel %vm234, %v1821, 0
    %1824 = vmatprep.subr.mxu0 %v1525
    %1825 = vmatpush1.msra.mxu0 %v1524
    %1826 = vmatprep.subr.mxu0 %v1527
    %1827 = vmatpush1.msra.mxu0 %v1526
    %1828 = vmatprep.subr.mxu0 %v1529
    %1829 = vmatpush1.msra.mxu0 %v1528
    %1830 = vmatprep.subr.mxu0 %v1531
    %1831 = vmatpush1.msra.mxu0 %v1530
    %1832 = vmatprep.subr.mxu0 %v1533
    %1833 = vmatpush1.msra.mxu0 %v1532
    %1834 = vmatprep.subr.mxu0 %v1535
    %1835 = vmatpush1.msra.mxu0 %v1534
    %1836 = vmatprep.subr.mxu0 %v1537
    %1837 = vmatpush1.msra.mxu0 %v1536
    %1838 = vmatprep.subr.mxu0 %v1539
    %1839 = vmatpush1.msra.mxu0 %v1538
    %1840 = vmatprep.subr.mxu0 0.0
    %1841 = vmatpush1.msra.mxu0 0.0
    %1842 = vmatprep.subr.mxu0 0.0
    %1843 = vmatpush1.msra.mxu0 0.0
    %1844 = vmatprep.subr.mxu0 0.0
    %1845 = vmatpush1.msra.mxu0 0.0
    %1846 = vmatprep.subr.mxu0 0.0
    %1847 = vmatpush1.msra.mxu0 0.0
    %1848 = vmatprep.subr.mxu0 0.0
    %1849 = vmatpush1.msra.mxu0 0.0
    %1850 = vmatprep.subr.mxu0 0.0
    %1851 = vmatpush1.msra.mxu0 0.0
    %1852 = vmatprep.subr.mxu0 0.0
    %1853 = vmatpush1.msra.mxu0 0.0
    %1854 = vmatprep.subr.mxu0 0.0
    %1855 = vmatpush1.msra.mxu0 0.0
    %1856 = vmatprep.subr.mxu0 0.0
    %1857 = vmatpush1.msra.mxu0 0.0
    %1858 = vmatprep.subr.mxu0 0.0
    %1859 = vmatpush1.msra.mxu0 0.0
    %1860 = vmatprep.subr.mxu0 0.0
    %1861 = vmatpush1.msra.mxu0 0.0
    %1862 = vmatprep.subr.mxu0 0.0
    %1863 = vmatpush1.msra.mxu0 0.0
    %1864 = vmatprep.subr.mxu0 0.0
    %1865 = vmatpush1.msra.mxu0 0.0
    %1866 = vmatprep.subr.mxu0 0.0
    %1867 = vmatpush1.msra.mxu0 0.0
    %1868 = vmatprep.subr.mxu0 0.0
    %1869 = vmatpush1.msra.mxu0 0.0
    %1870 = vmatprep.subr.mxu0 0.0
    %1871 = vmatpush1.msra.mxu0 0.0
    %1872 = vmatprep.subr.mxu0 0.0
    %1873 = vmatpush1.msra.mxu0 0.0
    %1874 = vmatprep.subr.mxu0 0.0
    %1875 = vmatpush1.msra.mxu0 0.0
    %1876 = vmatprep.subr.mxu0 0.0
    %1877 = vmatpush1.msra.mxu0 0.0
    %1878 = vmatprep.subr.mxu0 0.0
    %1879 = vmatpush1.msra.mxu0 0.0
    %1880 = vmatprep.subr.mxu0 0.0
    %1881 = vmatpush1.msra.mxu0 0.0
    %1882 = vmatprep.subr.mxu0 0.0
    %1883 = vmatpush1.msra.mxu0 0.0
    %1884 = vmatprep.subr.mxu0 0.0
    %1885 = vmatpush1.msra.mxu0 0.0
    %1886 = vmatprep.subr.mxu0 0.0
    %1887 = vmatpush1.msra.mxu0 0.0
    %1888 = vmatprep.mubr.f32.mxu0 0.0
    %1889 = vmatmul.mubr.f32.gmra.mrb[0].mxu0 %v1822
    %v1890 = vpop.f32.mrb[0].mxu0
    %v1891 = vadd.f32 0.0, %v1890
    %v1892 = vpop.f32.mrb[0].mxu0
    %v1893 = vadd.f32 0.0, %v1892
    %1894 = vdwg.mxu0
    %v1896 = vrot.slane %v1891, 4
    %v1898 = vadd.f32 %v1514, %v1896
    %v1900 = vrot.slane %v1893, 6
    %v1902 = vadd.f32 %v1522, %v1900
    %v1903 = vxor.u32 %v1898, 2147483648
    %v1904 = vmul.f32 %v1903, 1.442695
    %v1905 = vpow.pop %v1904
    %v1906 = vadd.f32 %v1905, 1.0
    %v1907 = vrcp.pop %v1906
    %v1908 = vmul.f32 1.0, %v1907
    %v1909 = vtanh.pop %v1898
    %v1911 = vrot.slane %v1776, 6
    %v1913 = vmul.f32 %v1908, %v1911
    %1915 = vrot.lane.b32.xlu0 %v1909, 32
    %v1916 = vpop.permute.xlu0 %1915
    %v1918 = vmul.f32 %v1908, %v1916
    %1920 = vrot.lane.b32.xlu0 %v1918, 32
    %v1921 = vpop.permute.xlu0 %1920
    %v1923 = vadd.f32 %v1913, %v1921
    %v1924 = vtanh.pop %v1923
    %1926 = vrot.lane.b32.xlu0 %v1924, 32
    %v1927 = vpop.permute.xlu0 %1926
    %v1929 = vmul.f32 %v1908, %v1927
    %v1930 = vxor.u32 %v1902, 2147483648
    %v1931 = vmul.f32 %v1930, 1.442695
    %v1932 = vpow.pop %v1931
    %v1933 = vadd.f32 %v1932, 1.0
    %v1934 = vrcp.pop %v1933
    %v1935 = vmul.f32 1.0, %v1934
    %v1936 = vtanh.pop %v1902
    %v1938 = vrot.slane %v1803, 2
    %v1940 = vmul.f32 %v1935, %v1938
    %1942 = vrot.lane.b32.xlu0 %v1936, 32
    %v1943 = vpop.permute.xlu0 %1942
    %v1945 = vmul.f32 %v1935, %v1943
    %1947 = vrot.lane.b32.xlu0 %v1945, 32
    %v1948 = vpop.permute.xlu0 %1947
    %v1950 = vadd.f32 %v1940, %v1948
    %v1951 = vtanh.pop %v1950
    %1953 = vrot.lane.b32.xlu0 %v1951, 32
    %v1954 = vpop.permute.xlu0 %1953
    %v1956 = vmul.f32 %v1935, %v1954
    %1958 = vrot.lane.b32.xlu0 %v1929, 64
    %v1959 = vpop.permute.xlu0 %1958
    %v1962 = vrot.slane %v1956, 6
    %1963 = vrot.lane.b32.xlu0 %v1962, 96
    %v1964 = vpop.permute.xlu0 %1963
    %v1966 = vsel %vm118, %v1959, %v1964
    %v1968 = vrot.slane %v1966, 4
    %v1969 = vsel %vm234, %v1968, 0
    %1971 = vmatprep.subr.mxu0 %v1525
    %1972 = vmatpush1.msra.mxu0 %v1524
    %1973 = vmatprep.subr.mxu0 %v1527
    %1974 = vmatpush1.msra.mxu0 %v1526
    %1975 = vmatprep.subr.mxu0 %v1529
    %1976 = vmatpush1.msra.mxu0 %v1528
    %1977 = vmatprep.subr.mxu0 %v1531
    %1978 = vmatpush1.msra.mxu0 %v1530
    %1979 = vmatprep.subr.mxu0 %v1533
    %1980 = vmatpush1.msra.mxu0 %v1532
    %1981 = vmatprep.subr.mxu0 %v1535
    %1982 = vmatpush1.msra.mxu0 %v1534
    %1983 = vmatprep.subr.mxu0 %v1537
    %1984 = vmatpush1.msra.mxu0 %v1536
    %1985 = vmatprep.subr.mxu0 %v1539
    %1986 = vmatpush1.msra.mxu0 %v1538
    %1987 = vmatprep.subr.mxu0 0.0
    %1988 = vmatpush1.msra.mxu0 0.0
    %1989 = vmatprep.subr.mxu0 0.0
    %1990 = vmatpush1.msra.mxu0 0.0
    %1991 = vmatprep.subr.mxu0 0.0
    %1992 = vmatpush1.msra.mxu0 0.0
    %1993 = vmatprep.subr.mxu0 0.0
    %1994 = vmatpush1.msra.mxu0 0.0
    %1995 = vmatprep.subr.mxu0 0.0
    %1996 = vmatpush1.msra.mxu0 0.0
    %1997 = vmatprep.subr.mxu0 0.0
    %1998 = vmatpush1.msra.mxu0 0.0
    %1999 = vmatprep.subr.mxu0 0.0
    %2000 = vmatpush1.msra.mxu0 0.0
    %2001 = vmatprep.subr.mxu0 0.0
    %2002 = vmatpush1.msra.mxu0 0.0
    %2003 = vmatprep.subr.mxu0 0.0
    %2004 = vmatpush1.msra.mxu0 0.0
    %2005 = vmatprep.subr.mxu0 0.0
    %2006 = vmatpush1.msra.mxu0 0.0
    %2007 = vmatprep.subr.mxu0 0.0
    %2008 = vmatpush1.msra.mxu0 0.0
    %2009 = vmatprep.subr.mxu0 0.0
    %2010 = vmatpush1.msra.mxu0 0.0
    %2011 = vmatprep.subr.mxu0 0.0
    %2012 = vmatpush1.msra.mxu0 0.0
    %2013 = vmatprep.subr.mxu0 0.0
    %2014 = vmatpush1.msra.mxu0 0.0
    %2015 = vmatprep.subr.mxu0 0.0
    %2016 = vmatpush1.msra.mxu0 0.0
    %2017 = vmatprep.subr.mxu0 0.0
    %2018 = vmatpush1.msra.mxu0 0.0
    %2019 = vmatprep.subr.mxu0 0.0
    %2020 = vmatpush1.msra.mxu0 0.0
    %2021 = vmatprep.subr.mxu0 0.0
    %2022 = vmatpush1.msra.mxu0 0.0
    %2023 = vmatprep.subr.mxu0 0.0
    %2024 = vmatpush1.msra.mxu0 0.0
    %2025 = vmatprep.subr.mxu0 0.0
    %2026 = vmatpush1.msra.mxu0 0.0
    %2027 = vmatprep.subr.mxu0 0.0
    %2028 = vmatpush1.msra.mxu0 0.0
    %2029 = vmatprep.subr.mxu0 0.0
    %2030 = vmatpush1.msra.mxu0 0.0
    %2031 = vmatprep.subr.mxu0 0.0
    %2032 = vmatpush1.msra.mxu0 0.0
    %2033 = vmatprep.subr.mxu0 0.0
    %2034 = vmatpush1.msra.mxu0 0.0
    %2035 = vmatprep.mubr.f32.mxu0 0.0
    %2036 = vmatmul.mubr.f32.gmra.mrb[0].mxu0 %v1969
    %v2037 = vpop.f32.mrb[0].mxu0
    %v2038 = vadd.f32 0.0, %v2037
    %v2039 = vpop.f32.mrb[0].mxu0
    %v2040 = vadd.f32 0.0, %v2039
    %2041 = vdwg.mxu0
    %v2043 = vrot.slane %v2038, 2
    %v2045 = vadd.f32 %v1514, %v2043
    %v2046 = vadd.f32 %v1522, %v2040
    %v2047 = vxor.u32 %v2045, 2147483648
    %v2048 = vmul.f32 %v2047, 1.442695
    %v2049 = vpow.pop %v2048
    %v2050 = vadd.f32 %v2049, 1.0
    %v2051 = vrcp.pop %v2050
    %v2052 = vmul.f32 1.0, %v2051
    %v2053 = vtanh.pop %v2045
    %v2055 = vrot.slane %v1923, 6
    %v2057 = vmul.f32 %v2052, %v2055
    %2059 = vrot.lane.b32.xlu0 %v2053, 32
    %v2060 = vpop.permute.xlu0 %2059
    %v2062 = vmul.f32 %v2052, %v2060
    %2064 = vrot.lane.b32.xlu0 %v2062, 32
    %v2065 = vpop.permute.xlu0 %2064
    %v2067 = vadd.f32 %v2057, %v2065
    %v2068 = vtanh.pop %v2067
    %2070 = vrot.lane.b32.xlu0 %v2068, 32
    %v2071 = vpop.permute.xlu0 %2070
    %v2073 = vmul.f32 %v2052, %v2071
    %v2074 = vxor.u32 %v2046, 2147483648
    %v2075 = vmul.f32 %v2074, 1.442695
    %v2076 = vpow.pop %v2075
    %v2077 = vadd.f32 %v2076, 1.0
    %v2078 = vrcp.pop %v2077
    %v2079 = vmul.f32 1.0, %v2078
    %v2080 = vtanh.pop %v2046
    %v2082 = vrot.slane %v1950, 2
    %v2084 = vmul.f32 %v2079, %v2082
    %2086 = vrot.lane.b32.xlu0 %v2080, 32
    %v2087 = vpop.permute.xlu0 %2086
    %v2089 = vmul.f32 %v2079, %v2087
    %2091 = vrot.lane.b32.xlu0 %v2089, 32
    %v2092 = vpop.permute.xlu0 %2091
    %v2094 = vadd.f32 %v2084, %v2092
    %v2095 = vtanh.pop %v2094
    %2097 = vrot.lane.b32.xlu0 %v2095, 32
    %v2098 = vpop.permute.xlu0 %2097
    %v2100 = vmul.f32 %v2079, %v2098
    %2102 = vrot.lane.b32.xlu0 %v2073, 64
    %v2103 = vpop.permute.xlu0 %2102
    %v2106 = vrot.slane %v2100, 2
    %2107 = vrot.lane.b32.xlu0 %v2106, 96
    %v2108 = vpop.permute.xlu0 %2107
    %v2110 = vsel %vm118, %v2103, %v2108
    %v2112 = vrot.slane %v2110, 6
    %v2113 = vsel %vm234, %v2112, 0
    %2115 = vmatprep.subr.mxu0 %v1525
    %2116 = vmatpush1.msra.mxu0 %v1524
    %2117 = vmatprep.subr.mxu0 %v1527
    %2118 = vmatpush1.msra.mxu0 %v1526
    %2119 = vmatprep.subr.mxu0 %v1529
    %2120 = vmatpush1.msra.mxu0 %v1528
    %2121 = vmatprep.subr.mxu0 %v1531
    %2122 = vmatpush1.msra.mxu0 %v1530
    %2123 = vmatprep.subr.mxu0 %v1533
    %2124 = vmatpush1.msra.mxu0 %v1532
    %2125 = vmatprep.subr.mxu0 %v1535
    %2126 = vmatpush1.msra.mxu0 %v1534
    %2127 = vmatprep.subr.mxu0 %v1537
    %2128 = vmatpush1.msra.mxu0 %v1536
    %2129 = vmatprep.subr.mxu0 %v1539
    %2130 = vmatpush1.msra.mxu0 %v1538
    %2131 = vmatprep.subr.mxu0 0.0
    %2132 = vmatpush1.msra.mxu0 0.0
    %2133 = vmatprep.subr.mxu0 0.0
    %2134 = vmatpush1.msra.mxu0 0.0
    %2135 = vmatprep.subr.mxu0 0.0
    %2136 = vmatpush1.msra.mxu0 0.0
    %2137 = vmatprep.subr.mxu0 0.0
    %2138 = vmatpush1.msra.mxu0 0.0
    %2139 = vmatprep.subr.mxu0 0.0
    %2140 = vmatpush1.msra.mxu0 0.0
    %2141 = vmatprep.subr.mxu0 0.0
    %2142 = vmatpush1.msra.mxu0 0.0
    %2143 = vmatprep.subr.mxu0 0.0
    %2144 = vmatpush1.msra.mxu0 0.0
    %2145 = vmatprep.subr.mxu0 0.0
    %2146 = vmatpush1.msra.mxu0 0.0
    %2147 = vmatprep.subr.mxu0 0.0
    %2148 = vmatpush1.msra.mxu0 0.0
    %2149 = vmatprep.subr.mxu0 0.0
    %2150 = vmatpush1.msra.mxu0 0.0
    %2151 = vmatprep.subr.mxu0 0.0
    %2152 = vmatpush1.msra.mxu0 0.0
    %2153 = vmatprep.subr.mxu0 0.0
    %2154 = vmatpush1.msra.mxu0 0.0
    %2155 = vmatprep.subr.mxu0 0.0
    %2156 = vmatpush1.msra.mxu0 0.0
    %2157 = vmatprep.subr.mxu0 0.0
    %2158 = vmatpush1.msra.mxu0 0.0
    %2159 = vmatprep.subr.mxu0 0.0
    %2160 = vmatpush1.msra.mxu0 0.0
    %2161 = vmatprep.subr.mxu0 0.0
    %2162 = vmatpush1.msra.mxu0 0.0
    %2163 = vmatprep.subr.mxu0 0.0
    %2164 = vmatpush1.msra.mxu0 0.0
    %2165 = vmatprep.subr.mxu0 0.0
    %2166 = vmatpush1.msra.mxu0 0.0
    %2167 = vmatprep.subr.mxu0 0.0
    %2168 = vmatpush1.msra.mxu0 0.0
    %2169 = vmatprep.subr.mxu0 0.0
    %2170 = vmatpush1.msra.mxu0 0.0
    %2171 = vmatprep.subr.mxu0 0.0
    %2172 = vmatpush1.msra.mxu0 0.0
    %2173 = vmatprep.subr.mxu0 0.0
    %2174 = vmatpush1.msra.mxu0 0.0
    %2175 = vmatprep.subr.mxu0 0.0
    %2176 = vmatpush1.msra.mxu0 0.0
    %2177 = vmatprep.subr.mxu0 0.0
    %2178 = vmatpush1.msra.mxu0 0.0
    %2179 = vmatprep.mubr.f32.mxu0 0.0
    %2180 = vmatmul.mubr.f32.gmra.mrb[0].mxu0 %v2113
    %v2181 = vpop.f32.mrb[0].mxu0
    %v2182 = vadd.f32 0.0, %v2181
    %v2183 = vpop.f32.mrb[0].mxu0
    %v2184 = vadd.f32 0.0, %v2183
    %2185 = vdwg.mxu0
    %v2186 = vadd.f32 %v1520, %v2182
    %v2188 = vrot.slane %v2184, 2
    %v2190 = vadd.f32 %v1516, %v2188
    %v2191 = vxor.u32 %v2186, 2147483648
    %v2192 = vmul.f32 %v2191, 1.442695
    %v2193 = vpow.pop %v2192
    %v2194 = vadd.f32 %v2193, 1.0
    %v2195 = vrcp.pop %v2194
    %v2196 = vmul.f32 1.0, %v2195
    %v2197 = vtanh.pop %v2186
    %v2199 = vrot.slane %v2067, 6
    %v2201 = vmul.f32 %v2196, %v2199
    %2203 = vrot.lane.b32.xlu0 %v2197, 32
    %v2204 = vpop.permute.xlu0 %2203
    %v2206 = vmul.f32 %v2196, %v2204
    %2208 = vrot.lane.b32.xlu0 %v2206, 32
    %v2209 = vpop.permute.xlu0 %2208
    %v2211 = vadd.f32 %v2201, %v2209
    %v2212 = vtanh.pop %v2211
    %2214 = vrot.lane.b32.xlu0 %v2212, 32
    %v2215 = vpop.permute.xlu0 %2214
    %v2217 = vmul.f32 %v2196, %v2215
    %v2218 = vxor.u32 %v2190, 2147483648
    %v2219 = vmul.f32 %v2218, 1.442695
    %v2220 = vpow.pop %v2219
    %v2221 = vadd.f32 %v2220, 1.0
    %v2222 = vrcp.pop %v2221
    %v2223 = vmul.f32 1.0, %v2222
    %v2224 = vtanh.pop %v2190
    %v2226 = vrot.slane %v2094, 2
    %v2228 = vmul.f32 %v2223, %v2226
    %2230 = vrot.lane.b32.xlu0 %v2224, 32
    %v2231 = vpop.permute.xlu0 %2230
    %v2233 = vmul.f32 %v2223, %v2231
    %2235 = vrot.lane.b32.xlu0 %v2233, 32
    %v2236 = vpop.permute.xlu0 %2235
    %v2238 = vadd.f32 %v2228, %v2236
    %v2239 = vtanh.pop %v2238
    %2241 = vrot.lane.b32.xlu0 %v2239, 32
    %v2242 = vpop.permute.xlu0 %2241
    %v2244 = vmul.f32 %v2223, %v2242
    %2246 = vrot.lane.b32.xlu0 %v2217, 64
    %v2247 = vpop.permute.xlu0 %2246
    %v2250 = vrot.slane %v2244, 6
    %2251 = vrot.lane.b32.xlu0 %v2250, 96
    %v2252 = vpop.permute.xlu0 %2251
    %v2254 = vsel %vm118, %v2247, %v2252
    %v2256 = vsel %vm234, %v2254, 0
    %2258 = vmatprep.subr.mxu0 %v1525
    %2259 = vmatpush1.msra.mxu0 %v1524
    %2260 = vmatprep.subr.mxu0 %v1527
    %2261 = vmatpush1.msra.mxu0 %v1526
    %2262 = vmatprep.subr.mxu0 %v1529
    %2263 = vmatpush1.msra.mxu0 %v1528
    %2264 = vmatprep.subr.mxu0 %v1531
    %2265 = vmatpush1.msra.mxu0 %v1530
    %2266 = vmatprep.subr.mxu0 %v1533
    %2267 = vmatpush1.msra.mxu0 %v1532
    %2268 = vmatprep.subr.mxu0 %v1535
    %2269 = vmatpush1.msra.mxu0 %v1534
    %2270 = vmatprep.subr.mxu0 %v1537
    %2271 = vmatpush1.msra.mxu0 %v1536
    %2272 = vmatprep.subr.mxu0 %v1539
    %2273 = vmatpush1.msra.mxu0 %v1538
    %2274 = vmatprep.subr.mxu0 0.0
    %2275 = vmatpush1.msra.mxu0 0.0
    %2276 = vmatprep.subr.mxu0 0.0
    %2277 = vmatpush1.msra.mxu0 0.0
    %2278 = vmatprep.subr.mxu0 0.0
    %2279 = vmatpush1.msra.mxu0 0.0
    %2280 = vmatprep.subr.mxu0 0.0
    %2281 = vmatpush1.msra.mxu0 0.0
    %2282 = vmatprep.subr.mxu0 0.0
    %2283 = vmatpush1.msra.mxu0 0.0
    %2284 = vmatprep.subr.mxu0 0.0
    %2285 = vmatpush1.msra.mxu0 0.0
    %2286 = vmatprep.subr.mxu0 0.0
    %2287 = vmatpush1.msra.mxu0 0.0
    %2288 = vmatprep.subr.mxu0 0.0
    %2289 = vmatpush1.msra.mxu0 0.0
    %2290 = vmatprep.subr.mxu0 0.0
    %2291 = vmatpush1.msra.mxu0 0.0
    %2292 = vmatprep.subr.mxu0 0.0
    %2293 = vmatpush1.msra.mxu0 0.0
    %2294 = vmatprep.subr.mxu0 0.0
    %2295 = vmatpush1.msra.mxu0 0.0
    %2296 = vmatprep.subr.mxu0 0.0
    %2297 = vmatpush1.msra.mxu0 0.0
    %2298 = vmatprep.subr.mxu0 0.0
    %2299 = vmatpush1.msra.mxu0 0.0
    %2300 = vmatprep.subr.mxu0 0.0
    %2301 = vmatpush1.msra.mxu0 0.0
    %2302 = vmatprep.subr.mxu0 0.0
    %2303 = vmatpush1.msra.mxu0 0.0
    %2304 = vmatprep.subr.mxu0 0.0
    %2305 = vmatpush1.msra.mxu0 0.0
    %2306 = vmatprep.subr.mxu0 0.0
    %2307 = vmatpush1.msra.mxu0 0.0
    %2308 = vmatprep.subr.mxu0 0.0
    %2309 = vmatpush1.msra.mxu0 0.0
    %2310 = vmatprep.subr.mxu0 0.0
    %2311 = vmatpush1.msra.mxu0 0.0
    %2312 = vmatprep.subr.mxu0 0.0
    %2313 = vmatpush1.msra.mxu0 0.0
    %2314 = vmatprep.subr.mxu0 0.0
    %2315 = vmatpush1.msra.mxu0 0.0
    %2316 = vmatprep.subr.mxu0 0.0
    %2317 = vmatpush1.msra.mxu0 0.0
    %2318 = vmatprep.subr.mxu0 0.0
    %2319 = vmatpush1.msra.mxu0 0.0
    %2320 = vmatprep.subr.mxu0 0.0
    %2321 = vmatpush1.msra.mxu0 0.0
    %2322 = vmatprep.mubr.f32.mxu0 0.0
    %2323 = vmatmul.mubr.f32.gmra.mrb[0].mxu0 %v2256
    %v2324 = vpop.f32.mrb[0].mxu0
    %v2325 = vadd.f32 0.0, %v2324
    %v2326 = vpop.f32.mrb[0].mxu0
    %v2327 = vadd.f32 0.0, %v2326
    %2328 = vdwg.mxu0
    %v2330 = vrot.slane %v2325, 6
    %v2332 = vadd.f32 %v1520, %v2330
    %v2334 = vrot.slane %v2327, 4
    %v2336 = vadd.f32 %v1516, %v2334
    %v2337 = vxor.u32 %v2332, 2147483648
    %v2338 = vmul.f32 %v2337, 1.442695
    %v2339 = vpow.pop %v2338
    %v2340 = vadd.f32 %v2339, 1.0
    %v2341 = vrcp.pop %v2340
    %v2342 = vmul.f32 1.0, %v2341
    %v2343 = vtanh.pop %v2332
    %v2345 = vrot.slane %v2211, 6
    %v2347 = vmul.f32 %v2342, %v2345
    %2349 = vrot.lane.b32.xlu0 %v2343, 32
    %v2350 = vpop.permute.xlu0 %2349
    %v2352 = vmul.f32 %v2342, %v2350
    %2354 = vrot.lane.b32.xlu0 %v2352, 32
    %v2355 = vpop.permute.xlu0 %2354
    %v2357 = vadd.f32 %v2347, %v2355
    %v2358 = vtanh.pop %v2357
    %2360 = vrot.lane.b32.xlu0 %v2358, 32
    %v2361 = vpop.permute.xlu0 %2360
    %v2363 = vmul.f32 %v2342, %v2361
    %v2364 = vxor.u32 %v2336, 2147483648
    %v2365 = vmul.f32 %v2364, 1.442695
    %v2366 = vpow.pop %v2365
    %v2367 = vadd.f32 %v2366, 1.0
    %v2368 = vrcp.pop %v2367
    %v2369 = vmul.f32 1.0, %v2368
    %v2370 = vtanh.pop %v2336
    %v2372 = vrot.slane %v2238, 2
    %v2374 = vmul.f32 %v2369, %v2372
    %2376 = vrot.lane.b32.xlu0 %v2370, 32
    %v2377 = vpop.permute.xlu0 %2376
    %v2379 = vmul.f32 %v2369, %v2377
    %2381 = vrot.lane.b32.xlu0 %v2379, 32
    %v2382 = vpop.permute.xlu0 %2381
    %v2384 = vadd.f32 %v2374, %v2382
    %v2385 = vtanh.pop %v2384
    %2387 = vrot.lane.b32.xlu0 %v2385, 32
    %v2388 = vpop.permute.xlu0 %2387
    %v2390 = vmul.f32 %v2369, %v2388
    %2392 = vrot.lane.b32.xlu0 %v2363, 64
    %v2393 = vpop.permute.xlu0 %2392
    %v2396 = vrot.slane %v2390, 2
    %2397 = vrot.lane.b32.xlu0 %v2396, 96
    %v2398 = vpop.permute.xlu0 %2397
    %v2400 = vsel %vm118, %v2393, %v2398
    %v2402 = vrot.slane %v2400, 2
    %v2403 = vsel %vm234, %v2402, 0
    %2405 = vmatprep.subr.mxu0 %v1525
    %2406 = vmatpush1.msra.mxu0 %v1524
    %2407 = vmatprep.subr.mxu0 %v1527
    %2408 = vmatpush1.msra.mxu0 %v1526
    %2409 = vmatprep.subr.mxu0 %v1529
    %2410 = vmatpush1.msra.mxu0 %v1528
    %2411 = vmatprep.subr.mxu0 %v1531
    %2412 = vmatpush1.msra.mxu0 %v1530
    %2413 = vmatprep.subr.mxu0 %v1533
    %2414 = vmatpush1.msra.mxu0 %v1532
    %2415 = vmatprep.subr.mxu0 %v1535
    %2416 = vmatpush1.msra.mxu0 %v1534
    %2417 = vmatprep.subr.mxu0 %v1537
    %2418 = vmatpush1.msra.mxu0 %v1536
    %2419 = vmatprep.subr.mxu0 %v1539
    %2420 = vmatpush1.msra.mxu0 %v1538
    %2421 = vmatprep.subr.mxu0 0.0
    %2422 = vmatpush1.msra.mxu0 0.0
    %2423 = vmatprep.subr.mxu0 0.0
    %2424 = vmatpush1.msra.mxu0 0.0
    %2425 = vmatprep.subr.mxu0 0.0
    %2426 = vmatpush1.msra.mxu0 0.0
    %2427 = vmatprep.subr.mxu0 0.0
    %2428 = vmatpush1.msra.mxu0 0.0
    %2429 = vmatprep.subr.mxu0 0.0
    %2430 = vmatpush1.msra.mxu0 0.0
    %2431 = vmatprep.subr.mxu0 0.0
    %2432 = vmatpush1.msra.mxu0 0.0
    %2433 = vmatprep.subr.mxu0 0.0
    %2434 = vmatpush1.msra.mxu0 0.0
    %2435 = vmatprep.subr.mxu0 0.0
    %2436 = vmatpush1.msra.mxu0 0.0
    %2437 = vmatprep.subr.mxu0 0.0
    %2438 = vmatpush1.msra.mxu0 0.0
    %2439 = vmatprep.subr.mxu0 0.0
    %2440 = vmatpush1.msra.mxu0 0.0
    %2441 = vmatprep.subr.mxu0 0.0
    %2442 = vmatpush1.msra.mxu0 0.0
    %2443 = vmatprep.subr.mxu0 0.0
    %2444 = vmatpush1.msra.mxu0 0.0
    %2445 = vmatprep.subr.mxu0 0.0
    %2446 = vmatpush1.msra.mxu0 0.0
    %2447 = vmatprep.subr.mxu0 0.0
    %2448 = vmatpush1.msra.mxu0 0.0
    %2449 = vmatprep.subr.mxu0 0.0
    %2450 = vmatpush1.msra.mxu0 0.0
    %2451 = vmatprep.subr.mxu0 0.0
    %2452 = vmatpush1.msra.mxu0 0.0
    %2453 = vmatprep.subr.mxu0 0.0
    %2454 = vmatpush1.msra.mxu0 0.0
    %2455 = vmatprep.subr.mxu0 0.0
    %2456 = vmatpush1.msra.mxu0 0.0
    %2457 = vmatprep.subr.mxu0 0.0
    %2458 = vmatpush1.msra.mxu0 0.0
    %2459 = vmatprep.subr.mxu0 0.0
    %2460 = vmatpush1.msra.mxu0 0.0
    %2461 = vmatprep.subr.mxu0 0.0
    %2462 = vmatpush1.msra.mxu0 0.0
    %2463 = vmatprep.subr.mxu0 0.0
    %2464 = vmatpush1.msra.mxu0 0.0
    %2465 = vmatprep.subr.mxu0 0.0
    %2466 = vmatpush1.msra.mxu0 0.0
    %2467 = vmatprep.subr.mxu0 0.0
    %2468 = vmatpush1.msra.mxu0 0.0
    %2469 = vmatprep.mubr.f32.mxu0 0.0
    %2470 = vmatmul.mubr.f32.gmra.mrb[0].mxu0 %v2403
    %v2471 = vpop.f32.mrb[0].mxu0
    %v2472 = vadd.f32 0.0, %v2471
    %v2473 = vpop.f32.mrb[0].mxu0
    %v2474 = vadd.f32 0.0, %v2473
    %2475 = vdwg.mxu0
    %v2477 = vrot.slane %v2472, 4
    %v2479 = vadd.f32 %v1520, %v2477
    %v2481 = vrot.slane %v2474, 6
    %v2483 = vadd.f32 %v1516, %v2481
    %v2484 = vxor.u32 %v2479, 2147483648
    %v2485 = vmul.f32 %v2484, 1.442695
    %v2486 = vpow.pop %v2485
    %v2487 = vadd.f32 %v2486, 1.0
    %v2488 = vrcp.pop %v2487
    %v2489 = vmul.f32 1.0, %v2488
    %v2490 = vtanh.pop %v2479
    %v2492 = vrot.slane %v2357, 6
    %v2494 = vmul.f32 %v2489, %v2492
    %2496 = vrot.lane.b32.xlu0 %v2490, 32
    %v2497 = vpop.permute.xlu0 %2496
    %v2499 = vmul.f32 %v2489, %v2497
    %2501 = vrot.lane.b32.xlu0 %v2499, 32
    %v2502 = vpop.permute.xlu0 %2501
    %v2504 = vadd.f32 %v2494, %v2502
    %v2505 = vtanh.pop %v2504
    %2507 = vrot.lane.b32.xlu0 %v2505, 32
    %v2508 = vpop.permute.xlu0 %2507
    %v2510 = vmul.f32 %v2489, %v2508
    %v2511 = vxor.u32 %v2483, 2147483648
    %v2512 = vmul.f32 %v2511, 1.442695
    %v2513 = vpow.pop %v2512
    %v2514 = vadd.f32 %v2513, 1.0
    %v2515 = vrcp.pop %v2514
    %v2516 = vmul.f32 1.0, %v2515
    %v2517 = vtanh.pop %v2483
    %v2519 = vrot.slane %v2384, 2
    %v2521 = vmul.f32 %v2516, %v2519
    %2523 = vrot.lane.b32.xlu0 %v2517, 32
    %v2524 = vpop.permute.xlu0 %2523
    %v2526 = vmul.f32 %v2516, %v2524
    %2528 = vrot.lane.b32.xlu0 %v2526, 32
    %v2529 = vpop.permute.xlu0 %2528
    %v2531 = vadd.f32 %v2521, %v2529
    %v2532 = vtanh.pop %v2531
    %2534 = vrot.lane.b32.xlu0 %v2532, 32
    %v2535 = vpop.permute.xlu0 %2534
    %v2537 = vmul.f32 %v2516, %v2535
    %2539 = vrot.lane.b32.xlu0 %v2510, 64
    %v2540 = vpop.permute.xlu0 %2539
    %v2543 = vrot.slane %v2537, 6
    %2544 = vrot.lane.b32.xlu0 %v2543, 96
    %v2545 = vpop.permute.xlu0 %2544
    %v2547 = vsel %vm118, %v2540, %v2545
    %v2549 = vrot.slane %v2547, 4
    %v2550 = vsel %vm234, %v2549, 0
    %2552 = vmatprep.subr.mxu0 %v1525
    %2553 = vmatpush1.msra.mxu0 %v1524
    %2554 = vmatprep.subr.mxu0 %v1527
    %2555 = vmatpush1.msra.mxu0 %v1526
    %2556 = vmatprep.subr.mxu0 %v1529
    %2557 = vmatpush1.msra.mxu0 %v1528
    %2558 = vmatprep.subr.mxu0 %v1531
    %2559 = vmatpush1.msra.mxu0 %v1530
    %2560 = vmatprep.subr.mxu0 %v1533
    %2561 = vmatpush1.msra.mxu0 %v1532
    %2562 = vmatprep.subr.mxu0 %v1535
    %2563 = vmatpush1.msra.mxu0 %v1534
    %2564 = vmatprep.subr.mxu0 %v1537
    %2565 = vmatpush1.msra.mxu0 %v1536
    %2566 = vmatprep.subr.mxu0 %v1539
    %2567 = vmatpush1.msra.mxu0 %v1538
    %2568 = vmatprep.subr.mxu0 0.0
    %2569 = vmatpush1.msra.mxu0 0.0
    %2570 = vmatprep.subr.mxu0 0.0
    %2571 = vmatpush1.msra.mxu0 0.0
    %2572 = vmatprep.subr.mxu0 0.0
    %2573 = vmatpush1.msra.mxu0 0.0
    %2574 = vmatprep.subr.mxu0 0.0
    %2575 = vmatpush1.msra.mxu0 0.0
    %2576 = vmatprep.subr.mxu0 0.0
    %2577 = vmatpush1.msra.mxu0 0.0
    %2578 = vmatprep.subr.mxu0 0.0
    %2579 = vmatpush1.msra.mxu0 0.0
    %2580 = vmatprep.subr.mxu0 0.0
    %2581 = vmatpush1.msra.mxu0 0.0
    %2582 = vmatprep.subr.mxu0 0.0
    %2583 = vmatpush1.msra.mxu0 0.0
    %2584 = vmatprep.subr.mxu0 0.0
    %2585 = vmatpush1.msra.mxu0 0.0
    %2586 = vmatprep.subr.mxu0 0.0
    %2587 = vmatpush1.msra.mxu0 0.0
    %2588 = vmatprep.subr.mxu0 0.0
    %2589 = vmatpush1.msra.mxu0 0.0
    %2590 = vmatprep.subr.mxu0 0.0
    %2591 = vmatpush1.msra.mxu0 0.0
    %2592 = vmatprep.subr.mxu0 0.0
    %2593 = vmatpush1.msra.mxu0 0.0
    %2594 = vmatprep.subr.mxu0 0.0
    %2595 = vmatpush1.msra.mxu0 0.0
    %2596 = vmatprep.subr.mxu0 0.0
    %2597 = vmatpush1.msra.mxu0 0.0
    %2598 = vmatprep.subr.mxu0 0.0
    %2599 = vmatpush1.msra.mxu0 0.0
    %2600 = vmatprep.subr.mxu0 0.0
    %2601 = vmatpush1.msra.mxu0 0.0
    %2602 = vmatprep.subr.mxu0 0.0
    %2603 = vmatpush1.msra.mxu0 0.0
    %2604 = vmatprep.subr.mxu0 0.0
    %2605 = vmatpush1.msra.mxu0 0.0
    %2606 = vmatprep.subr.mxu0 0.0
    %2607 = vmatpush1.msra.mxu0 0.0
    %2608 = vmatprep.subr.mxu0 0.0
    %2609 = vmatpush1.msra.mxu0 0.0
    %2610 = vmatprep.subr.mxu0 0.0
    %2611 = vmatpush1.msra.mxu0 0.0
    %2612 = vmatprep.subr.mxu0 0.0
    %2613 = vmatpush1.msra.mxu0 0.0
    %2614 = vmatprep.subr.mxu0 0.0
    %2615 = vmatpush1.msra.mxu0 0.0
    %2616 = vmatprep.mubr.f32.mxu0 0.0
    %2617 = vmatmul.mubr.f32.gmra.mrb[0].mxu0 %v2550
    %v2618 = vpop.f32.mrb[0].mxu0
    %v2619 = vadd.f32 0.0, %v2618
    %v2620 = vpop.f32.mrb[0].mxu0
    %v2621 = vadd.f32 0.0, %v2620
    %2622 = vdwg.mxu0
    %v2624 = vrot.slane %v2619, 2
    %v2626 = vadd.f32 %v1520, %v2624
    %v2627 = vadd.f32 %v1516, %v2621
    %v2628 = vxor.u32 %v2626, 2147483648
    %v2629 = vmul.f32 %v2628, 1.442695
    %v2630 = vpow.pop %v2629
    %v2631 = vadd.f32 %v2630, 1.0
    %v2632 = vrcp.pop %v2631
    %v2633 = vmul.f32 1.0, %v2632
    %v2634 = vtanh.pop %v2626
    %v2636 = vrot.slane %v2504, 6
    %v2638 = vmul.f32 %v2633, %v2636
    %2640 = vrot.lane.b32.xlu0 %v2634, 32
    %v2641 = vpop.permute.xlu0 %2640
    %v2643 = vmul.f32 %v2633, %v2641
    %2645 = vrot.lane.b32.xlu0 %v2643, 32
    %v2646 = vpop.permute.xlu0 %2645
    %v2648 = vadd.f32 %v2638, %v2646
    %v2649 = vtanh.pop %v2648
    %2651 = vrot.lane.b32.xlu0 %v2649, 32
    %v2652 = vpop.permute.xlu0 %2651
    %v2654 = vmul.f32 %v2633, %v2652
    %v2655 = vxor.u32 %v2627, 2147483648
    %v2656 = vmul.f32 %v2655, 1.442695
    %v2657 = vpow.pop %v2656
    %v2658 = vadd.f32 %v2657, 1.0
    %v2659 = vrcp.pop %v2658
    %v2660 = vmul.f32 1.0, %v2659
    %v2661 = vtanh.pop %v2627
    %v2663 = vrot.slane %v2531, 2
    %v2665 = vmul.f32 %v2660, %v2663
    %2667 = vrot.lane.b32.xlu0 %v2661, 32
    %v2668 = vpop.permute.xlu0 %2667
    %v2670 = vmul.f32 %v2660, %v2668
    %2672 = vrot.lane.b32.xlu0 %v2670, 32
    %v2673 = vpop.permute.xlu0 %2672
    %v2675 = vadd.f32 %v2665, %v2673
    %v2676 = vtanh.pop %v2675
    %2678 = vrot.lane.b32.xlu0 %v2676, 32
    %v2679 = vpop.permute.xlu0 %2678
    %v2681 = vmul.f32 %v2660, %v2679
    %v2682 = vsel %vm1380, %v1639, %v1782
    %v2683 = vsel %vm1382, %v2682, %v1929
    %v2684 = vsel %vm1384, %v2683, %v2073
    %v2685 = vsel %vm1380, %v2217, %v2363
    %v2686 = vsel %vm1382, %v2685, %v2510
    %v2687 = vsel %vm1384, %v2686, %v2654
    %v2688 = vsel %vm1380, %v2681, %v2537
    %v2689 = vsel %vm1382, %v2688, %v2390
    %v2690 = vsel %vm1384, %v2689, %v2244
    %v2691 = vsel %vm1380, %v2100, %v1956
    %v2692 = vsel %vm1382, %v2691, %v1809
    %v2693 = vsel %vm1384, %v2692, %v1663
    %2696 = vrot.lane.b32.xlu0 %v2684, 64
    %v2697 = vpop.permute.xlu0 %2696
    %2698 = vrot.lane.b32.xlu0 %v2687, 64
    %v2699 = vpop.permute.xlu0 %2698
    %2704 = vrot.lane.b32.xlu0 %v2690, 96
    %v2705 = vpop.permute.xlu0 %2704
    %2706 = vrot.lane.b32.xlu0 %v2693, 96
    %v2707 = vpop.permute.xlu0 %2706
    %v2710 = vsel %vm118, %v2697, %v2705
    %v2711 = vsel %vm118, %v2699, %v2707
    %v2712 = vld [vmem:[%s9] sm:$0xff]
    %v2713 = vld [vmem:[%s9 + $0x8] sm:$0xff]
    %v2714 = vld [vmem:[%s9 + $0x10] sm:$0xff]
    %v2715 = vld [vmem:[%s9 + $0x18] sm:$0xff]
    %v2716 = vld [vmem:[%s9 + $0x20] sm:$0xff]
    %v2717 = vld [vmem:[%s9 + $0x28] sm:$0xff]
    %v2718 = vld [vmem:[%s9 + $0x30] sm:$0xff]
    %v2719 = vld [vmem:[%s9 + $0x38] sm:$0xff]
    %v2720 = vld [vmem:[%s10] sm:$0x1]
    %v2722 = vlaneseq
    %v2723 = vshrl.u32 %v2722, 7
    %v2724 = vsub.s32 0, %v2723
    %v2725 = vrot.slane %v2720, %v2724
    %v2728 = vsel %vm234, %v2710, 0
    %v2731 = vsel %vm234, %v2711, 0
    %2733 = vmatprep.subr.mxu0 0.0
    %2734 = vmatpush1.msra.mxu0 %v2712
    %2735 = vmatprep.subr.mxu0 0.0
    %2736 = vmatpush1.msra.mxu0 %v2713
    %2737 = vmatprep.subr.mxu0 0.0
    %2738 = vmatpush1.msra.mxu0 %v2714
    %2739 = vmatprep.subr.mxu0 0.0
    %2740 = vmatpush1.msra.mxu0 %v2715
    %2741 = vmatprep.subr.mxu0 0.0
    %2742 = vmatpush1.msra.mxu0 %v2716
    %2743 = vmatprep.subr.mxu0 0.0
    %2744 = vmatpush1.msra.mxu0 %v2717
    %2745 = vmatprep.subr.mxu0 0.0
    %2746 = vmatpush1.msra.mxu0 %v2718
    %2747 = vmatprep.subr.mxu0 0.0
    %2748 = vmatpush1.msra.mxu0 %v2719
    %2749 = vmatprep.subr.mxu0 0.0
    %2750 = vmatpush1.msra.mxu0 0.0
    %2751 = vmatprep.subr.mxu0 0.0
    %2752 = vmatpush1.msra.mxu0 0.0
    %2753 = vmatprep.subr.mxu0 0.0
    %2754 = vmatpush1.msra.mxu0 0.0
    %2755 = vmatprep.subr.mxu0 0.0
    %2756 = vmatpush1.msra.mxu0 0.0
    %2757 = vmatprep.subr.mxu0 0.0
    %2758 = vmatpush1.msra.mxu0 0.0
    %2759 = vmatprep.subr.mxu0 0.0
    %2760 = vmatpush1.msra.mxu0 0.0
    %2761 = vmatprep.subr.mxu0 0.0
    %2762 = vmatpush1.msra.mxu0 0.0
    %2763 = vmatprep.subr.mxu0 0.0
    %2764 = vmatpush1.msra.mxu0 0.0
    %2765 = vmatprep.subr.mxu0 0.0
    %2766 = vmatpush1.msra.mxu0 0.0
    %2767 = vmatprep.subr.mxu0 0.0
    %2768 = vmatpush1.msra.mxu0 0.0
    %2769 = vmatprep.subr.mxu0 0.0
    %2770 = vmatpush1.msra.mxu0 0.0
    %2771 = vmatprep.subr.mxu0 0.0
    %2772 = vmatpush1.msra.mxu0 0.0
    %2773 = vmatprep.subr.mxu0 0.0
    %2774 = vmatpush1.msra.mxu0 0.0
    %2775 = vmatprep.subr.mxu0 0.0
    %2776 = vmatpush1.msra.mxu0 0.0
    %2777 = vmatprep.subr.mxu0 0.0
    %2778 = vmatpush1.msra.mxu0 0.0
    %2779 = vmatprep.subr.mxu0 0.0
    %2780 = vmatpush1.msra.mxu0 0.0
    %2781 = vmatprep.subr.mxu0 0.0
    %2782 = vmatpush1.msra.mxu0 0.0
    %2783 = vmatprep.subr.mxu0 0.0
    %2784 = vmatpush1.msra.mxu0 0.0
    %2785 = vmatprep.subr.mxu0 0.0
    %2786 = vmatpush1.msra.mxu0 0.0
    %2787 = vmatprep.subr.mxu0 0.0
    %2788 = vmatpush1.msra.mxu0 0.0
    %2789 = vmatprep.subr.mxu0 0.0
    %2790 = vmatpush1.msra.mxu0 0.0
    %2791 = vmatprep.subr.mxu0 0.0
    %2792 = vmatpush1.msra.mxu0 0.0
    %2793 = vmatprep.subr.mxu0 0.0
    %2794 = vmatpush1.msra.mxu0 0.0
    %2795 = vmatprep.subr.mxu0 0.0
    %2796 = vmatpush1.msra.mxu0 0.0
    %2797 = vmatprep.mubr.f32.mxu0 0.0
    %2798 = vmatmul.mubr.f32.gmra.mrb[0].mxu0 %v2728
    %v2799 = vpop.f32.mrb[0].mxu0
    %v2800 = vadd.f32 %v2725, %v2799
    %v2801 = vpop.f32.mrb[0].mxu0
    %2802 = vmatprep.mubr.f32.mxu0 0.0
    %2803 = vmatmul.mubr.f32.gmra.mrb[0].mxu0 %v2731
    %v2804 = vpop.f32.mrb[0].mxu0
    %v2805 = vadd.f32 %v2725, %v2804
    %v2806 = vpop.f32.mrb[0].mxu0
    %2807 = vdwg.mxu0
    %vm2808 = vcmask 130048
    %2809 = vst.msk [vmem:[#allocation8] sm:$0xff] %vm2808, %v2800
    %2810 = vst.msk [vmem:[#allocation8 + $0x8] sm:$0xff] %vm2808, %v2805
    // Predicated region
    $region58: #{tpu_custom_call.1} parent=1 // pred_check
      _
    $region59: #{tpu_custom_call.1} parent=1 // pred_check_branch
      %2812 = sbr.rel (0) target = $region61
    $region60: #{tpu_custom_call.1} parent=1 // pred_region
      %s2814 = ssub.s32 256, 256
      %2815 = vsyncadd [#allocation4], %s2814
      %s2816 = sshll.u32 [#allocation8], 4
      %s2817 = int_to_ptr.vmem [resolvable:$true] %s2816
      %2822 = dma.vmem_to_hbm [thread:$0]  %s2817, 256, %s11, [#allocation4], 128, 128, 8
    $region61: #{tpu_custom_call.1} parent=1 // pred_fallthru
      _
    // Predicated region
    $region62: #{tpu_custom_call.1} parent=1 // pred_check
      _
    $region63: #{tpu_custom_call.1} parent=1 // pred_check_branch
      %2824 = sbr.rel (0) target = $region65
    $region64: #{tpu_custom_call.1} parent=1 // pred_region
      %2825 = dma.done [#allocation4], 256
    $region65: #{tpu_custom_call.1} parent=1 // pred_fallthru
      _
    %2826 = vsyncpa [#allocation3], 1
    %2827 = vsyncpa [#allocation6], 1
    %2828 = vsyncpa [#allocation4], 1

</llo_original>
